<compile_context>
chip_gen: v5e
topology: v5e:2x2
jax: 0.10.0
libtpu: 0.0.40
codegen_flags: <defaults>
</compile_context>

<pallas_src>
import functools

import jax
import jax.numpy as jnp
import numpy as np
from jax.experimental import pallas as pl
from jax.experimental.pallas import tpu as pltpu


def graph_learning_kernel(L, Bblk, x_ref, wi3_ref, wh3_ref, bx_ref, bhn_ref,
                          wkqv_ref, out_ref):
    # x_ref:    (L*Bblk, S)   time-major rows: row t*Bblk + b  ==  x[b, t, :]
    # wi3_ref:  (S, 3S)       fused input weights, gate order [r, z, n]
    # wh3_ref:  (S, 3S)       fused hidden weights, same gate order
    # bx_ref:   (1, 3S)       pre-folded bias [b_ir+b_hr, b_iz+b_hz, b_in]
    # bhn_ref:  (1, S)        b_hn (must stay inside r * (...))
    # wkqv_ref: (Bblk, S, 3L) per-batch fused key/query/value weights
    # out_ref:  (L, Bblk*L)   lane-dense adjacency slab, columns ordered (b, j)
    S = x_ref.shape[1]

    # Hoisted input projection for every (t, b) row, biases folded in: (L*Bblk, 3S).
    x_proj = (jnp.dot(x_ref[...], wi3_ref[...], preferred_element_type=jnp.float32)
              + bx_ref[...])
    w_h3 = wh3_ref[...]
    b_hn = bhn_ref[...]

    # Serial GRU recurrence, vectorized over the Bblk batch rows, fully unrolled
    # (L is small & static).  Hidden states stay in registers.
    h = jnp.zeros((Bblk, S), jnp.float32)
    hs = []
    for t in range(L):
        hh = jnp.dot(h, w_h3, preferred_element_type=jnp.float32)     # (Bblk, 3S)
        xp = x_proj[t * Bblk:(t + 1) * Bblk, :]                        # (Bblk, 3S)
        rz = jax.nn.sigmoid(xp[:, :2 * S] + hh[:, :2 * S])             # (Bblk, 2S)
        r = rz[:, :S]
        z = rz[:, S:]
        n = jnp.tanh(xp[:, 2 * S:] + r * (hh[:, 2 * S:] + b_hn))
        h = (1.0 - z) * n + z * h
        hs.append(h)

    h_all = jnp.stack(hs, axis=1)                                      # (Bblk, L, S)

    # One fused K/Q/V projection for the whole block: (Bblk, L, 3L).
    kqv = jnp.einsum('bts,bsk->btk', h_all, wkqv_ref[...],
                     preferred_element_type=jnp.float32)
    key = kqv[:, :, 0 * L:1 * L]
    query = kqv[:, :, 1 * L:2 * L]
    value = kqv[:, :, 2 * L:3 * L]

    # attention_score = query @ key^T, per batch element.
    score = jnp.einsum('bik,bjk->bij', query, key,
                       preferred_element_type=jnp.float32)             # (Bblk, L, L)

    # torch.softmax(score, dim=1) on (B, L, L)  ->  axis 1 of (Bblk, L, L).
    score = score - jnp.max(score, axis=1, keepdims=True)
    e = jnp.exp(score)
    inv_den = pl.reciprocal(jnp.sum(e, axis=1, keepdims=True), approx=True)
    attn = e * inv_den

    adj = jnp.einsum('bij,bjk->bik', attn, value,
                     preferred_element_type=jnp.float32)               # (Bblk, L, L)
    adj = jnp.maximum(adj, 0.0)

    # Symmetrize per batch element and pack into the lane-dense output slab
    # (the out block itself is 128 lanes wide, so the writeback DMA is dense).
    for b in range(Bblk):
        a = adj[b]                                                     # (L, L)
        out_ref[:, b * L:(b + 1) * L] = (0.5 * (a + a.T)).astype(out_ref.dtype)


def _pick_block_b(batch):
    """Largest divisor of `batch` that keeps the grid length >= 2 (so both v7x
    TensorCores get work) while staying modest for vreg pressure."""
    best = 1
    for d in range(1, batch + 1):
        if batch % d == 0 and d <= 128 and batch // d >= 2:
            best = d
    return best


@functools.partial(jax.jit, static_argnames=("block_b",))
def graph_learning_forward(x, w_ih, w_hh, b_ih, b_hh, kw, qw, vw, block_b=None):
    B, L, S = x.shape
    if block_b is None:
        block_b = _pick_block_b(B)
    assert B % block_b == 0
    G = B // block_b

    # Fuse gate weights [r, z, n] along the output dim: (S, 3S).
    w_i3 = jnp.concatenate([w_ih[0], w_ih[1], w_ih[2]], axis=1)
    w_h3 = jnp.concatenate([w_hh[0], w_hh[1], w_hh[2]], axis=1)
    # Fold b_ih fully and b_hr/b_hz into the hoisted input projection;
    # b_hn must stay inside r * (W_hn h + b_hn).
    bias_x = jnp.concatenate(
        [b_ih[0] + b_hh[0], b_ih[1] + b_hh[1], b_ih[2]], axis=1)        # (1, 3S)
    b_hn = b_hh[2]                                                       # (1, S)

    # Fuse key/query/value weights: (B, S, 3L) -> one DMA + one einsum in-kernel.
    w_kqv = jnp.concatenate([kw, qw, vw], axis=2)

    # Time-major, batch-blocked input slab: (G, L*block_b, S), rows (t, b_local).
    x_tm = jnp.transpose(x, (1, 0, 2)).reshape(L, G, block_b, S)
    x_tm = jnp.transpose(x_tm, (1, 0, 2, 3)).reshape(G, L * block_b, S)

    kernel = functools.partial(graph_learning_kernel, L, block_b)
    out = pl.pallas_call(
        kernel,
        out_shape=jax.ShapeDtypeStruct((G, L, block_b * L), jnp.float32),
        grid_spec=pltpu.PrefetchScalarGridSpec(
            num_scalar_prefetch=0,
            grid=(G,),
            in_specs=[
                pl.BlockSpec((None, L * block_b, S), lambda g: (g, 0, 0)),  # x slab
                pl.BlockSpec((S, 3 * S), lambda g: (0, 0)),                 # W_i fused
                pl.BlockSpec((S, 3 * S), lambda g: (0, 0)),                 # W_h fused
                pl.BlockSpec((1, 3 * S), lambda g: (0, 0)),                 # folded bias
                pl.BlockSpec((1, S), lambda g: (0, 0)),                     # b_hn
                pl.BlockSpec((block_b, S, 3 * L), lambda g: (g, 0, 0)),     # W_kqv fused
            ],
            out_specs=pl.BlockSpec((None, L, block_b * L), lambda g: (g, 0, 0)),
        ),
        compiler_params=pltpu.CompilerParams(dimension_semantics=("parallel",)),
    )(x_tm, w_i3, w_h3, bias_x, b_hn, w_kqv)

    # Unpack the lane-dense slabs (G, L, block_b*L) -> (B, L, L).
    adj = out.reshape(G, L, block_b, L).transpose(0, 2, 1, 3).reshape(B, L, L)
    return adj


def ref_forward(x, w_ih, w_hh, b_ih, b_hh, kw, qw, vw):
    """Pure-JAX reference mirroring the PyTorch forward."""
    def per_batch(xb, kwb, qwb, vwb):
        S = xb.shape[1]

        def step(h, x_t):
            x_t = x_t[None, :]
            r = jax.nn.sigmoid(x_t @ w_ih[0] + b_ih[0] + h @ w_hh[0] + b_hh[0])
            z = jax.nn.sigmoid(x_t @ w_ih[1] + b_ih[1] + h @ w_hh[1] + b_hh[1])
            n = jnp.tanh(x_t @ w_ih[2] + b_ih[2] + r * (h @ w_hh[2] + b_hh[2]))
            h_new = (1.0 - z) * n + z * h
            return h_new, h_new[0]

        _, hs = jax.lax.scan(step, jnp.zeros((1, S), jnp.float32), xb)
        key, query, value = hs @ kwb, hs @ qwb, hs @ vwb
        score = query @ key.T
        attn = jax.nn.softmax(score, axis=0)              # torch softmax dim=1
        adj = jnp.maximum(attn @ value, 0.0)
        return 0.5 * (adj + adj.T)

    return jax.vmap(per_batch)(x, kw, qw, vw)


if __name__ == "__main__":
    # batch=32, n_leads=8, step_len=32 -- small shapes consistent with the module,
    # batch chosen so the batch-blocked kernel is exercised (Bblk=16, grid=2,
    # lane-dense 128-wide output slab).
    B, L, S = 32, 8, 32
    key0 = jax.random.PRNGKey(0)
    ks = jax.random.split(key0, 8)

    x = jax.random.normal(ks[0], (B, L, S), jnp.float32)

    # GRU params (PyTorch default init is U(-1/sqrt(H), 1/sqrt(H))); gate order [r, z, n].
    bound = 1.0 / np.sqrt(S)
    w_ih = jax.random.uniform(ks[1], (3, S, S), jnp.float32, -bound, bound)
    w_hh = jax.random.uniform(ks[2], (3, S, S), jnp.float32, -bound, bound)
    b_ih = jax.random.uniform(ks[3], (3, 1, S), jnp.float32, -bound, bound)
    b_hh = jax.random.uniform(ks[4], (3, 1, S), jnp.float32, -bound, bound)

    # xavier-normal-style init for (batch, step_len, n_leads) attention weights.
    xav_std = float(np.sqrt(2.0 / (S + L)))
    kw = xav_std * jax.random.normal(ks[5], (B, S, L), jnp.float32)
    qw = xav_std * jax.random.normal(ks[6], (B, S, L), jnp.float32)
    vw = xav_std * jax.random.normal(ks[7], (B, S, L), jnp.float32)

    out = graph_learning_forward(x, w_ih, w_hh, b_ih, b_hh, kw, qw, vw)
    out = jax.block_until_ready(out)

    ref = ref_forward(x, w_ih, w_hh, b_ih, b_hh, kw, qw, vw)
    np.testing.assert_allclose(np.asarray(out), np.asarray(ref), rtol=2e-2, atol=2e-3)

    print("KERNEL_OK")
</pallas_src>

<mosaic_0001>
module attributes {stable_mosaic.version = 11 : i64} {
  func.func @graph_learning_kernel(%arg0: i32, %arg1: memref<1x128x32xf32, #tpu.memory_space<vmem>>, %arg2: memref<32x96xf32, #tpu.memory_space<vmem>>, %arg3: memref<32x96xf32, #tpu.memory_space<vmem>>, %arg4: memref<1x96xf32, #tpu.memory_space<vmem>>, %arg5: memref<1x32xf32, #tpu.memory_space<vmem>>, %arg6: memref<16x32x24xf32, #tpu.memory_space<vmem>>, %arg7: memref<1x8x128xf32, #tpu.memory_space<vmem>>) attributes {dimension_semantics = [#tpu.dimension_semantics<parallel>], iteration_bounds = array<i64: 2>, scalar_prefetch = 0 : i64, scratch_operands = 0 : i64, tpu.core_type = #tpu.core_type<tc>, window_params = [{transform_indices = @transform_0, window_bounds = array<i64: 1, 128, 32>}, {pipeline_mode = #tpu.pipeline_mode<synchronous>, transform_indices = @transform_1, window_bounds = array<i64: 32, 96>}, {pipeline_mode = #tpu.pipeline_mode<synchronous>, transform_indices = @transform_2, window_bounds = array<i64: 32, 96>}, {pipeline_mode = #tpu.pipeline_mode<synchronous>, transform_indices = @transform_3, window_bounds = array<i64: 1, 96>}, {pipeline_mode = #tpu.pipeline_mode<synchronous>, transform_indices = @transform_4, window_bounds = array<i64: 1, 32>}, {transform_indices = @transform_5, window_bounds = array<i64: 16, 32, 24>}, {transform_indices = @transform_6, window_bounds = array<i64: 1, 8, 128>}]} {
    %c0 = arith.constant 0 : index
    %c0_0 = arith.constant 0 : index
    %c0_1 = arith.constant 0 : index
    %0 = vector.load %arg1[%c0, %c0_0, %c0_1] : memref<1x128x32xf32, #tpu.memory_space<vmem>>, vector<1x128x32xf32>
    %1 = vector.shape_cast %0 : vector<1x128x32xf32> to vector<128x32xf32>
    %c0_2 = arith.constant 0 : index
    %c0_3 = arith.constant 0 : index
    %2 = vector.load %arg2[%c0_2, %c0_3] : memref<32x96xf32, #tpu.memory_space<vmem>>, vector<32x96xf32>
    %cst = arith.constant dense<0.000000e+00> : vector<128x96xf32>
    %3 = tpu.matmul %1, %2, %cst {dimension_numbers = #tpu.dot_dimension_numbers<[1], [0], [0], [1], [0, 0, 1, 1], [], []>} : vector<128x32xf32>, vector<32x96xf32>, vector<128x96xf32> -> vector<128x96xf32>
    %c0_4 = arith.constant 0 : index
    %c0_5 = arith.constant 0 : index
    %4 = vector.load %arg4[%c0_4, %c0_5] : memref<1x96xf32, #tpu.memory_space<vmem>>, vector<1x96xf32>
    %5 = vector.broadcast %4 : vector<1x96xf32> to vector<128x96xf32>
    %6 = arith.addf %3, %5 : vector<128x96xf32>
    %c0_6 = arith.constant 0 : index
    %c0_7 = arith.constant 0 : index
    %7 = vector.load %arg3[%c0_6, %c0_7] : memref<32x96xf32, #tpu.memory_space<vmem>>, vector<32x96xf32>
    %c0_8 = arith.constant 0 : index
    %c0_9 = arith.constant 0 : index
    %8 = vector.load %arg5[%c0_8, %c0_9] : memref<1x32xf32, #tpu.memory_space<vmem>>, vector<1x32xf32>
    %cst_10 = arith.constant 0.000000e+00 : f32
    %9 = vector.broadcast %cst_10 : f32 to vector<16x32xf32>
    %cst_11 = arith.constant dense<0.000000e+00> : vector<16x96xf32>
    %10 = tpu.matmul %9, %7, %cst_11 {dimension_numbers = #tpu.dot_dimension_numbers<[1], [0], [0], [1], [0, 0, 1, 1], [], []>} : vector<16x32xf32>, vector<32x96xf32>, vector<16x96xf32> -> vector<16x96xf32>
    %11 = vector.extract_strided_slice %6 {offsets = [0, 0], sizes = [16, 96], strides = [1, 1]} : vector<128x96xf32> to vector<16x96xf32>
    %12 = vector.extract_strided_slice %11 {offsets = [0, 0], sizes = [16, 64], strides = [1, 1]} : vector<16x96xf32> to vector<16x64xf32>
    %13 = vector.extract_strided_slice %10 {offsets = [0, 0], sizes = [16, 64], strides = [1, 1]} : vector<16x96xf32> to vector<16x64xf32>
    %14 = arith.addf %12, %13 : vector<16x64xf32>
    %15 = arith.negf %14 : vector<16x64xf32>
    %16 = math.exp %15 : vector<16x64xf32>
    %cst_12 = arith.constant 1.000000e+00 : f32
    %17 = vector.broadcast %cst_12 : f32 to vector<16x64xf32>
    %18 = arith.addf %17, %16 : vector<16x64xf32>
    %19 = arith.divf %17, %18 : vector<16x64xf32>
    %20 = vector.extract_strided_slice %19 {offsets = [0, 0], sizes = [16, 32], strides = [1, 1]} : vector<16x64xf32> to vector<16x32xf32>
    %21 = vector.extract_strided_slice %19 {offsets = [0, 32], sizes = [16, 32], strides = [1, 1]} : vector<16x64xf32> to vector<16x32xf32>
    %22 = vector.extract_strided_slice %11 {offsets = [0, 64], sizes = [16, 32], strides = [1, 1]} : vector<16x96xf32> to vector<16x32xf32>
    %23 = vector.extract_strided_slice %10 {offsets = [0, 64], sizes = [16, 32], strides = [1, 1]} : vector<16x96xf32> to vector<16x32xf32>
    %24 = vector.broadcast %8 : vector<1x32xf32> to vector<16x32xf32>
    %25 = arith.addf %23, %24 : vector<16x32xf32>
    %26 = arith.mulf %20, %25 : vector<16x32xf32>
    %27 = arith.addf %22, %26 : vector<16x32xf32>
    %28 = math.tanh %27 : vector<16x32xf32>
    %cst_13 = arith.constant 1.000000e+00 : f32
    %29 = vector.broadcast %cst_13 : f32 to vector<16x32xf32>
    %30 = arith.subf %29, %21 : vector<16x32xf32>
    %31 = arith.mulf %30, %28 : vector<16x32xf32>
    %32 = arith.mulf %21, %9 : vector<16x32xf32>
    %33 = arith.addf %31, %32 : vector<16x32xf32>
    %cst_14 = arith.constant dense<0.000000e+00> : vector<16x96xf32>
    %34 = tpu.matmul %33, %7, %cst_14 {dimension_numbers = #tpu.dot_dimension_numbers<[1], [0], [0], [1], [0, 0, 1, 1], [], []>} : vector<16x32xf32>, vector<32x96xf32>, vector<16x96xf32> -> vector<16x96xf32>
    %35 = vector.extract_strided_slice %6 {offsets = [16, 0], sizes = [16, 96], strides = [1, 1]} : vector<128x96xf32> to vector<16x96xf32>
    %36 = vector.extract_strided_slice %35 {offsets = [0, 0], sizes = [16, 64], strides = [1, 1]} : vector<16x96xf32> to vector<16x64xf32>
    %37 = vector.extract_strided_slice %34 {offsets = [0, 0], sizes = [16, 64], strides = [1, 1]} : vector<16x96xf32> to vector<16x64xf32>
    %38 = arith.addf %36, %37 : vector<16x64xf32>
    %39 = arith.negf %38 : vector<16x64xf32>
    %40 = math.exp %39 : vector<16x64xf32>
    %cst_15 = arith.constant 1.000000e+00 : f32
    %41 = vector.broadcast %cst_15 : f32 to vector<16x64xf32>
    %42 = arith.addf %41, %40 : vector<16x64xf32>
    %43 = arith.divf %41, %42 : vector<16x64xf32>
    %44 = vector.extract_strided_slice %43 {offsets = [0, 0], sizes = [16, 32], strides = [1, 1]} : vector<16x64xf32> to vector<16x32xf32>
    %45 = vector.extract_strided_slice %43 {offsets = [0, 32], sizes = [16, 32], strides = [1, 1]} : vector<16x64xf32> to vector<16x32xf32>
    %46 = vector.extract_strided_slice %35 {offsets = [0, 64], sizes = [16, 32], strides = [1, 1]} : vector<16x96xf32> to vector<16x32xf32>
    %47 = vector.extract_strided_slice %34 {offsets = [0, 64], sizes = [16, 32], strides = [1, 1]} : vector<16x96xf32> to vector<16x32xf32>
    %48 = vector.broadcast %8 : vector<1x32xf32> to vector<16x32xf32>
    %49 = arith.addf %47, %48 : vector<16x32xf32>
    %50 = arith.mulf %44, %49 : vector<16x32xf32>
    %51 = arith.addf %46, %50 : vector<16x32xf32>
    %52 = math.tanh %51 : vector<16x32xf32>
    %cst_16 = arith.constant 1.000000e+00 : f32
    %53 = vector.broadcast %cst_16 : f32 to vector<16x32xf32>
    %54 = arith.subf %53, %45 : vector<16x32xf32>
    %55 = arith.mulf %54, %52 : vector<16x32xf32>
    %56 = arith.mulf %45, %33 : vector<16x32xf32>
    %57 = arith.addf %55, %56 : vector<16x32xf32>
    %cst_17 = arith.constant dense<0.000000e+00> : vector<16x96xf32>
    %58 = tpu.matmul %57, %7, %cst_17 {dimension_numbers = #tpu.dot_dimension_numbers<[1], [0], [0], [1], [0, 0, 1, 1], [], []>} : vector<16x32xf32>, vector<32x96xf32>, vector<16x96xf32> -> vector<16x96xf32>
    %59 = vector.extract_strided_slice %6 {offsets = [32, 0], sizes = [16, 96], strides = [1, 1]} : vector<128x96xf32> to vector<16x96xf32>
    %60 = vector.extract_strided_slice %59 {offsets = [0, 0], sizes = [16, 64], strides = [1, 1]} : vector<16x96xf32> to vector<16x64xf32>
    %61 = vector.extract_strided_slice %58 {offsets = [0, 0], sizes = [16, 64], strides = [1, 1]} : vector<16x96xf32> to vector<16x64xf32>
    %62 = arith.addf %60, %61 : vector<16x64xf32>
    %63 = arith.negf %62 : vector<16x64xf32>
    %64 = math.exp %63 : vector<16x64xf32>
    %cst_18 = arith.constant 1.000000e+00 : f32
    %65 = vector.broadcast %cst_18 : f32 to vector<16x64xf32>
    %66 = arith.addf %65, %64 : vector<16x64xf32>
    %67 = arith.divf %65, %66 : vector<16x64xf32>
    %68 = vector.extract_strided_slice %67 {offsets = [0, 0], sizes = [16, 32], strides = [1, 1]} : vector<16x64xf32> to vector<16x32xf32>
    %69 = vector.extract_strided_slice %67 {offsets = [0, 32], sizes = [16, 32], strides = [1, 1]} : vector<16x64xf32> to vector<16x32xf32>
    %70 = vector.extract_strided_slice %59 {offsets = [0, 64], sizes = [16, 32], strides = [1, 1]} : vector<16x96xf32> to vector<16x32xf32>
    %71 = vector.extract_strided_slice %58 {offsets = [0, 64], sizes = [16, 32], strides = [1, 1]} : vector<16x96xf32> to vector<16x32xf32>
    %72 = vector.broadcast %8 : vector<1x32xf32> to vector<16x32xf32>
    %73 = arith.addf %71, %72 : vector<16x32xf32>
    %74 = arith.mulf %68, %73 : vector<16x32xf32>
    %75 = arith.addf %70, %74 : vector<16x32xf32>
    %76 = math.tanh %75 : vector<16x32xf32>
    %cst_19 = arith.constant 1.000000e+00 : f32
    %77 = vector.broadcast %cst_19 : f32 to vector<16x32xf32>
    %78 = arith.subf %77, %69 : vector<16x32xf32>
    %79 = arith.mulf %78, %76 : vector<16x32xf32>
    %80 = arith.mulf %69, %57 : vector<16x32xf32>
    %81 = arith.addf %79, %80 : vector<16x32xf32>
    %cst_20 = arith.constant dense<0.000000e+00> : vector<16x96xf32>
    %82 = tpu.matmul %81, %7, %cst_20 {dimension_numbers = #tpu.dot_dimension_numbers<[1], [0], [0], [1], [0, 0, 1, 1], [], []>} : vector<16x32xf32>, vector<32x96xf32>, vector<16x96xf32> -> vector<16x96xf32>
    %83 = vector.extract_strided_slice %6 {offsets = [48, 0], sizes = [16, 96], strides = [1, 1]} : vector<128x96xf32> to vector<16x96xf32>
    %84 = vector.extract_strided_slice %83 {offsets = [0, 0], sizes = [16, 64], strides = [1, 1]} : vector<16x96xf32> to vector<16x64xf32>
    %85 = vector.extract_strided_slice %82 {offsets = [0, 0], sizes = [16, 64], strides = [1, 1]} : vector<16x96xf32> to vector<16x64xf32>
    %86 = arith.addf %84, %85 : vector<16x64xf32>
    %87 = arith.negf %86 : vector<16x64xf32>
    %88 = math.exp %87 : vector<16x64xf32>
    %cst_21 = arith.constant 1.000000e+00 : f32
    %89 = vector.broadcast %cst_21 : f32 to vector<16x64xf32>
    %90 = arith.addf %89, %88 : vector<16x64xf32>
    %91 = arith.divf %89, %90 : vector<16x64xf32>
    %92 = vector.extract_strided_slice %91 {offsets = [0, 0], sizes = [16, 32], strides = [1, 1]} : vector<16x64xf32> to vector<16x32xf32>
    %93 = vector.extract_strided_slice %91 {offsets = [0, 32], sizes = [16, 32], strides = [1, 1]} : vector<16x64xf32> to vector<16x32xf32>
    %94 = vector.extract_strided_slice %83 {offsets = [0, 64], sizes = [16, 32], strides = [1, 1]} : vector<16x96xf32> to vector<16x32xf32>
    %95 = vector.extract_strided_slice %82 {offsets = [0, 64], sizes = [16, 32], strides = [1, 1]} : vector<16x96xf32> to vector<16x32xf32>
    %96 = vector.broadcast %8 : vector<1x32xf32> to vector<16x32xf32>
    %97 = arith.addf %95, %96 : vector<16x32xf32>
    %98 = arith.mulf %92, %97 : vector<16x32xf32>
    %99 = arith.addf %94, %98 : vector<16x32xf32>
    %100 = math.tanh %99 : vector<16x32xf32>
    %cst_22 = arith.constant 1.000000e+00 : f32
    %101 = vector.broadcast %cst_22 : f32 to vector<16x32xf32>
    %102 = arith.subf %101, %93 : vector<16x32xf32>
    %103 = arith.mulf %102, %100 : vector<16x32xf32>
    %104 = arith.mulf %93, %81 : vector<16x32xf32>
    %105 = arith.addf %103, %104 : vector<16x32xf32>
    %cst_23 = arith.constant dense<0.000000e+00> : vector<16x96xf32>
    %106 = tpu.matmul %105, %7, %cst_23 {dimension_numbers = #tpu.dot_dimension_numbers<[1], [0], [0], [1], [0, 0, 1, 1], [], []>} : vector<16x32xf32>, vector<32x96xf32>, vector<16x96xf32> -> vector<16x96xf32>
    %107 = vector.extract_strided_slice %6 {offsets = [64, 0], sizes = [16, 96], strides = [1, 1]} : vector<128x96xf32> to vector<16x96xf32>
    %108 = vector.extract_strided_slice %107 {offsets = [0, 0], sizes = [16, 64], strides = [1, 1]} : vector<16x96xf32> to vector<16x64xf32>
    %109 = vector.extract_strided_slice %106 {offsets = [0, 0], sizes = [16, 64], strides = [1, 1]} : vector<16x96xf32> to vector<16x64xf32>
    %110 = arith.addf %108, %109 : vector<16x64xf32>
    %111 = arith.negf %110 : vector<16x64xf32>
    %112 = math.exp %111 : vector<16x64xf32>
    %cst_24 = arith.constant 1.000000e+00 : f32
    %113 = vector.broadcast %cst_24 : f32 to vector<16x64xf32>
    %114 = arith.addf %113, %112 : vector<16x64xf32>
    %115 = arith.divf %113, %114 : vector<16x64xf32>
    %116 = vector.extract_strided_slice %115 {offsets = [0, 0], sizes = [16, 32], strides = [1, 1]} : vector<16x64xf32> to vector<16x32xf32>
    %117 = vector.extract_strided_slice %115 {offsets = [0, 32], sizes = [16, 32], strides = [1, 1]} : vector<16x64xf32> to vector<16x32xf32>
    %118 = vector.extract_strided_slice %107 {offsets = [0, 64], sizes = [16, 32], strides = [1, 1]} : vector<16x96xf32> to vector<16x32xf32>
    %119 = vector.extract_strided_slice %106 {offsets = [0, 64], sizes = [16, 32], strides = [1, 1]} : vector<16x96xf32> to vector<16x32xf32>
    %120 = vector.broadcast %8 : vector<1x32xf32> to vector<16x32xf32>
    %121 = arith.addf %119, %120 : vector<16x32xf32>
    %122 = arith.mulf %116, %121 : vector<16x32xf32>
    %123 = arith.addf %118, %122 : vector<16x32xf32>
    %124 = math.tanh %123 : vector<16x32xf32>
    %cst_25 = arith.constant 1.000000e+00 : f32
    %125 = vector.broadcast %cst_25 : f32 to vector<16x32xf32>
    %126 = arith.subf %125, %117 : vector<16x32xf32>
    %127 = arith.mulf %126, %124 : vector<16x32xf32>
    %128 = arith.mulf %117, %105 : vector<16x32xf32>
    %129 = arith.addf %127, %128 : vector<16x32xf32>
    %cst_26 = arith.constant dense<0.000000e+00> : vector<16x96xf32>
    %130 = tpu.matmul %129, %7, %cst_26 {dimension_numbers = #tpu.dot_dimension_numbers<[1], [0], [0], [1], [0, 0, 1, 1], [], []>} : vector<16x32xf32>, vector<32x96xf32>, vector<16x96xf32> -> vector<16x96xf32>
    %131 = vector.extract_strided_slice %6 {offsets = [80, 0], sizes = [16, 96], strides = [1, 1]} : vector<128x96xf32> to vector<16x96xf32>
    %132 = vector.extract_strided_slice %131 {offsets = [0, 0], sizes = [16, 64], strides = [1, 1]} : vector<16x96xf32> to vector<16x64xf32>
    %133 = vector.extract_strided_slice %130 {offsets = [0, 0], sizes = [16, 64], strides = [1, 1]} : vector<16x96xf32> to vector<16x64xf32>
    %134 = arith.addf %132, %133 : vector<16x64xf32>
    %135 = arith.negf %134 : vector<16x64xf32>
    %136 = math.exp %135 : vector<16x64xf32>
    %cst_27 = arith.constant 1.000000e+00 : f32
    %137 = vector.broadcast %cst_27 : f32 to vector<16x64xf32>
    %138 = arith.addf %137, %136 : vector<16x64xf32>
    %139 = arith.divf %137, %138 : vector<16x64xf32>
    %140 = vector.extract_strided_slice %139 {offsets = [0, 0], sizes = [16, 32], strides = [1, 1]} : vector<16x64xf32> to vector<16x32xf32>
    %141 = vector.extract_strided_slice %139 {offsets = [0, 32], sizes = [16, 32], strides = [1, 1]} : vector<16x64xf32> to vector<16x32xf32>
    %142 = vector.extract_strided_slice %131 {offsets = [0, 64], sizes = [16, 32], strides = [1, 1]} : vector<16x96xf32> to vector<16x32xf32>
    %143 = vector.extract_strided_slice %130 {offsets = [0, 64], sizes = [16, 32], strides = [1, 1]} : vector<16x96xf32> to vector<16x32xf32>
    %144 = vector.broadcast %8 : vector<1x32xf32> to vector<16x32xf32>
    %145 = arith.addf %143, %144 : vector<16x32xf32>
    %146 = arith.mulf %140, %145 : vector<16x32xf32>
    %147 = arith.addf %142, %146 : vector<16x32xf32>
    %148 = math.tanh %147 : vector<16x32xf32>
    %cst_28 = arith.constant 1.000000e+00 : f32
    %149 = vector.broadcast %cst_28 : f32 to vector<16x32xf32>
    %150 = arith.subf %149, %141 : vector<16x32xf32>
    %151 = arith.mulf %150, %148 : vector<16x32xf32>
    %152 = arith.mulf %141, %129 : vector<16x32xf32>
    %153 = arith.addf %151, %152 : vector<16x32xf32>
    %cst_29 = arith.constant dense<0.000000e+00> : vector<16x96xf32>
    %154 = tpu.matmul %153, %7, %cst_29 {dimension_numbers = #tpu.dot_dimension_numbers<[1], [0], [0], [1], [0, 0, 1, 1], [], []>} : vector<16x32xf32>, vector<32x96xf32>, vector<16x96xf32> -> vector<16x96xf32>
    %155 = vector.extract_strided_slice %6 {offsets = [96, 0], sizes = [16, 96], strides = [1, 1]} : vector<128x96xf32> to vector<16x96xf32>
    %156 = vector.extract_strided_slice %155 {offsets = [0, 0], sizes = [16, 64], strides = [1, 1]} : vector<16x96xf32> to vector<16x64xf32>
    %157 = vector.extract_strided_slice %154 {offsets = [0, 0], sizes = [16, 64], strides = [1, 1]} : vector<16x96xf32> to vector<16x64xf32>
    %158 = arith.addf %156, %157 : vector<16x64xf32>
    %159 = arith.negf %158 : vector<16x64xf32>
    %160 = math.exp %159 : vector<16x64xf32>
    %cst_30 = arith.constant 1.000000e+00 : f32
    %161 = vector.broadcast %cst_30 : f32 to vector<16x64xf32>
    %162 = arith.addf %161, %160 : vector<16x64xf32>
    %163 = arith.divf %161, %162 : vector<16x64xf32>
    %164 = vector.extract_strided_slice %163 {offsets = [0, 0], sizes = [16, 32], strides = [1, 1]} : vector<16x64xf32> to vector<16x32xf32>
    %165 = vector.extract_strided_slice %163 {offsets = [0, 32], sizes = [16, 32], strides = [1, 1]} : vector<16x64xf32> to vector<16x32xf32>
    %166 = vector.extract_strided_slice %155 {offsets = [0, 64], sizes = [16, 32], strides = [1, 1]} : vector<16x96xf32> to vector<16x32xf32>
    %167 = vector.extract_strided_slice %154 {offsets = [0, 64], sizes = [16, 32], strides = [1, 1]} : vector<16x96xf32> to vector<16x32xf32>
    %168 = vector.broadcast %8 : vector<1x32xf32> to vector<16x32xf32>
    %169 = arith.addf %167, %168 : vector<16x32xf32>
    %170 = arith.mulf %164, %169 : vector<16x32xf32>
    %171 = arith.addf %166, %170 : vector<16x32xf32>
    %172 = math.tanh %171 : vector<16x32xf32>
    %cst_31 = arith.constant 1.000000e+00 : f32
    %173 = vector.broadcast %cst_31 : f32 to vector<16x32xf32>
    %174 = arith.subf %173, %165 : vector<16x32xf32>
    %175 = arith.mulf %174, %172 : vector<16x32xf32>
    %176 = arith.mulf %165, %153 : vector<16x32xf32>
    %177 = arith.addf %175, %176 : vector<16x32xf32>
    %cst_32 = arith.constant dense<0.000000e+00> : vector<16x96xf32>
    %178 = tpu.matmul %177, %7, %cst_32 {dimension_numbers = #tpu.dot_dimension_numbers<[1], [0], [0], [1], [0, 0, 1, 1], [], []>} : vector<16x32xf32>, vector<32x96xf32>, vector<16x96xf32> -> vector<16x96xf32>
    %179 = vector.extract_strided_slice %6 {offsets = [112, 0], sizes = [16, 96], strides = [1, 1]} : vector<128x96xf32> to vector<16x96xf32>
    %180 = vector.extract_strided_slice %179 {offsets = [0, 0], sizes = [16, 64], strides = [1, 1]} : vector<16x96xf32> to vector<16x64xf32>
    %181 = vector.extract_strided_slice %178 {offsets = [0, 0], sizes = [16, 64], strides = [1, 1]} : vector<16x96xf32> to vector<16x64xf32>
    %182 = arith.addf %180, %181 : vector<16x64xf32>
    %183 = arith.negf %182 : vector<16x64xf32>
    %184 = math.exp %183 : vector<16x64xf32>
    %cst_33 = arith.constant 1.000000e+00 : f32
    %185 = vector.broadcast %cst_33 : f32 to vector<16x64xf32>
    %186 = arith.addf %185, %184 : vector<16x64xf32>
    %187 = arith.divf %185, %186 : vector<16x64xf32>
    %188 = vector.extract_strided_slice %187 {offsets = [0, 0], sizes = [16, 32], strides = [1, 1]} : vector<16x64xf32> to vector<16x32xf32>
    %189 = vector.extract_strided_slice %187 {offsets = [0, 32], sizes = [16, 32], strides = [1, 1]} : vector<16x64xf32> to vector<16x32xf32>
    %190 = vector.extract_strided_slice %179 {offsets = [0, 64], sizes = [16, 32], strides = [1, 1]} : vector<16x96xf32> to vector<16x32xf32>
    %191 = vector.extract_strided_slice %178 {offsets = [0, 64], sizes = [16, 32], strides = [1, 1]} : vector<16x96xf32> to vector<16x32xf32>
    %192 = vector.broadcast %8 : vector<1x32xf32> to vector<16x32xf32>
    %193 = arith.addf %191, %192 : vector<16x32xf32>
    %194 = arith.mulf %188, %193 : vector<16x32xf32>
    %195 = arith.addf %190, %194 : vector<16x32xf32>
    %196 = math.tanh %195 : vector<16x32xf32>
    %cst_34 = arith.constant 1.000000e+00 : f32
    %197 = vector.broadcast %cst_34 : f32 to vector<16x32xf32>
    %198 = arith.subf %197, %189 : vector<16x32xf32>
    %199 = arith.mulf %198, %196 : vector<16x32xf32>
    %200 = arith.mulf %189, %177 : vector<16x32xf32>
    %201 = arith.addf %199, %200 : vector<16x32xf32>
    %202 = vector.shape_cast %33 : vector<16x32xf32> to vector<16x1x32xf32>
    %203 = vector.shape_cast %57 : vector<16x32xf32> to vector<16x1x32xf32>
    %204 = vector.shape_cast %81 : vector<16x32xf32> to vector<16x1x32xf32>
    %205 = vector.shape_cast %105 : vector<16x32xf32> to vector<16x1x32xf32>
    %206 = vector.shape_cast %129 : vector<16x32xf32> to vector<16x1x32xf32>
    %207 = vector.shape_cast %153 : vector<16x32xf32> to vector<16x1x32xf32>
    %208 = vector.shape_cast %177 : vector<16x32xf32> to vector<16x1x32xf32>
    %209 = vector.shape_cast %201 : vector<16x32xf32> to vector<16x1x32xf32>
    %210 = tpu.concatenate %202, %203, %204, %205, %206, %207, %208, %209 in 1 : vector<16x1x32xf32>, vector<16x1x32xf32>, vector<16x1x32xf32>, vector<16x1x32xf32>, vector<16x1x32xf32>, vector<16x1x32xf32>, vector<16x1x32xf32>, vector<16x1x32xf32> -> vector<16x8x32xf32>
    %c0_35 = arith.constant 0 : index
    %c0_36 = arith.constant 0 : index
    %c0_37 = arith.constant 0 : index
    %211 = vector.load %arg6[%c0_35, %c0_36, %c0_37] : memref<16x32x24xf32, #tpu.memory_space<vmem>>, vector<16x32x24xf32>
    "tpu.trace_start"() <{level = 10 : i32, message = "bts,bsk->btk"}> : () -> ()
    %cst_38 = arith.constant dense<0.000000e+00> : vector<16x8x24xf32>
    %212 = tpu.matmul %210, %211, %cst_38 {dimension_numbers = #tpu.dot_dimension_numbers<[2], [1], [1], [2], [0, 0, 0, 1, 1, 2], [0], [0]>} : vector<16x8x32xf32>, vector<16x32x24xf32>, vector<16x8x24xf32> -> vector<16x8x24xf32>
    "tpu.trace_stop"() : () -> ()
    %213 = vector.extract_strided_slice %212 {offsets = [0, 0, 0], sizes = [16, 8, 8], strides = [1, 1, 1]} : vector<16x8x24xf32> to vector<16x8x8xf32>
    %214 = vector.extract_strided_slice %212 {offsets = [0, 0, 8], sizes = [16, 8, 8], strides = [1, 1, 1]} : vector<16x8x24xf32> to vector<16x8x8xf32>
    %215 = vector.extract_strided_slice %212 {offsets = [0, 0, 16], sizes = [16, 8, 8], strides = [1, 1, 1]} : vector<16x8x24xf32> to vector<16x8x8xf32>
    "tpu.trace_start"() <{level = 10 : i32, message = "bik,bjk->bij"}> : () -> ()
    %cst_39 = arith.constant dense<0.000000e+00> : vector<16x8x8xf32>
    %216 = tpu.matmul %214, %213, %cst_39 {dimension_numbers = #tpu.dot_dimension_numbers<[2], [2], [1], [1], [0, 0, 0, 1, 1, 1], [0], [0]>} : vector<16x8x8xf32>, vector<16x8x8xf32>, vector<16x8x8xf32> -> vector<16x8x8xf32>
    "tpu.trace_stop"() : () -> ()
    %cst_40 = arith.constant dense<0xFF800000> : vector<16x8xf32>
    %217 = vector.multi_reduction <maximumf>, %216, %cst_40 [1] : vector<16x8x8xf32> to vector<16x8xf32>
    %218 = vector.shape_cast %217 : vector<16x8xf32> to vector<16x1x8xf32>
    %219 = vector.broadcast %218 : vector<16x1x8xf32> to vector<16x8x8xf32>
    %220 = arith.subf %216, %219 : vector<16x8x8xf32>
    %221 = math.exp %220 : vector<16x8x8xf32>
    %cst_41 = arith.constant dense<0.000000e+00> : vector<16x8xf32>
    %222 = vector.multi_reduction <add>, %221, %cst_41 [1] : vector<16x8x8xf32> to vector<16x8xf32>
    %223 = vector.shape_cast %222 : vector<16x8xf32> to vector<16x1x8xf32>
    %224 = tpu.reciprocal %223 {approx = true} : vector<16x1x8xf32> -> vector<16x1x8xf32>
    %225 = vector.broadcast %224 : vector<16x1x8xf32> to vector<16x8x8xf32>
    %226 = arith.mulf %221, %225 : vector<16x8x8xf32>
    "tpu.trace_start"() <{level = 10 : i32, message = "bij,bjk->bik"}> : () -> ()
    %cst_42 = arith.constant dense<0.000000e+00> : vector<16x8x8xf32>
    %227 = tpu.matmul %226, %215, %cst_42 {dimension_numbers = #tpu.dot_dimension_numbers<[2], [1], [1], [2], [0, 0, 0, 1, 1, 2], [0], [0]>} : vector<16x8x8xf32>, vector<16x8x8xf32>, vector<16x8x8xf32> -> vector<16x8x8xf32>
    "tpu.trace_stop"() : () -> ()
    %cst_43 = arith.constant 0.000000e+00 : f32
    %228 = vector.broadcast %cst_43 : f32 to vector<16x8x8xf32>
    %229 = arith.maximumf %227, %228 : vector<16x8x8xf32>
    %230 = vector.extract_strided_slice %229 {offsets = [0, 0, 0], sizes = [1, 8, 8], strides = [1, 1, 1]} : vector<16x8x8xf32> to vector<1x8x8xf32>
    %231 = vector.shape_cast %230 : vector<1x8x8xf32> to vector<8x8xf32>
    %232 = tpu.transpose %231, [1, 0] : vector<8x8xf32> -> vector<8x8xf32>
    %233 = arith.addf %231, %232 : vector<8x8xf32>
    %cst_44 = arith.constant 5.000000e-01 : f32
    %234 = vector.broadcast %cst_44 : f32 to vector<8x8xf32>
    %235 = arith.mulf %234, %233 : vector<8x8xf32>
    %c0_45 = arith.constant 0 : index
    %c0_46 = arith.constant 0 : index
    %c0_47 = arith.constant 0 : index
    %236 = vector.load %arg7[%c0_45, %c0_46, %c0_47] : memref<1x8x128xf32, #tpu.memory_space<vmem>>, vector<1x8x8xf32>
    %237 = vector.shape_cast %236 : vector<1x8x8xf32> to vector<8x8xf32>
    %238 = vector.shape_cast %235 : vector<8x8xf32> to vector<1x8x8xf32>
    tpu.vector_store %arg7[%c0_45, %c0_46, %c0_47], %238 {strides = array<i32>} : memref<1x8x128xf32, #tpu.memory_space<vmem>>, vector<1x8x8xf32>,
    %239 = vector.extract_strided_slice %229 {offsets = [1, 0, 0], sizes = [1, 8, 8], strides = [1, 1, 1]} : vector<16x8x8xf32> to vector<1x8x8xf32>
    %240 = vector.shape_cast %239 : vector<1x8x8xf32> to vector<8x8xf32>
    %241 = tpu.transpose %240, [1, 0] : vector<8x8xf32> -> vector<8x8xf32>
    %242 = arith.addf %240, %241 : vector<8x8xf32>
    %cst_48 = arith.constant 5.000000e-01 : f32
    %243 = vector.broadcast %cst_48 : f32 to vector<8x8xf32>
    %244 = arith.mulf %243, %242 : vector<8x8xf32>
    %c0_49 = arith.constant 0 : index
    %c0_50 = arith.constant 0 : index
    %c8 = arith.constant 8 : index
    %245 = vector.load %arg7[%c0_49, %c0_50, %c8] : memref<1x8x128xf32, #tpu.memory_space<vmem>>, vector<1x8x8xf32>
    %246 = vector.shape_cast %245 : vector<1x8x8xf32> to vector<8x8xf32>
    %247 = vector.shape_cast %244 : vector<8x8xf32> to vector<1x8x8xf32>
    tpu.vector_store %arg7[%c0_49, %c0_50, %c8], %247 {strides = array<i32>} : memref<1x8x128xf32, #tpu.memory_space<vmem>>, vector<1x8x8xf32>,
    %248 = vector.extract_strided_slice %229 {offsets = [2, 0, 0], sizes = [1, 8, 8], strides = [1, 1, 1]} : vector<16x8x8xf32> to vector<1x8x8xf32>
    %249 = vector.shape_cast %248 : vector<1x8x8xf32> to vector<8x8xf32>
    %250 = tpu.transpose %249, [1, 0] : vector<8x8xf32> -> vector<8x8xf32>
    %251 = arith.addf %249, %250 : vector<8x8xf32>
    %cst_51 = arith.constant 5.000000e-01 : f32
    %252 = vector.broadcast %cst_51 : f32 to vector<8x8xf32>
    %253 = arith.mulf %252, %251 : vector<8x8xf32>
    %c0_52 = arith.constant 0 : index
    %c0_53 = arith.constant 0 : index
    %c16 = arith.constant 16 : index
    %254 = vector.load %arg7[%c0_52, %c0_53, %c16] : memref<1x8x128xf32, #tpu.memory_space<vmem>>, vector<1x8x8xf32>
    %255 = vector.shape_cast %254 : vector<1x8x8xf32> to vector<8x8xf32>
    %256 = vector.shape_cast %253 : vector<8x8xf32> to vector<1x8x8xf32>
    tpu.vector_store %arg7[%c0_52, %c0_53, %c16], %256 {strides = array<i32>} : memref<1x8x128xf32, #tpu.memory_space<vmem>>, vector<1x8x8xf32>,
    %257 = vector.extract_strided_slice %229 {offsets = [3, 0, 0], sizes = [1, 8, 8], strides = [1, 1, 1]} : vector<16x8x8xf32> to vector<1x8x8xf32>
    %258 = vector.shape_cast %257 : vector<1x8x8xf32> to vector<8x8xf32>
    %259 = tpu.transpose %258, [1, 0] : vector<8x8xf32> -> vector<8x8xf32>
    %260 = arith.addf %258, %259 : vector<8x8xf32>
    %cst_54 = arith.constant 5.000000e-01 : f32
    %261 = vector.broadcast %cst_54 : f32 to vector<8x8xf32>
    %262 = arith.mulf %261, %260 : vector<8x8xf32>
    %c0_55 = arith.constant 0 : index
    %c0_56 = arith.constant 0 : index
    %c24 = arith.constant 24 : index
    %263 = vector.load %arg7[%c0_55, %c0_56, %c24] : memref<1x8x128xf32, #tpu.memory_space<vmem>>, vector<1x8x8xf32>
    %264 = vector.shape_cast %263 : vector<1x8x8xf32> to vector<8x8xf32>
    %265 = vector.shape_cast %262 : vector<8x8xf32> to vector<1x8x8xf32>
    tpu.vector_store %arg7[%c0_55, %c0_56, %c24], %265 {strides = array<i32>} : memref<1x8x128xf32, #tpu.memory_space<vmem>>, vector<1x8x8xf32>,
    %266 = vector.extract_strided_slice %229 {offsets = [4, 0, 0], sizes = [1, 8, 8], strides = [1, 1, 1]} : vector<16x8x8xf32> to vector<1x8x8xf32>
    %267 = vector.shape_cast %266 : vector<1x8x8xf32> to vector<8x8xf32>
    %268 = tpu.transpose %267, [1, 0] : vector<8x8xf32> -> vector<8x8xf32>
    %269 = arith.addf %267, %268 : vector<8x8xf32>
    %cst_57 = arith.constant 5.000000e-01 : f32
    %270 = vector.broadcast %cst_57 : f32 to vector<8x8xf32>
    %271 = arith.mulf %270, %269 : vector<8x8xf32>
    %c0_58 = arith.constant 0 : index
    %c0_59 = arith.constant 0 : index
    %c32 = arith.constant 32 : index
    %272 = vector.load %arg7[%c0_58, %c0_59, %c32] : memref<1x8x128xf32, #tpu.memory_space<vmem>>, vector<1x8x8xf32>
    %273 = vector.shape_cast %272 : vector<1x8x8xf32> to vector<8x8xf32>
    %274 = vector.shape_cast %271 : vector<8x8xf32> to vector<1x8x8xf32>
    tpu.vector_store %arg7[%c0_58, %c0_59, %c32], %274 {strides = array<i32>} : memref<1x8x128xf32, #tpu.memory_space<vmem>>, vector<1x8x8xf32>,
    %275 = vector.extract_strided_slice %229 {offsets = [5, 0, 0], sizes = [1, 8, 8], strides = [1, 1, 1]} : vector<16x8x8xf32> to vector<1x8x8xf32>
    %276 = vector.shape_cast %275 : vector<1x8x8xf32> to vector<8x8xf32>
    %277 = tpu.transpose %276, [1, 0] : vector<8x8xf32> -> vector<8x8xf32>
    %278 = arith.addf %276, %277 : vector<8x8xf32>
    %cst_60 = arith.constant 5.000000e-01 : f32
    %279 = vector.broadcast %cst_60 : f32 to vector<8x8xf32>
    %280 = arith.mulf %279, %278 : vector<8x8xf32>
    %c0_61 = arith.constant 0 : index
    %c0_62 = arith.constant 0 : index
    %c40 = arith.constant 40 : index
    %281 = vector.load %arg7[%c0_61, %c0_62, %c40] : memref<1x8x128xf32, #tpu.memory_space<vmem>>, vector<1x8x8xf32>
    %282 = vector.shape_cast %281 : vector<1x8x8xf32> to vector<8x8xf32>
    %283 = vector.shape_cast %280 : vector<8x8xf32> to vector<1x8x8xf32>
    tpu.vector_store %arg7[%c0_61, %c0_62, %c40], %283 {strides = array<i32>} : memref<1x8x128xf32, #tpu.memory_space<vmem>>, vector<1x8x8xf32>,
    %284 = vector.extract_strided_slice %229 {offsets = [6, 0, 0], sizes = [1, 8, 8], strides = [1, 1, 1]} : vector<16x8x8xf32> to vector<1x8x8xf32>
    %285 = vector.shape_cast %284 : vector<1x8x8xf32> to vector<8x8xf32>
    %286 = tpu.transpose %285, [1, 0] : vector<8x8xf32> -> vector<8x8xf32>
    %287 = arith.addf %285, %286 : vector<8x8xf32>
    %cst_63 = arith.constant 5.000000e-01 : f32
    %288 = vector.broadcast %cst_63 : f32 to vector<8x8xf32>
    %289 = arith.mulf %288, %287 : vector<8x8xf32>
    %c0_64 = arith.constant 0 : index
    %c0_65 = arith.constant 0 : index
    %c48 = arith.constant 48 : index
    %290 = vector.load %arg7[%c0_64, %c0_65, %c48] : memref<1x8x128xf32, #tpu.memory_space<vmem>>, vector<1x8x8xf32>
    %291 = vector.shape_cast %290 : vector<1x8x8xf32> to vector<8x8xf32>
    %292 = vector.shape_cast %289 : vector<8x8xf32> to vector<1x8x8xf32>
    tpu.vector_store %arg7[%c0_64, %c0_65, %c48], %292 {strides = array<i32>} : memref<1x8x128xf32, #tpu.memory_space<vmem>>, vector<1x8x8xf32>,
    %293 = vector.extract_strided_slice %229 {offsets = [7, 0, 0], sizes = [1, 8, 8], strides = [1, 1, 1]} : vector<16x8x8xf32> to vector<1x8x8xf32>
    %294 = vector.shape_cast %293 : vector<1x8x8xf32> to vector<8x8xf32>
    %295 = tpu.transpose %294, [1, 0] : vector<8x8xf32> -> vector<8x8xf32>
    %296 = arith.addf %294, %295 : vector<8x8xf32>
    %cst_66 = arith.constant 5.000000e-01 : f32
    %297 = vector.broadcast %cst_66 : f32 to vector<8x8xf32>
    %298 = arith.mulf %297, %296 : vector<8x8xf32>
    %c0_67 = arith.constant 0 : index
    %c0_68 = arith.constant 0 : index
    %c56 = arith.constant 56 : index
    %299 = vector.load %arg7[%c0_67, %c0_68, %c56] : memref<1x8x128xf32, #tpu.memory_space<vmem>>, vector<1x8x8xf32>
    %300 = vector.shape_cast %299 : vector<1x8x8xf32> to vector<8x8xf32>
    %301 = vector.shape_cast %298 : vector<8x8xf32> to vector<1x8x8xf32>
    tpu.vector_store %arg7[%c0_67, %c0_68, %c56], %301 {strides = array<i32>} : memref<1x8x128xf32, #tpu.memory_space<vmem>>, vector<1x8x8xf32>,
    %302 = vector.extract_strided_slice %229 {offsets = [8, 0, 0], sizes = [1, 8, 8], strides = [1, 1, 1]} : vector<16x8x8xf32> to vector<1x8x8xf32>
    %303 = vector.shape_cast %302 : vector<1x8x8xf32> to vector<8x8xf32>
    %304 = tpu.transpose %303, [1, 0] : vector<8x8xf32> -> vector<8x8xf32>
    %305 = arith.addf %303, %304 : vector<8x8xf32>
    %cst_69 = arith.constant 5.000000e-01 : f32
    %306 = vector.broadcast %cst_69 : f32 to vector<8x8xf32>
    %307 = arith.mulf %306, %305 : vector<8x8xf32>
    %c0_70 = arith.constant 0 : index
    %c0_71 = arith.constant 0 : index
    %c64 = arith.constant 64 : index
    %308 = vector.load %arg7[%c0_70, %c0_71, %c64] : memref<1x8x128xf32, #tpu.memory_space<vmem>>, vector<1x8x8xf32>
    %309 = vector.shape_cast %308 : vector<1x8x8xf32> to vector<8x8xf32>
    %310 = vector.shape_cast %307 : vector<8x8xf32> to vector<1x8x8xf32>
    tpu.vector_store %arg7[%c0_70, %c0_71, %c64], %310 {strides = array<i32>} : memref<1x8x128xf32, #tpu.memory_space<vmem>>, vector<1x8x8xf32>,
    %311 = vector.extract_strided_slice %229 {offsets = [9, 0, 0], sizes = [1, 8, 8], strides = [1, 1, 1]} : vector<16x8x8xf32> to vector<1x8x8xf32>
    %312 = vector.shape_cast %311 : vector<1x8x8xf32> to vector<8x8xf32>
    %313 = tpu.transpose %312, [1, 0] : vector<8x8xf32> -> vector<8x8xf32>
    %314 = arith.addf %312, %313 : vector<8x8xf32>
    %cst_72 = arith.constant 5.000000e-01 : f32
    %315 = vector.broadcast %cst_72 : f32 to vector<8x8xf32>
    %316 = arith.mulf %315, %314 : vector<8x8xf32>
    %c0_73 = arith.constant 0 : index
    %c0_74 = arith.constant 0 : index
    %c72 = arith.constant 72 : index
    %317 = vector.load %arg7[%c0_73, %c0_74, %c72] : memref<1x8x128xf32, #tpu.memory_space<vmem>>, vector<1x8x8xf32>
    %318 = vector.shape_cast %317 : vector<1x8x8xf32> to vector<8x8xf32>
    %319 = vector.shape_cast %316 : vector<8x8xf32> to vector<1x8x8xf32>
    tpu.vector_store %arg7[%c0_73, %c0_74, %c72], %319 {strides = array<i32>} : memref<1x8x128xf32, #tpu.memory_space<vmem>>, vector<1x8x8xf32>,
    %320 = vector.extract_strided_slice %229 {offsets = [10, 0, 0], sizes = [1, 8, 8], strides = [1, 1, 1]} : vector<16x8x8xf32> to vector<1x8x8xf32>
    %321 = vector.shape_cast %320 : vector<1x8x8xf32> to vector<8x8xf32>
    %322 = tpu.transpose %321, [1, 0] : vector<8x8xf32> -> vector<8x8xf32>
    %323 = arith.addf %321, %322 : vector<8x8xf32>
    %cst_75 = arith.constant 5.000000e-01 : f32
    %324 = vector.broadcast %cst_75 : f32 to vector<8x8xf32>
    %325 = arith.mulf %324, %323 : vector<8x8xf32>
    %c0_76 = arith.constant 0 : index
    %c0_77 = arith.constant 0 : index
    %c80 = arith.constant 80 : index
    %326 = vector.load %arg7[%c0_76, %c0_77, %c80] : memref<1x8x128xf32, #tpu.memory_space<vmem>>, vector<1x8x8xf32>
    %327 = vector.shape_cast %326 : vector<1x8x8xf32> to vector<8x8xf32>
    %328 = vector.shape_cast %325 : vector<8x8xf32> to vector<1x8x8xf32>
    tpu.vector_store %arg7[%c0_76, %c0_77, %c80], %328 {strides = array<i32>} : memref<1x8x128xf32, #tpu.memory_space<vmem>>, vector<1x8x8xf32>,
    %329 = vector.extract_strided_slice %229 {offsets = [11, 0, 0], sizes = [1, 8, 8], strides = [1, 1, 1]} : vector<16x8x8xf32> to vector<1x8x8xf32>
    %330 = vector.shape_cast %329 : vector<1x8x8xf32> to vector<8x8xf32>
    %331 = tpu.transpose %330, [1, 0] : vector<8x8xf32> -> vector<8x8xf32>
    %332 = arith.addf %330, %331 : vector<8x8xf32>
    %cst_78 = arith.constant 5.000000e-01 : f32
    %333 = vector.broadcast %cst_78 : f32 to vector<8x8xf32>
    %334 = arith.mulf %333, %332 : vector<8x8xf32>
    %c0_79 = arith.constant 0 : index
    %c0_80 = arith.constant 0 : index
    %c88 = arith.constant 88 : index
    %335 = vector.load %arg7[%c0_79, %c0_80, %c88] : memref<1x8x128xf32, #tpu.memory_space<vmem>>, vector<1x8x8xf32>
    %336 = vector.shape_cast %335 : vector<1x8x8xf32> to vector<8x8xf32>
    %337 = vector.shape_cast %334 : vector<8x8xf32> to vector<1x8x8xf32>
    tpu.vector_store %arg7[%c0_79, %c0_80, %c88], %337 {strides = array<i32>} : memref<1x8x128xf32, #tpu.memory_space<vmem>>, vector<1x8x8xf32>,
    %338 = vector.extract_strided_slice %229 {offsets = [12, 0, 0], sizes = [1, 8, 8], strides = [1, 1, 1]} : vector<16x8x8xf32> to vector<1x8x8xf32>
    %339 = vector.shape_cast %338 : vector<1x8x8xf32> to vector<8x8xf32>
    %340 = tpu.transpose %339, [1, 0] : vector<8x8xf32> -> vector<8x8xf32>
    %341 = arith.addf %339, %340 : vector<8x8xf32>
    %cst_81 = arith.constant 5.000000e-01 : f32
    %342 = vector.broadcast %cst_81 : f32 to vector<8x8xf32>
    %343 = arith.mulf %342, %341 : vector<8x8xf32>
    %c0_82 = arith.constant 0 : index
    %c0_83 = arith.constant 0 : index
    %c96 = arith.constant 96 : index
    %344 = vector.load %arg7[%c0_82, %c0_83, %c96] : memref<1x8x128xf32, #tpu.memory_space<vmem>>, vector<1x8x8xf32>
    %345 = vector.shape_cast %344 : vector<1x8x8xf32> to vector<8x8xf32>
    %346 = vector.shape_cast %343 : vector<8x8xf32> to vector<1x8x8xf32>
    tpu.vector_store %arg7[%c0_82, %c0_83, %c96], %346 {strides = array<i32>} : memref<1x8x128xf32, #tpu.memory_space<vmem>>, vector<1x8x8xf32>,
    %347 = vector.extract_strided_slice %229 {offsets = [13, 0, 0], sizes = [1, 8, 8], strides = [1, 1, 1]} : vector<16x8x8xf32> to vector<1x8x8xf32>
    %348 = vector.shape_cast %347 : vector<1x8x8xf32> to vector<8x8xf32>
    %349 = tpu.transpose %348, [1, 0] : vector<8x8xf32> -> vector<8x8xf32>
    %350 = arith.addf %348, %349 : vector<8x8xf32>
    %cst_84 = arith.constant 5.000000e-01 : f32
    %351 = vector.broadcast %cst_84 : f32 to vector<8x8xf32>
    %352 = arith.mulf %351, %350 : vector<8x8xf32>
    %c0_85 = arith.constant 0 : index
    %c0_86 = arith.constant 0 : index
    %c104 = arith.constant 104 : index
    %353 = vector.load %arg7[%c0_85, %c0_86, %c104] : memref<1x8x128xf32, #tpu.memory_space<vmem>>, vector<1x8x8xf32>
    %354 = vector.shape_cast %353 : vector<1x8x8xf32> to vector<8x8xf32>
    %355 = vector.shape_cast %352 : vector<8x8xf32> to vector<1x8x8xf32>
    tpu.vector_store %arg7[%c0_85, %c0_86, %c104], %355 {strides = array<i32>} : memref<1x8x128xf32, #tpu.memory_space<vmem>>, vector<1x8x8xf32>,
    %356 = vector.extract_strided_slice %229 {offsets = [14, 0, 0], sizes = [1, 8, 8], strides = [1, 1, 1]} : vector<16x8x8xf32> to vector<1x8x8xf32>
    %357 = vector.shape_cast %356 : vector<1x8x8xf32> to vector<8x8xf32>
    %358 = tpu.transpose %357, [1, 0] : vector<8x8xf32> -> vector<8x8xf32>
    %359 = arith.addf %357, %358 : vector<8x8xf32>
    %cst_87 = arith.constant 5.000000e-01 : f32
    %360 = vector.broadcast %cst_87 : f32 to vector<8x8xf32>
    %361 = arith.mulf %360, %359 : vector<8x8xf32>
    %c0_88 = arith.constant 0 : index
    %c0_89 = arith.constant 0 : index
    %c112 = arith.constant 112 : index
    %362 = vector.load %arg7[%c0_88, %c0_89, %c112] : memref<1x8x128xf32, #tpu.memory_space<vmem>>, vector<1x8x8xf32>
    %363 = vector.shape_cast %362 : vector<1x8x8xf32> to vector<8x8xf32>
    %364 = vector.shape_cast %361 : vector<8x8xf32> to vector<1x8x8xf32>
    tpu.vector_store %arg7[%c0_88, %c0_89, %c112], %364 {strides = array<i32>} : memref<1x8x128xf32, #tpu.memory_space<vmem>>, vector<1x8x8xf32>,
    %365 = vector.extract_strided_slice %229 {offsets = [15, 0, 0], sizes = [1, 8, 8], strides = [1, 1, 1]} : vector<16x8x8xf32> to vector<1x8x8xf32>
    %366 = vector.shape_cast %365 : vector<1x8x8xf32> to vector<8x8xf32>
    %367 = tpu.transpose %366, [1, 0] : vector<8x8xf32> -> vector<8x8xf32>
    %368 = arith.addf %366, %367 : vector<8x8xf32>
    %cst_90 = arith.constant 5.000000e-01 : f32
    %369 = vector.broadcast %cst_90 : f32 to vector<8x8xf32>
    %370 = arith.mulf %369, %368 : vector<8x8xf32>
    %c0_91 = arith.constant 0 : index
    %c0_92 = arith.constant 0 : index
    %c120 = arith.constant 120 : index
    %371 = vector.load %arg7[%c0_91, %c0_92, %c120] : memref<1x8x128xf32, #tpu.memory_space<vmem>>, vector<1x8x8xf32>
    %372 = vector.shape_cast %371 : vector<1x8x8xf32> to vector<8x8xf32>
    %373 = vector.shape_cast %370 : vector<8x8xf32> to vector<1x8x8xf32>
    tpu.vector_store %arg7[%c0_91, %c0_92, %c120], %373 {strides = array<i32>} : memref<1x8x128xf32, #tpu.memory_space<vmem>>, vector<1x8x8xf32>,
    return
  }
  func.func @transform_0(%arg0: i32) -> (i32, i32, i32) {
    %c0_i32 = arith.constant 0 : i32
    %c0_i32_0 = arith.constant 0 : i32
    %c0_i32_1 = arith.constant 0 : i32
    return %arg0, %c0_i32, %c0_i32_0 : i32, i32, i32
  }
  func.func @transform_1(%arg0: i32) -> (i32, i32) {
    %c0_i32 = arith.constant 0 : i32
    %c0_i32_0 = arith.constant 0 : i32
    %c0_i32_1 = arith.constant 0 : i32
    return %c0_i32, %c0_i32_0 : i32, i32
  }
  func.func @transform_2(%arg0: i32) -> (i32, i32) {
    %c0_i32 = arith.constant 0 : i32
    %c0_i32_0 = arith.constant 0 : i32
    %c0_i32_1 = arith.constant 0 : i32
    return %c0_i32, %c0_i32_0 : i32, i32
  }
  func.func @transform_3(%arg0: i32) -> (i32, i32) {
    %c0_i32 = arith.constant 0 : i32
    %c0_i32_0 = arith.constant 0 : i32
    %c0_i32_1 = arith.constant 0 : i32
    return %c0_i32, %c0_i32_0 : i32, i32
  }
  func.func @transform_4(%arg0: i32) -> (i32, i32) {
    %c0_i32 = arith.constant 0 : i32
    %c0_i32_0 = arith.constant 0 : i32
    %c0_i32_1 = arith.constant 0 : i32
    return %c0_i32, %c0_i32_0 : i32, i32
  }
  func.func @transform_5(%arg0: i32) -> (i32, i32, i32) {
    %c0_i32 = arith.constant 0 : i32
    %c0_i32_0 = arith.constant 0 : i32
    %c0_i32_1 = arith.constant 0 : i32
    return %arg0, %c0_i32, %c0_i32_0 : i32, i32, i32
  }
  func.func @transform_6(%arg0: i32) -> (i32, i32, i32) {
    %c0_i32 = arith.constant 0 : i32
    %c0_i32_0 = arith.constant 0 : i32
    %c0_i32_1 = arith.constant 0 : i32
    return %arg0, %c0_i32, %c0_i32_0 : i32, i32, i32
  }
}

</mosaic_0001>

<llo_original>
// kernel: graph_learning_forward.1
$region0: #{graph_learning_forward.1}
  #allocation0 [shape = 'u32[]', space=smem, size = 0x4, offset = 0x4, fixed_abs, tag = 'smem constant byte address 0x4 - core index']
  #allocation1 [shape = 'u32[72,128]{1,0:T(1,128)}', space=vmem, size = 0x9000, scoped, tag = 'internal scratch']
  %s0 = inlined_call_operand.vmem [shape: f32[2,128,32], index: 0, kind: input, shape index: {}]
  %s1 = inlined_call_operand.vmem [shape: f32[32,96], index: 1, kind: input, shape index: {}]
  %s2 = inlined_call_operand.vmem [shape: f32[32,96], index: 2, kind: input, shape index: {}]
  %s3 = inlined_call_operand.vmem [shape: f32[1,96], index: 3, kind: input, shape index: {}]
  %s4 = inlined_call_operand.vmem [shape: f32[1,32], index: 4, kind: input, shape index: {}]
  %s5 = inlined_call_operand.vmem [shape: f32[32,32,24], index: 5, kind: input, shape index: {}]
  %s6 = inlined_call_operand.vmem [shape: f32[2,8,128], index: 6, kind: output, shape index: {}]
  %s7 = sld [smem:[#allocation0]]
  $region57: #{graph_learning_forward.1} parent=0
    _
  %s9 = ssub.s32 1, %s7
  %s10 = scalar_select 0, %s9, %s7
  loop: start=0, step=1, limit=4
  $region2: #{graph_learning_forward.1} parent=0 // loop_pre_header
    _
  $region3: #{graph_learning_forward.1} parent=0 // loop_header
    %s12 = sphi 0, %s16
    %p13 = scmp.ge.s32.totalorder %s12, 4
    %s22 = sphi 0, %s24
    %s25 = sphi 0, %s22
    %s26 = sphi 0, %s25
    %s42 = sphi 0, %s26
    %s46 = sphi 0, %s46
    %s48 = sphi 0, %s46
    %s49 = sphi 0, %s48
    %s63 = sphi 0, %s49
    %s67 = sphi 0, %s67
    %s69 = sphi 0, %s67
    %s70 = sphi 0, %s69
    %s84 = sphi 0, %s70
    %s88 = sphi 0, %s88
    %s90 = sphi 0, %s88
    %s91 = sphi 0, %s90
    %s105 = sphi 0, %s91
    %s109 = sphi 0, %s109
    %s111 = sphi 0, %s109
    %s112 = sphi 0, %s111
    %s126 = sphi 0, %s112
    %s132 = sphi 0, %s134
    %s135 = sphi 0, %s132
    %s136 = sphi 0, %s135
    %s152 = sphi 0, %s136
    %s158 = sphi 0, %s160
    %s161 = sphi 0, %s158
    %s162 = sphi 0, %s161
    %s178 = sphi 0, %s162
  $region4: #{graph_learning_forward.1} parent=0 // loop_header_branch
    %15 = sbr.rel (%p13) target = $region8
  $region5: #{graph_learning_forward.1} parent=0 // loop_body
    %s17 = ssub.s32 %s12, 1
    %s18 = ssub.s32 %s12, 2
    %s19 = sadd.s32 %s12, 1
    %s20 = ssub.s32 %s12, %s19
    %p21 = scmp.eq.s32.totalorder %s20, 0
    %s23 = sadd.s32 %s22, 1
    %s24 = scalar_select %p21, %s22, %s23
    %p27 = pneg %p21
    %p28 = scmp.eq.s32.totalorder %s12, 1
    %p29 = por %p27, %p28
    %p30 = scmp.ne.s32.totalorder %s22, %s25
    %p31 = scmp.eq.s32.totalorder %s12, 0
    %p32 = por %p30, %p31
    %p33 = scmp.ne.s32.totalorder %s22, %s25
    %p34 = scmp.eq.s32.totalorder %s17, 1
    %p35 = por %p33, %p34
    %p36 = scmp.ne.s32.totalorder %s25, %s26
    %p37 = scmp.eq.s32.totalorder %s17, 0
    %p38 = por %p36, %p37
    %p39 = scmp.ne.s32.totalorder %s25, %s26
    %p40 = scmp.eq.s32.totalorder %s18, 1
    %p41 = por %p39, %p40
    %p43 = scmp.ne.s32.totalorder %s26, %s42
    %p44 = scmp.eq.s32.totalorder %s18, 0
    %p45 = por %p43, %p44
    %s47 = sadd.s32 %s46, 1
    %p50 = scmp.eq.s32.totalorder %s12, 1
    %p51 = scmp.ne.s32.totalorder %s46, %s48
    %p52 = scmp.eq.s32.totalorder %s12, 0
    %p53 = por %p51, %p52
    %p54 = scmp.ne.s32.totalorder %s46, %s48
    %p55 = scmp.eq.s32.totalorder %s17, 1
    %p56 = por %p54, %p55
    %p57 = scmp.ne.s32.totalorder %s48, %s49
    %p58 = scmp.eq.s32.totalorder %s17, 0
    %p59 = por %p57, %p58
    %p60 = scmp.ne.s32.totalorder %s48, %s49
    %p61 = scmp.eq.s32.totalorder %s18, 1
    %p62 = por %p60, %p61
    %p64 = scmp.ne.s32.totalorder %s49, %s63
    %p65 = scmp.eq.s32.totalorder %s18, 0
    %p66 = por %p64, %p65
    %s68 = sadd.s32 %s67, 1
    %p71 = scmp.eq.s32.totalorder %s12, 1
    %p72 = scmp.ne.s32.totalorder %s67, %s69
    %p73 = scmp.eq.s32.totalorder %s12, 0
    %p74 = por %p72, %p73
    %p75 = scmp.ne.s32.totalorder %s67, %s69
    %p76 = scmp.eq.s32.totalorder %s17, 1
    %p77 = por %p75, %p76
    %p78 = scmp.ne.s32.totalorder %s69, %s70
    %p79 = scmp.eq.s32.totalorder %s17, 0
    %p80 = por %p78, %p79
    %p81 = scmp.ne.s32.totalorder %s69, %s70
    %p82 = scmp.eq.s32.totalorder %s18, 1
    %p83 = por %p81, %p82
    %p85 = scmp.ne.s32.totalorder %s70, %s84
    %p86 = scmp.eq.s32.totalorder %s18, 0
    %p87 = por %p85, %p86
    %s89 = sadd.s32 %s88, 1
    %p92 = scmp.eq.s32.totalorder %s12, 1
    %p93 = scmp.ne.s32.totalorder %s88, %s90
    %p94 = scmp.eq.s32.totalorder %s12, 0
    %p95 = por %p93, %p94
    %p96 = scmp.ne.s32.totalorder %s88, %s90
    %p97 = scmp.eq.s32.totalorder %s17, 1
    %p98 = por %p96, %p97
    %p99 = scmp.ne.s32.totalorder %s90, %s91
    %p100 = scmp.eq.s32.totalorder %s17, 0
    %p101 = por %p99, %p100
    %p102 = scmp.ne.s32.totalorder %s90, %s91
    %p103 = scmp.eq.s32.totalorder %s18, 1
    %p104 = por %p102, %p103
    %p106 = scmp.ne.s32.totalorder %s91, %s105
    %p107 = scmp.eq.s32.totalorder %s18, 0
    %p108 = por %p106, %p107
    %s110 = sadd.s32 %s109, 1
    %p113 = scmp.eq.s32.totalorder %s12, 1
    %p114 = scmp.ne.s32.totalorder %s109, %s111
    %p115 = scmp.eq.s32.totalorder %s12, 0
    %p116 = por %p114, %p115
    %p117 = scmp.ne.s32.totalorder %s109, %s111
    %p118 = scmp.eq.s32.totalorder %s17, 1
    %p119 = por %p117, %p118
    %p120 = scmp.ne.s32.totalorder %s111, %s112
    %p121 = scmp.eq.s32.totalorder %s17, 0
    %p122 = por %p120, %p121
    %p123 = scmp.ne.s32.totalorder %s111, %s112
    %p124 = scmp.eq.s32.totalorder %s18, 1
    %p125 = por %p123, %p124
    %p127 = scmp.ne.s32.totalorder %s112, %s126
    %p128 = scmp.eq.s32.totalorder %s18, 0
    %p129 = por %p127, %p128
    %s130 = ssub.s32 %s12, %s19
    %p131 = scmp.eq.s32.totalorder %s130, 0
    %s133 = sadd.s32 %s132, 1
    %s134 = scalar_select %p131, %s132, %s133
    %p137 = pneg %p131
    %p138 = scmp.eq.s32.totalorder %s12, 1
    %p139 = por %p137, %p138
    %p140 = scmp.ne.s32.totalorder %s132, %s135
    %p141 = scmp.eq.s32.totalorder %s12, 0
    %p142 = por %p140, %p141
    %p143 = scmp.ne.s32.totalorder %s132, %s135
    %p144 = scmp.eq.s32.totalorder %s17, 1
    %p145 = por %p143, %p144
    %p146 = scmp.ne.s32.totalorder %s135, %s136
    %p147 = scmp.eq.s32.totalorder %s17, 0
    %p148 = por %p146, %p147
    %p149 = scmp.ne.s32.totalorder %s135, %s136
    %p150 = scmp.eq.s32.totalorder %s18, 1
    %p151 = por %p149, %p150
    %p153 = scmp.ne.s32.totalorder %s136, %s152
    %p154 = scmp.eq.s32.totalorder %s18, 0
    %p155 = por %p153, %p154
    %s156 = ssub.s32 %s12, %s19
    %p157 = scmp.eq.s32.totalorder %s156, 0
    %s159 = sadd.s32 %s158, 1
    %s160 = scalar_select %p157, %s158, %s159
    %p163 = pneg %p157
    %p164 = scmp.eq.s32.totalorder %s12, 1
    %p165 = por %p163, %p164
    %p166 = scmp.ne.s32.totalorder %s158, %s161
    %p167 = scmp.eq.s32.totalorder %s12, 0
    %p168 = por %p166, %p167
    %p169 = scmp.ne.s32.totalorder %s158, %s161
    %p170 = scmp.eq.s32.totalorder %s17, 1
    %p171 = por %p169, %p170
    %p172 = scmp.ne.s32.totalorder %s161, %s162
    %p173 = scmp.eq.s32.totalorder %s17, 0
    %p174 = por %p172, %p173
    %p175 = scmp.ne.s32.totalorder %s161, %s162
    %p176 = scmp.eq.s32.totalorder %s18, 1
    %p177 = por %p175, %p176
    %p179 = scmp.ne.s32.totalorder %s162, %s178
    %p180 = scmp.eq.s32.totalorder %s18, 0
    %p181 = por %p179, %p180
    %p182 = scmp.le.s32.totalorder 1, %s12
    %p183 = scmp.lt.s32.totalorder %s12, 3
    %p184 = pnand %p182, %p183
    %p185 = pneg %p184
    // Predicated region
    $region9: #{graph_learning_forward.1} parent=5 // pred_check
      _
    $region10: #{graph_learning_forward.1} parent=5 // pred_check_branch
      %187 = sbr.rel (%p184) target = $region12
    $region11: #{graph_learning_forward.1} parent=5 // pred_region
      %s188 = ssub.s32 %s12, 1
      // Predicated region
      $region13: #{graph_learning_forward.1} parent=11 // pred_check
        %p189 = pneg %p59
      $region14: #{graph_learning_forward.1} parent=11 // pred_check_branch
        %191 = sbr.rel (%p189) target = $region16
      $region15: #{graph_learning_forward.1} parent=11 // pred_region
        _
      $region16: #{graph_learning_forward.1} parent=11 // pred_fallthru
        _
      // Predicated region
      $region17: #{graph_learning_forward.1} parent=11 // pred_check
        %p192 = pneg %p80
      $region18: #{graph_learning_forward.1} parent=11 // pred_check_branch
        %194 = sbr.rel (%p192) target = $region20
      $region19: #{graph_learning_forward.1} parent=11 // pred_region
        _
      $region20: #{graph_learning_forward.1} parent=11 // pred_fallthru
        _
      // Predicated region
      $region21: #{graph_learning_forward.1} parent=11 // pred_check
        %p195 = pneg %p101
      $region22: #{graph_learning_forward.1} parent=11 // pred_check_branch
        %197 = sbr.rel (%p195) target = $region24
      $region23: #{graph_learning_forward.1} parent=11 // pred_region
        _
      $region24: #{graph_learning_forward.1} parent=11 // pred_fallthru
        _
      // Predicated region
      $region25: #{graph_learning_forward.1} parent=11 // pred_check
        %p198 = pneg %p122
      $region26: #{graph_learning_forward.1} parent=11 // pred_check_branch
        %200 = sbr.rel (%p198) target = $region28
      $region27: #{graph_learning_forward.1} parent=11 // pred_region
        _
      $region28: #{graph_learning_forward.1} parent=11 // pred_fallthru
        _
    $region12: #{graph_learning_forward.1} parent=5 // pred_fallthru
      _
    %p201 = scmp.lt.s32.totalorder %s12, 2
    // Predicated region
    $region29: #{graph_learning_forward.1} parent=5 // pred_check
      %p202 = pneg %p201
    $region30: #{graph_learning_forward.1} parent=5 // pred_check_branch
      %204 = sbr.rel (%p202) target = $region32
    $region31: #{graph_learning_forward.1} parent=5 // pred_region
      // Predicated region
      $region33: #{graph_learning_forward.1} parent=31 // pred_check
        %p205 = pneg %p32
      $region34: #{graph_learning_forward.1} parent=31 // pred_check_branch
        %207 = sbr.rel (%p205) target = $region36
      $region35: #{graph_learning_forward.1} parent=31 // pred_region
        %p208 = scmp.lt.s32.totalorder %s12, 1
        %s209 = scalar_select %p208, %s12, 1
        %s210 = smul.addr %s209, 16
        %s211 = smul.addr %s210, 8
        %s212 = scalar_lea.vmem %s0, %s211
      $region36: #{graph_learning_forward.1} parent=31 // pred_fallthru
        _
      // Predicated region
      $region37: #{graph_learning_forward.1} parent=31 // pred_check
        %p213 = pneg %p142
      $region38: #{graph_learning_forward.1} parent=31 // pred_check_branch
        %215 = sbr.rel (%p213) target = $region40
      $region39: #{graph_learning_forward.1} parent=31 // pred_region
        %s216 = smul.u32 16, %s12
        %p217 = scmp.lt.s32.totalorder %s216, 31
        %s218 = scalar_select %p217, %s216, 31
        %s219 = smul.addr %s218, 4
        %s220 = smul.addr %s219, 8
        %s221 = scalar_lea.vmem %s5, %s220
        %s222 = smul.u32 16, %s12
      $region40: #{graph_learning_forward.1} parent=31 // pred_fallthru
        _
    $region32: #{graph_learning_forward.1} parent=5 // pred_fallthru
      _
    %p223 = scmp.le.s32.totalorder 1, %s12
    %p224 = scmp.lt.s32.totalorder %s12, 3
    %p225 = pnand %p223, %p224
    %p226 = pneg %p225
    // Predicated region
    $region41: #{graph_learning_forward.1} parent=5 // pred_check
      _
    $region42: #{graph_learning_forward.1} parent=5 // pred_check_branch
      %228 = sbr.rel (%p225) target = $region44
    $region43: #{graph_learning_forward.1} parent=5 // pred_region
      %s229 = ssub.s32 %s12, 1
      %p230 = scmp.lt.s32.totalorder %s17, 1
      %s231 = scalar_select %p230, %s17, 1
      %s232 = smul.addr %s231, 16
      %s233 = smul.addr %s232, 8
      %s234 = scalar_lea.vmem %s0, %s233
      %p235 = pneg %p38
      %p236 = pneg %p35
      %p237 = pneg %p59
      %p238 = pneg %p56
      %p239 = pneg %p80
      %p240 = pneg %p77
      %p241 = pneg %p101
      %p242 = pneg %p98
      %p243 = pneg %p122
      %p244 = pneg %p119
      %s245 = smul.u32 16, %s17
      %p246 = scmp.lt.s32.totalorder %s245, 31
      %s247 = scalar_select %p246, %s245, 31
      %s248 = smul.addr %s247, 4
      %s249 = smul.addr %s248, 8
      %s250 = scalar_lea.vmem %s5, %s249
      %p251 = pneg %p148
      %p252 = pneg %p145
      %p253 = pneg %p174
      %p254 = pneg %p171
      %p255 = scmp.lt.s32.totalorder %s17, 1
      %s256 = scalar_select %p255, %s17, 1
      %s257 = smul.addr %s256, 8
      %s258 = scalar_lea.vmem %s6, %s257
      %p259 = scmp.lt.s32.totalorder %s17, 1
      %s260 = scalar_select %p259, %s17, 1
      %s261 = smul.addr %s260, 16
      %s262 = smul.addr %s261, 8
      %s263 = scalar_lea.vmem %s0, %s262
      %s264 = smul.u32 16, %s17
      %p265 = scmp.lt.s32.totalorder %s264, 31
      %s266 = scalar_select %p265, %s264, 31
      %s267 = smul.addr %s266, 4
      %s268 = smul.addr %s267, 8
      %s269 = scalar_lea.vmem %s5, %s268
      %s270 = smul.u32 16, %s17
      %p271 = scmp.lt.s32.totalorder %s17, 1
      %s272 = scalar_select %p271, %s17, 1
      %s273 = smul.addr %s272, 8
      %s274 = scalar_lea.vmem %s6, %s273
      %v275 = vld [vmem:[%s263] sm:$0xff]
      %v276 = vld [vmem:[%s263 + $0x8] sm:$0xff]
      %v277 = vld [vmem:[%s263 + $0x10] sm:$0xff]
      %v278 = vld [vmem:[%s263 + $0x18] sm:$0xff]
      %v279 = vld [vmem:[%s263 + $0x20] sm:$0xff]
      %v280 = vld [vmem:[%s263 + $0x28] sm:$0xff]
      %v281 = vld [vmem:[%s263 + $0x30] sm:$0xff]
      %v282 = vld [vmem:[%s263 + $0x38] sm:$0xff]
      %v283 = vld [vmem:[%s263 + $0x40] sm:$0xff]
      %v284 = vld [vmem:[%s263 + $0x48] sm:$0xff]
      %v285 = vld [vmem:[%s263 + $0x50] sm:$0xff]
      %v286 = vld [vmem:[%s263 + $0x58] sm:$0xff]
      %v287 = vld [vmem:[%s263 + $0x60] sm:$0xff]
      %v288 = vld [vmem:[%s263 + $0x68] sm:$0xff]
      %v289 = vld [vmem:[%s263 + $0x70] sm:$0xff]
      %v290 = vld [vmem:[%s263 + $0x78] sm:$0xff]
      %v291 = vld [vmem:[%s1] sm:$0xff]
      %v292 = vld [vmem:[%s1 + $0x8] sm:$0xff]
      %v293 = vld [vmem:[%s1 + $0x10] sm:$0xff]
      %v294 = vld [vmem:[%s1 + $0x18] sm:$0xff]
      %v295 = vld [vmem:[%s3] sm:$0x1]
      %v297 = vperm.slane %v295, 0
      %vm299 = vcmask 261120
      %v301 = vsel %vm299, %v275, 0
      %v304 = vsel %vm299, %v276, 0
      %v307 = vsel %vm299, %v277, 0
      %v310 = vsel %vm299, %v278, 0
      %v313 = vsel %vm299, %v279, 0
      %v316 = vsel %vm299, %v280, 0
      %v319 = vsel %vm299, %v281, 0
      %v322 = vsel %vm299, %v282, 0
      %v325 = vsel %vm299, %v283, 0
      %v328 = vsel %vm299, %v284, 0
      %v331 = vsel %vm299, %v285, 0
      %v334 = vsel %vm299, %v286, 0
      %v337 = vsel %vm299, %v287, 0
      %v340 = vsel %vm299, %v288, 0
      %v343 = vsel %vm299, %v289, 0
      %v346 = vsel %vm299, %v290, 0
      %348 = vmatpush.msra.mxu0 0.0
      %349 = vmatpush.msra.mxu0 0.0
      %350 = vmatpush.msra.mxu0 0.0
      %351 = vmatpush.msra.mxu0 0.0
      %352 = vmatpush.msra.mxu0 0.0
      %353 = vmatpush.msra.mxu0 0.0
      %354 = vmatpush.msra.mxu0 0.0
      %355 = vmatpush.msra.mxu0 0.0
      %356 = vmatpush.msra.mxu0 0.0
      %357 = vmatpush.msra.mxu0 0.0
      %358 = vmatpush.msra.mxu0 0.0
      %359 = vmatpush.msra.mxu0 0.0
      %360 = vmatpush.msra.mxu0 %v294
      %361 = vmatpush.msra.mxu0 %v293
      %362 = vmatpush.msra.mxu0 %v292
      %363 = vmatpush.msra.mxu0 %v291
      %364 = vmatmul.f32.gmra.mxu0 %v301
      %v365 = vpop.f32.mrf.mxu0
      %v366 = vadd.f32 %v297, %v365
      %367 = vmatmul.f32.gmra.mxu0 %v304
      %v368 = vpop.f32.mrf.mxu0
      %v369 = vadd.f32 %v297, %v368
      %370 = vmatmul.f32.gmra.mxu0 %v307
      %v371 = vpop.f32.mrf.mxu0
      %v372 = vadd.f32 %v297, %v371
      %373 = vmatmul.f32.gmra.mxu0 %v310
      %v374 = vpop.f32.mrf.mxu0
      %v375 = vadd.f32 %v297, %v374
      %376 = vmatmul.f32.gmra.mxu0 %v313
      %v377 = vpop.f32.mrf.mxu0
      %v378 = vadd.f32 %v297, %v377
      %379 = vmatmul.f32.gmra.mxu0 %v316
      %v380 = vpop.f32.mrf.mxu0
      %v381 = vadd.f32 %v297, %v380
      %382 = vmatmul.f32.gmra.mxu0 %v319
      %v383 = vpop.f32.mrf.mxu0
      %v384 = vadd.f32 %v297, %v383
      %385 = vmatmul.f32.gmra.mxu0 %v322
      %v386 = vpop.f32.mrf.mxu0
      %v387 = vadd.f32 %v297, %v386
      %388 = vmatmul.f32.gmra.mxu0 %v325
      %v389 = vpop.f32.mrf.mxu0
      %v390 = vadd.f32 %v297, %v389
      %391 = vmatmul.f32.gmra.mxu0 %v328
      %v392 = vpop.f32.mrf.mxu0
      %v393 = vadd.f32 %v297, %v392
      %394 = vmatmul.f32.gmra.mxu0 %v331
      %v395 = vpop.f32.mrf.mxu0
      %v396 = vadd.f32 %v297, %v395
      %397 = vmatmul.f32.gmra.mxu0 %v334
      %v398 = vpop.f32.mrf.mxu0
      %v399 = vadd.f32 %v297, %v398
      %400 = vmatmul.f32.gmra.mxu0 %v337
      %v401 = vpop.f32.mrf.mxu0
      %v402 = vadd.f32 %v297, %v401
      %403 = vmatmul.f32.gmra.mxu0 %v340
      %v404 = vpop.f32.mrf.mxu0
      %v405 = vadd.f32 %v297, %v404
      %406 = vmatmul.f32.gmra.mxu0 %v343
      %v407 = vpop.f32.mrf.mxu0
      %v408 = vadd.f32 %v297, %v407
      %409 = vmatmul.f32.gmra.mxu0 %v346
      %v410 = vpop.f32.mrf.mxu0
      %v411 = vadd.f32 %v297, %v410
      %412 = vdwg.mxu0
      %v413 = vld [vmem:[%s2] sm:$0xff]
      %v414 = vld [vmem:[%s2 + $0x8] sm:$0xff]
      %v415 = vld [vmem:[%s2 + $0x10] sm:$0xff]
      %v416 = vld [vmem:[%s2 + $0x18] sm:$0xff]
      %v417 = vld [vmem:[%s4] sm:$0x1]
      %v419 = vsel %vm299, 0.0, 0
      %421 = vmatpush.msra.mxu0 0.0
      %422 = vmatpush.msra.mxu0 0.0
      %423 = vmatpush.msra.mxu0 0.0
      %424 = vmatpush.msra.mxu0 0.0
      %425 = vmatpush.msra.mxu0 0.0
      %426 = vmatpush.msra.mxu0 0.0
      %427 = vmatpush.msra.mxu0 0.0
      %428 = vmatpush.msra.mxu0 0.0
      %429 = vmatpush.msra.mxu0 0.0
      %430 = vmatpush.msra.mxu0 0.0
      %431 = vmatpush.msra.mxu0 0.0
      %432 = vmatpush.msra.mxu0 0.0
      %433 = vmatpush.msra.mxu0 %v416
      %434 = vmatpush.msra.mxu0 %v415
      %435 = vmatpush.msra.mxu0 %v414
      %436 = vmatpush.msra.mxu0 %v413
      %437 = vmatmul.f32.gmra.mxu0 %v419
      %v438 = vpop.f32.mrf.mxu0
      %v439 = vadd.f32 0.0, %v438
      %440 = vmatmul.f32.gmra.mxu0 %v419
      %v441 = vpop.f32.mrf.mxu0
      %v442 = vadd.f32 0.0, %v441
      %443 = vdwg.mxu0
      %v444 = vadd.f32 %v366, %v439
      %v445 = vadd.f32 %v369, %v442
      %v446 = vxor.u32 %v444, 2147483648
      %v447 = vxor.u32 %v445, 2147483648
      %v448 = vmul.f32 %v446, 1.442695
      %v449 = vpow.pop %v448
      %v450 = vmul.f32 %v447, 1.442695
      %v451 = vpow.pop %v450
      %v452 = vadd.f32 %v449, 1.0
      %v453 = vadd.f32 %v451, 1.0
      %v454 = vrcp.pop %v452
      %v455 = vmul.f32 %v452, %v454
      %v456 = vsub.f32 1.0, %v455
      %v457 = vmul.f32 %v454, %v456
      %v458 = vadd.f32 %v454, %v457
      %vm459 = vweird.f32 %v452
      %vm460 = vweird.f32 %v454
      %vm461 = vmor %vm459, %vm460
      %v462 = vsel %vm461, %v454, %v458
      %v463 = vand.u32 2147483647, %v452
      %vm464 = vcmp.eq.f32.partialorder %v463, 8.507059e+37
      %v465 = vand.u32 %v452, 2147483648
      %v466 = vor.u32 1.1754944e-38, %v465
      %v467 = vsel %vm464, %v466, %v462
      %v468 = vmul.f32 1.0, %v467
      %v469 = vrcp.pop %v453
      %v470 = vmul.f32 %v453, %v469
      %v471 = vsub.f32 1.0, %v470
      %v472 = vmul.f32 %v469, %v471
      %v473 = vadd.f32 %v469, %v472
      %vm474 = vweird.f32 %v453
      %vm475 = vweird.f32 %v469
      %vm476 = vmor %vm474, %vm475
      %v477 = vsel %vm476, %v469, %v473
      %v478 = vand.u32 2147483647, %v453
      %vm479 = vcmp.eq.f32.partialorder %v478, 8.507059e+37
      %v480 = vand.u32 %v453, 2147483648
      %v481 = vor.u32 1.1754944e-38, %v480
      %v482 = vsel %vm479, %v481, %v477
      %v483 = vmul.f32 1.0, %v482
      %v485 = vperm.slane %v417, 0
      %486 = vrot.lane.b32.xlu0 %v485, 64
      %v487 = vpop.permute.xlu0 %486
      %v489 = vadd.f32 %v439, %v487
      %v490 = vadd.f32 %v442, %v487
      %493 = vrot.lane.b32.xlu0 %v489, 64
      %v494 = vpop.permute.xlu0 %493
      %495 = vrot.lane.b32.xlu0 %v490, 64
      %v496 = vpop.permute.xlu0 %495
      %v499 = vmul.f32 %v468, %v494
      %v500 = vmul.f32 %v483, %v496
      %503 = vrot.lane.b32.xlu0 %v499, 64
      %v504 = vpop.permute.xlu0 %503
      %505 = vrot.lane.b32.xlu0 %v500, 64
      %v506 = vpop.permute.xlu0 %505
      %v509 = vadd.f32 %v366, %v504
      %v510 = vadd.f32 %v369, %v506
      %v511 = vtanh.pop %v509
      %v512 = vtanh.pop %v510
      %v513 = vsub.f32 1.0, %v468
      %v514 = vsub.f32 1.0, %v483
      %517 = vrot.lane.b32.xlu0 %v511, 96
      %v518 = vpop.permute.xlu0 %517
      %519 = vrot.lane.b32.xlu0 %v512, 96
      %v520 = vpop.permute.xlu0 %519
      %v523 = vmul.f32 %v513, %v518
      %v524 = vmul.f32 %v514, %v520
      %v525 = vmul.f32 %v468, 0.0
      %v526 = vmul.f32 %v483, 0.0
      %v527 = vadd.f32 %v523, %v525
      %v528 = vadd.f32 %v524, %v526
      %531 = vrot.lane.b32.xlu0 %v527, 96
      %v532 = vpop.permute.xlu0 %531
      %533 = vrot.lane.b32.xlu0 %v528, 96
      %v534 = vpop.permute.xlu0 %533
      %v535 = vsel %vm299, %v532, 0
      %v537 = vsel %vm299, %v534, 0
      %539 = vmatpush.msra.mxu0 0.0
      %540 = vmatpush.msra.mxu0 0.0
      %541 = vmatpush.msra.mxu0 0.0
      %542 = vmatpush.msra.mxu0 0.0
      %543 = vmatpush.msra.mxu0 0.0
      %544 = vmatpush.msra.mxu0 0.0
      %545 = vmatpush.msra.mxu0 0.0
      %546 = vmatpush.msra.mxu0 0.0
      %547 = vmatpush.msra.mxu0 0.0
      %548 = vmatpush.msra.mxu0 0.0
      %549 = vmatpush.msra.mxu0 0.0
      %550 = vmatpush.msra.mxu0 0.0
      %551 = vmatpush.msra.mxu0 %v416
      %552 = vmatpush.msra.mxu0 %v415
      %553 = vmatpush.msra.mxu0 %v414
      %554 = vmatpush.msra.mxu0 %v413
      %555 = vmatmul.f32.gmra.mxu0 %v535
      %v556 = vpop.f32.mrf.mxu0
      %v557 = vadd.f32 0.0, %v556
      %558 = vmatmul.f32.gmra.mxu0 %v537
      %v559 = vpop.f32.mrf.mxu0
      %v560 = vadd.f32 0.0, %v559
      %561 = vdwg.mxu0
      %v562 = vadd.f32 %v372, %v557
      %v563 = vadd.f32 %v375, %v560
      %v564 = vxor.u32 %v562, 2147483648
      %v565 = vxor.u32 %v563, 2147483648
      %v566 = vmul.f32 %v564, 1.442695
      %v567 = vpow.pop %v566
      %v568 = vmul.f32 %v565, 1.442695
      %v569 = vpow.pop %v568
      %v570 = vadd.f32 %v567, 1.0
      %v571 = vadd.f32 %v569, 1.0
      %v572 = vrcp.pop %v570
      %v573 = vmul.f32 %v570, %v572
      %v574 = vsub.f32 1.0, %v573
      %v575 = vmul.f32 %v572, %v574
      %v576 = vadd.f32 %v572, %v575
      %vm577 = vweird.f32 %v570
      %vm578 = vweird.f32 %v572
      %vm579 = vmor %vm577, %vm578
      %v580 = vsel %vm579, %v572, %v576
      %v581 = vand.u32 2147483647, %v570
      %vm582 = vcmp.eq.f32.partialorder %v581, 8.507059e+37
      %v583 = vand.u32 %v570, 2147483648
      %v584 = vor.u32 1.1754944e-38, %v583
      %v585 = vsel %vm582, %v584, %v580
      %v586 = vmul.f32 1.0, %v585
      %v587 = vrcp.pop %v571
      %v588 = vmul.f32 %v571, %v587
      %v589 = vsub.f32 1.0, %v588
      %v590 = vmul.f32 %v587, %v589
      %v591 = vadd.f32 %v587, %v590
      %vm592 = vweird.f32 %v571
      %vm593 = vweird.f32 %v587
      %vm594 = vmor %vm592, %vm593
      %v595 = vsel %vm594, %v587, %v591
      %v596 = vand.u32 2147483647, %v571
      %vm597 = vcmp.eq.f32.partialorder %v596, 8.507059e+37
      %v598 = vand.u32 %v571, 2147483648
      %v599 = vor.u32 1.1754944e-38, %v598
      %v600 = vsel %vm597, %v599, %v595
      %v601 = vmul.f32 1.0, %v600
      %v602 = vadd.f32 %v557, %v487
      %v603 = vadd.f32 %v560, %v487
      %606 = vrot.lane.b32.xlu0 %v602, 64
      %v607 = vpop.permute.xlu0 %606
      %608 = vrot.lane.b32.xlu0 %v603, 64
      %v609 = vpop.permute.xlu0 %608
      %v612 = vmul.f32 %v586, %v607
      %v613 = vmul.f32 %v601, %v609
      %616 = vrot.lane.b32.xlu0 %v612, 64
      %v617 = vpop.permute.xlu0 %616
      %618 = vrot.lane.b32.xlu0 %v613, 64
      %v619 = vpop.permute.xlu0 %618
      %v622 = vadd.f32 %v372, %v617
      %v623 = vadd.f32 %v375, %v619
      %v624 = vtanh.pop %v622
      %v625 = vtanh.pop %v623
      %v626 = vsub.f32 1.0, %v586
      %v627 = vsub.f32 1.0, %v601
      %630 = vrot.lane.b32.xlu0 %v624, 96
      %v631 = vpop.permute.xlu0 %630
      %632 = vrot.lane.b32.xlu0 %v625, 96
      %v633 = vpop.permute.xlu0 %632
      %v636 = vmul.f32 %v626, %v631
      %v637 = vmul.f32 %v627, %v633
      %v638 = vmul.f32 %v586, %v527
      %v639 = vmul.f32 %v601, %v528
      %v640 = vadd.f32 %v636, %v638
      %v641 = vadd.f32 %v637, %v639
      %644 = vrot.lane.b32.xlu0 %v640, 96
      %v645 = vpop.permute.xlu0 %644
      %646 = vrot.lane.b32.xlu0 %v641, 96
      %v647 = vpop.permute.xlu0 %646
      %v648 = vsel %vm299, %v645, 0
      %v650 = vsel %vm299, %v647, 0
      %652 = vmatpush.msra.mxu0 0.0
      %653 = vmatpush.msra.mxu0 0.0
      %654 = vmatpush.msra.mxu0 0.0
      %655 = vmatpush.msra.mxu0 0.0
      %656 = vmatpush.msra.mxu0 0.0
      %657 = vmatpush.msra.mxu0 0.0
      %658 = vmatpush.msra.mxu0 0.0
      %659 = vmatpush.msra.mxu0 0.0
      %660 = vmatpush.msra.mxu0 0.0
      %661 = vmatpush.msra.mxu0 0.0
      %662 = vmatpush.msra.mxu0 0.0
      %663 = vmatpush.msra.mxu0 0.0
      %664 = vmatpush.msra.mxu0 %v416
      %665 = vmatpush.msra.mxu0 %v415
      %666 = vmatpush.msra.mxu0 %v414
      %667 = vmatpush.msra.mxu0 %v413
      %668 = vmatmul.f32.gmra.mxu0 %v648
      %v669 = vpop.f32.mrf.mxu0
      %v670 = vadd.f32 0.0, %v669
      %671 = vmatmul.f32.gmra.mxu0 %v650
      %v672 = vpop.f32.mrf.mxu0
      %v673 = vadd.f32 0.0, %v672
      %674 = vdwg.mxu0
      %v675 = vadd.f32 %v378, %v670
      %v676 = vadd.f32 %v381, %v673
      %v677 = vxor.u32 %v675, 2147483648
      %v678 = vxor.u32 %v676, 2147483648
      %v679 = vmul.f32 %v677, 1.442695
      %v680 = vpow.pop %v679
      %v681 = vmul.f32 %v678, 1.442695
      %v682 = vpow.pop %v681
      %v683 = vadd.f32 %v680, 1.0
      %v684 = vadd.f32 %v682, 1.0
      %v685 = vrcp.pop %v683
      %v686 = vmul.f32 %v683, %v685
      %v687 = vsub.f32 1.0, %v686
      %v688 = vmul.f32 %v685, %v687
      %v689 = vadd.f32 %v685, %v688
      %vm690 = vweird.f32 %v683
      %vm691 = vweird.f32 %v685
      %vm692 = vmor %vm690, %vm691
      %v693 = vsel %vm692, %v685, %v689
      %v694 = vand.u32 2147483647, %v683
      %vm695 = vcmp.eq.f32.partialorder %v694, 8.507059e+37
      %v696 = vand.u32 %v683, 2147483648
      %v697 = vor.u32 1.1754944e-38, %v696
      %v698 = vsel %vm695, %v697, %v693
      %v699 = vmul.f32 1.0, %v698
      %v700 = vrcp.pop %v684
      %v701 = vmul.f32 %v684, %v700
      %v702 = vsub.f32 1.0, %v701
      %v703 = vmul.f32 %v700, %v702
      %v704 = vadd.f32 %v700, %v703
      %vm705 = vweird.f32 %v684
      %vm706 = vweird.f32 %v700
      %vm707 = vmor %vm705, %vm706
      %v708 = vsel %vm707, %v700, %v704
      %v709 = vand.u32 2147483647, %v684
      %vm710 = vcmp.eq.f32.partialorder %v709, 8.507059e+37
      %v711 = vand.u32 %v684, 2147483648
      %v712 = vor.u32 1.1754944e-38, %v711
      %v713 = vsel %vm710, %v712, %v708
      %v714 = vmul.f32 1.0, %v713
      %v715 = vadd.f32 %v670, %v487
      %v716 = vadd.f32 %v673, %v487
      %719 = vrot.lane.b32.xlu0 %v715, 64
      %v720 = vpop.permute.xlu0 %719
      %721 = vrot.lane.b32.xlu0 %v716, 64
      %v722 = vpop.permute.xlu0 %721
      %v725 = vmul.f32 %v699, %v720
      %v726 = vmul.f32 %v714, %v722
      %729 = vrot.lane.b32.xlu0 %v725, 64
      %v730 = vpop.permute.xlu0 %729
      %731 = vrot.lane.b32.xlu0 %v726, 64
      %v732 = vpop.permute.xlu0 %731
      %v735 = vadd.f32 %v378, %v730
      %v736 = vadd.f32 %v381, %v732
      %v737 = vtanh.pop %v735
      %v738 = vtanh.pop %v736
      %v739 = vsub.f32 1.0, %v699
      %v740 = vsub.f32 1.0, %v714
      %743 = vrot.lane.b32.xlu0 %v737, 96
      %v744 = vpop.permute.xlu0 %743
      %745 = vrot.lane.b32.xlu0 %v738, 96
      %v746 = vpop.permute.xlu0 %745
      %v749 = vmul.f32 %v739, %v744
      %v750 = vmul.f32 %v740, %v746
      %v751 = vmul.f32 %v699, %v640
      %v752 = vmul.f32 %v714, %v641
      %v753 = vadd.f32 %v749, %v751
      %v754 = vadd.f32 %v750, %v752
      %757 = vrot.lane.b32.xlu0 %v753, 96
      %v758 = vpop.permute.xlu0 %757
      %759 = vrot.lane.b32.xlu0 %v754, 96
      %v760 = vpop.permute.xlu0 %759
      %v761 = vsel %vm299, %v758, 0
      %v763 = vsel %vm299, %v760, 0
      %765 = vmatpush.msra.mxu0 0.0
      %766 = vmatpush.msra.mxu0 0.0
      %767 = vmatpush.msra.mxu0 0.0
      %768 = vmatpush.msra.mxu0 0.0
      %769 = vmatpush.msra.mxu0 0.0
      %770 = vmatpush.msra.mxu0 0.0
      %771 = vmatpush.msra.mxu0 0.0
      %772 = vmatpush.msra.mxu0 0.0
      %773 = vmatpush.msra.mxu0 0.0
      %774 = vmatpush.msra.mxu0 0.0
      %775 = vmatpush.msra.mxu0 0.0
      %776 = vmatpush.msra.mxu0 0.0
      %777 = vmatpush.msra.mxu0 %v416
      %778 = vmatpush.msra.mxu0 %v415
      %779 = vmatpush.msra.mxu0 %v414
      %780 = vmatpush.msra.mxu0 %v413
      %781 = vmatmul.f32.gmra.mxu0 %v761
      %v782 = vpop.f32.mrf.mxu0
      %v783 = vadd.f32 0.0, %v782
      %784 = vmatmul.f32.gmra.mxu0 %v763
      %v785 = vpop.f32.mrf.mxu0
      %v786 = vadd.f32 0.0, %v785
      %787 = vdwg.mxu0
      %v788 = vadd.f32 %v384, %v783
      %v789 = vadd.f32 %v387, %v786
      %v790 = vxor.u32 %v788, 2147483648
      %v791 = vxor.u32 %v789, 2147483648
      %v792 = vmul.f32 %v790, 1.442695
      %v793 = vpow.pop %v792
      %v794 = vmul.f32 %v791, 1.442695
      %v795 = vpow.pop %v794
      %v796 = vadd.f32 %v793, 1.0
      %v797 = vadd.f32 %v795, 1.0
      %v798 = vrcp.pop %v796
      %v799 = vmul.f32 %v796, %v798
      %v800 = vsub.f32 1.0, %v799
      %v801 = vmul.f32 %v798, %v800
      %v802 = vadd.f32 %v798, %v801
      %vm803 = vweird.f32 %v796
      %vm804 = vweird.f32 %v798
      %vm805 = vmor %vm803, %vm804
      %v806 = vsel %vm805, %v798, %v802
      %v807 = vand.u32 2147483647, %v796
      %vm808 = vcmp.eq.f32.partialorder %v807, 8.507059e+37
      %v809 = vand.u32 %v796, 2147483648
      %v810 = vor.u32 1.1754944e-38, %v809
      %v811 = vsel %vm808, %v810, %v806
      %v812 = vmul.f32 1.0, %v811
      %v813 = vrcp.pop %v797
      %v814 = vmul.f32 %v797, %v813
      %v815 = vsub.f32 1.0, %v814
      %v816 = vmul.f32 %v813, %v815
      %v817 = vadd.f32 %v813, %v816
      %vm818 = vweird.f32 %v797
      %vm819 = vweird.f32 %v813
      %vm820 = vmor %vm818, %vm819
      %v821 = vsel %vm820, %v813, %v817
      %v822 = vand.u32 2147483647, %v797
      %vm823 = vcmp.eq.f32.partialorder %v822, 8.507059e+37
      %v824 = vand.u32 %v797, 2147483648
      %v825 = vor.u32 1.1754944e-38, %v824
      %v826 = vsel %vm823, %v825, %v821
      %v827 = vmul.f32 1.0, %v826
      %v828 = vadd.f32 %v783, %v487
      %v829 = vadd.f32 %v786, %v487
      %832 = vrot.lane.b32.xlu0 %v828, 64
      %v833 = vpop.permute.xlu0 %832
      %834 = vrot.lane.b32.xlu0 %v829, 64
      %v835 = vpop.permute.xlu0 %834
      %v838 = vmul.f32 %v812, %v833
      %v839 = vmul.f32 %v827, %v835
      %842 = vrot.lane.b32.xlu0 %v838, 64
      %v843 = vpop.permute.xlu0 %842
      %844 = vrot.lane.b32.xlu0 %v839, 64
      %v845 = vpop.permute.xlu0 %844
      %v848 = vadd.f32 %v384, %v843
      %v849 = vadd.f32 %v387, %v845
      %v850 = vtanh.pop %v848
      %v851 = vtanh.pop %v849
      %v852 = vsub.f32 1.0, %v812
      %v853 = vsub.f32 1.0, %v827
      %856 = vrot.lane.b32.xlu0 %v850, 96
      %v857 = vpop.permute.xlu0 %856
      %858 = vrot.lane.b32.xlu0 %v851, 96
      %v859 = vpop.permute.xlu0 %858
      %v862 = vmul.f32 %v852, %v857
      %v863 = vmul.f32 %v853, %v859
      %v864 = vmul.f32 %v812, %v753
      %v865 = vmul.f32 %v827, %v754
      %v866 = vadd.f32 %v862, %v864
      %v867 = vadd.f32 %v863, %v865
      %870 = vrot.lane.b32.xlu0 %v866, 96
      %v871 = vpop.permute.xlu0 %870
      %872 = vrot.lane.b32.xlu0 %v867, 96
      %v873 = vpop.permute.xlu0 %872
      %v874 = vsel %vm299, %v871, 0
      %v876 = vsel %vm299, %v873, 0
      %878 = vmatpush.msra.mxu0 0.0
      %879 = vmatpush.msra.mxu0 0.0
      %880 = vmatpush.msra.mxu0 0.0
      %881 = vmatpush.msra.mxu0 0.0
      %882 = vmatpush.msra.mxu0 0.0
      %883 = vmatpush.msra.mxu0 0.0
      %884 = vmatpush.msra.mxu0 0.0
      %885 = vmatpush.msra.mxu0 0.0
      %886 = vmatpush.msra.mxu0 0.0
      %887 = vmatpush.msra.mxu0 0.0
      %888 = vmatpush.msra.mxu0 0.0
      %889 = vmatpush.msra.mxu0 0.0
      %890 = vmatpush.msra.mxu0 %v416
      %891 = vmatpush.msra.mxu0 %v415
      %892 = vmatpush.msra.mxu0 %v414
      %893 = vmatpush.msra.mxu0 %v413
      %894 = vmatmul.f32.gmra.mxu0 %v874
      %v895 = vpop.f32.mrf.mxu0
      %v896 = vadd.f32 0.0, %v895
      %897 = vmatmul.f32.gmra.mxu0 %v876
      %v898 = vpop.f32.mrf.mxu0
      %v899 = vadd.f32 0.0, %v898
      %900 = vdwg.mxu0
      %v901 = vadd.f32 %v390, %v896
      %v902 = vadd.f32 %v393, %v899
      %v903 = vxor.u32 %v901, 2147483648
      %v904 = vxor.u32 %v902, 2147483648
      %v905 = vmul.f32 %v903, 1.442695
      %v906 = vpow.pop %v905
      %v907 = vmul.f32 %v904, 1.442695
      %v908 = vpow.pop %v907
      %v909 = vadd.f32 %v906, 1.0
      %v910 = vadd.f32 %v908, 1.0
      %v911 = vrcp.pop %v909
      %v912 = vmul.f32 %v909, %v911
      %v913 = vsub.f32 1.0, %v912
      %v914 = vmul.f32 %v911, %v913
      %v915 = vadd.f32 %v911, %v914
      %vm916 = vweird.f32 %v909
      %vm917 = vweird.f32 %v911
      %vm918 = vmor %vm916, %vm917
      %v919 = vsel %vm918, %v911, %v915
      %v920 = vand.u32 2147483647, %v909
      %vm921 = vcmp.eq.f32.partialorder %v920, 8.507059e+37
      %v922 = vand.u32 %v909, 2147483648
      %v923 = vor.u32 1.1754944e-38, %v922
      %v924 = vsel %vm921, %v923, %v919
      %v925 = vmul.f32 1.0, %v924
      %v926 = vrcp.pop %v910
      %v927 = vmul.f32 %v910, %v926
      %v928 = vsub.f32 1.0, %v927
      %v929 = vmul.f32 %v926, %v928
      %v930 = vadd.f32 %v926, %v929
      %vm931 = vweird.f32 %v910
      %vm932 = vweird.f32 %v926
      %vm933 = vmor %vm931, %vm932
      %v934 = vsel %vm933, %v926, %v930
      %v935 = vand.u32 2147483647, %v910
      %vm936 = vcmp.eq.f32.partialorder %v935, 8.507059e+37
      %v937 = vand.u32 %v910, 2147483648
      %v938 = vor.u32 1.1754944e-38, %v937
      %v939 = vsel %vm936, %v938, %v934
      %v940 = vmul.f32 1.0, %v939
      %v941 = vadd.f32 %v896, %v487
      %v942 = vadd.f32 %v899, %v487
      %945 = vrot.lane.b32.xlu0 %v941, 64
      %v946 = vpop.permute.xlu0 %945
      %947 = vrot.lane.b32.xlu0 %v942, 64
      %v948 = vpop.permute.xlu0 %947
      %v951 = vmul.f32 %v925, %v946
      %v952 = vmul.f32 %v940, %v948
      %955 = vrot.lane.b32.xlu0 %v951, 64
      %v956 = vpop.permute.xlu0 %955
      %957 = vrot.lane.b32.xlu0 %v952, 64
      %v958 = vpop.permute.xlu0 %957
      %v961 = vadd.f32 %v390, %v956
      %v962 = vadd.f32 %v393, %v958
      %v963 = vtanh.pop %v961
      %v964 = vtanh.pop %v962
      %v965 = vsub.f32 1.0, %v925
      %v966 = vsub.f32 1.0, %v940
      %969 = vrot.lane.b32.xlu0 %v963, 96
      %v970 = vpop.permute.xlu0 %969
      %971 = vrot.lane.b32.xlu0 %v964, 96
      %v972 = vpop.permute.xlu0 %971
      %v975 = vmul.f32 %v965, %v970
      %v976 = vmul.f32 %v966, %v972
      %v977 = vmul.f32 %v925, %v866
      %v978 = vmul.f32 %v940, %v867
      %v979 = vadd.f32 %v975, %v977
      %v980 = vadd.f32 %v976, %v978
      %983 = vrot.lane.b32.xlu0 %v979, 96
      %v984 = vpop.permute.xlu0 %983
      %985 = vrot.lane.b32.xlu0 %v980, 96
      %v986 = vpop.permute.xlu0 %985
      %v987 = vsel %vm299, %v984, 0
      %v989 = vsel %vm299, %v986, 0
      %991 = vmatpush.msra.mxu0 0.0
      %992 = vmatpush.msra.mxu0 0.0
      %993 = vmatpush.msra.mxu0 0.0
      %994 = vmatpush.msra.mxu0 0.0
      %995 = vmatpush.msra.mxu0 0.0
      %996 = vmatpush.msra.mxu0 0.0
      %997 = vmatpush.msra.mxu0 0.0
      %998 = vmatpush.msra.mxu0 0.0
      %999 = vmatpush.msra.mxu0 0.0
      %1000 = vmatpush.msra.mxu0 0.0
      %1001 = vmatpush.msra.mxu0 0.0
      %1002 = vmatpush.msra.mxu0 0.0
      %1003 = vmatpush.msra.mxu0 %v416
      %1004 = vmatpush.msra.mxu0 %v415
      %1005 = vmatpush.msra.mxu0 %v414
      %1006 = vmatpush.msra.mxu0 %v413
      %1007 = vmatmul.f32.gmra.mxu0 %v987
      %v1008 = vpop.f32.mrf.mxu0
      %v1009 = vadd.f32 0.0, %v1008
      %1010 = vmatmul.f32.gmra.mxu0 %v989
      %v1011 = vpop.f32.mrf.mxu0
      %v1012 = vadd.f32 0.0, %v1011
      %1013 = vdwg.mxu0
      %v1014 = vadd.f32 %v396, %v1009
      %v1015 = vadd.f32 %v399, %v1012
      %v1016 = vxor.u32 %v1014, 2147483648
      %v1017 = vxor.u32 %v1015, 2147483648
      %v1018 = vmul.f32 %v1016, 1.442695
      %v1019 = vpow.pop %v1018
      %v1020 = vmul.f32 %v1017, 1.442695
      %v1021 = vpow.pop %v1020
      %v1022 = vadd.f32 %v1019, 1.0
      %v1023 = vadd.f32 %v1021, 1.0
      %v1024 = vrcp.pop %v1022
      %v1025 = vmul.f32 %v1022, %v1024
      %v1026 = vsub.f32 1.0, %v1025
      %v1027 = vmul.f32 %v1024, %v1026
      %v1028 = vadd.f32 %v1024, %v1027
      %vm1029 = vweird.f32 %v1022
      %vm1030 = vweird.f32 %v1024
      %vm1031 = vmor %vm1029, %vm1030
      %v1032 = vsel %vm1031, %v1024, %v1028
      %v1033 = vand.u32 2147483647, %v1022
      %vm1034 = vcmp.eq.f32.partialorder %v1033, 8.507059e+37
      %v1035 = vand.u32 %v1022, 2147483648
      %v1036 = vor.u32 1.1754944e-38, %v1035
      %v1037 = vsel %vm1034, %v1036, %v1032
      %v1038 = vmul.f32 1.0, %v1037
      %v1039 = vrcp.pop %v1023
      %v1040 = vmul.f32 %v1023, %v1039
      %v1041 = vsub.f32 1.0, %v1040
      %v1042 = vmul.f32 %v1039, %v1041
      %v1043 = vadd.f32 %v1039, %v1042
      %vm1044 = vweird.f32 %v1023
      %vm1045 = vweird.f32 %v1039
      %vm1046 = vmor %vm1044, %vm1045
      %v1047 = vsel %vm1046, %v1039, %v1043
      %v1048 = vand.u32 2147483647, %v1023
      %vm1049 = vcmp.eq.f32.partialorder %v1048, 8.507059e+37
      %v1050 = vand.u32 %v1023, 2147483648
      %v1051 = vor.u32 1.1754944e-38, %v1050
      %v1052 = vsel %vm1049, %v1051, %v1047
      %v1053 = vmul.f32 1.0, %v1052
      %v1054 = vadd.f32 %v1009, %v487
      %v1055 = vadd.f32 %v1012, %v487
      %1058 = vrot.lane.b32.xlu0 %v1054, 64
      %v1059 = vpop.permute.xlu0 %1058
      %1060 = vrot.lane.b32.xlu0 %v1055, 64
      %v1061 = vpop.permute.xlu0 %1060
      %v1064 = vmul.f32 %v1038, %v1059
      %v1065 = vmul.f32 %v1053, %v1061
      %1068 = vrot.lane.b32.xlu0 %v1064, 64
      %v1069 = vpop.permute.xlu0 %1068
      %1070 = vrot.lane.b32.xlu0 %v1065, 64
      %v1071 = vpop.permute.xlu0 %1070
      %v1074 = vadd.f32 %v396, %v1069
      %v1075 = vadd.f32 %v399, %v1071
      %v1076 = vtanh.pop %v1074
      %v1077 = vtanh.pop %v1075
      %v1078 = vsub.f32 1.0, %v1038
      %v1079 = vsub.f32 1.0, %v1053
      %1082 = vrot.lane.b32.xlu0 %v1076, 96
      %v1083 = vpop.permute.xlu0 %1082
      %1084 = vrot.lane.b32.xlu0 %v1077, 96
      %v1085 = vpop.permute.xlu0 %1084
      %v1088 = vmul.f32 %v1078, %v1083
      %v1089 = vmul.f32 %v1079, %v1085
      %v1090 = vmul.f32 %v1038, %v979
      %v1091 = vmul.f32 %v1053, %v980
      %v1092 = vadd.f32 %v1088, %v1090
      %v1093 = vadd.f32 %v1089, %v1091
      %1096 = vrot.lane.b32.xlu0 %v1092, 96
      %v1097 = vpop.permute.xlu0 %1096
      %1098 = vrot.lane.b32.xlu0 %v1093, 96
      %v1099 = vpop.permute.xlu0 %1098
      %v1100 = vsel %vm299, %v1097, 0
      %v1102 = vsel %vm299, %v1099, 0
      %1104 = vmatpush.msra.mxu0 0.0
      %1105 = vmatpush.msra.mxu0 0.0
      %1106 = vmatpush.msra.mxu0 0.0
      %1107 = vmatpush.msra.mxu0 0.0
      %1108 = vmatpush.msra.mxu0 0.0
      %1109 = vmatpush.msra.mxu0 0.0
      %1110 = vmatpush.msra.mxu0 0.0
      %1111 = vmatpush.msra.mxu0 0.0
      %1112 = vmatpush.msra.mxu0 0.0
      %1113 = vmatpush.msra.mxu0 0.0
      %1114 = vmatpush.msra.mxu0 0.0
      %1115 = vmatpush.msra.mxu0 0.0
      %1116 = vmatpush.msra.mxu0 %v416
      %1117 = vmatpush.msra.mxu0 %v415
      %1118 = vmatpush.msra.mxu0 %v414
      %1119 = vmatpush.msra.mxu0 %v413
      %1120 = vmatmul.f32.gmra.mxu0 %v1100
      %v1121 = vpop.f32.mrf.mxu0
      %v1122 = vadd.f32 0.0, %v1121
      %1123 = vmatmul.f32.gmra.mxu0 %v1102
      %v1124 = vpop.f32.mrf.mxu0
      %v1125 = vadd.f32 0.0, %v1124
      %1126 = vdwg.mxu0
      %v1127 = vadd.f32 %v402, %v1122
      %v1128 = vadd.f32 %v405, %v1125
      %v1129 = vxor.u32 %v1127, 2147483648
      %v1130 = vxor.u32 %v1128, 2147483648
      %v1131 = vmul.f32 %v1129, 1.442695
      %v1132 = vpow.pop %v1131
      %v1133 = vmul.f32 %v1130, 1.442695
      %v1134 = vpow.pop %v1133
      %v1135 = vadd.f32 %v1132, 1.0
      %v1136 = vadd.f32 %v1134, 1.0
      %v1137 = vrcp.pop %v1135
      %v1138 = vmul.f32 %v1135, %v1137
      %v1139 = vsub.f32 1.0, %v1138
      %v1140 = vmul.f32 %v1137, %v1139
      %v1141 = vadd.f32 %v1137, %v1140
      %vm1142 = vweird.f32 %v1135
      %vm1143 = vweird.f32 %v1137
      %vm1144 = vmor %vm1142, %vm1143
      %v1145 = vsel %vm1144, %v1137, %v1141
      %v1146 = vand.u32 2147483647, %v1135
      %vm1147 = vcmp.eq.f32.partialorder %v1146, 8.507059e+37
      %v1148 = vand.u32 %v1135, 2147483648
      %v1149 = vor.u32 1.1754944e-38, %v1148
      %v1150 = vsel %vm1147, %v1149, %v1145
      %v1151 = vmul.f32 1.0, %v1150
      %v1152 = vrcp.pop %v1136
      %v1153 = vmul.f32 %v1136, %v1152
      %v1154 = vsub.f32 1.0, %v1153
      %v1155 = vmul.f32 %v1152, %v1154
      %v1156 = vadd.f32 %v1152, %v1155
      %vm1157 = vweird.f32 %v1136
      %vm1158 = vweird.f32 %v1152
      %vm1159 = vmor %vm1157, %vm1158
      %v1160 = vsel %vm1159, %v1152, %v1156
      %v1161 = vand.u32 2147483647, %v1136
      %vm1162 = vcmp.eq.f32.partialorder %v1161, 8.507059e+37
      %v1163 = vand.u32 %v1136, 2147483648
      %v1164 = vor.u32 1.1754944e-38, %v1163
      %v1165 = vsel %vm1162, %v1164, %v1160
      %v1166 = vmul.f32 1.0, %v1165
      %v1167 = vadd.f32 %v1122, %v487
      %v1168 = vadd.f32 %v1125, %v487
      %1171 = vrot.lane.b32.xlu0 %v1167, 64
      %v1172 = vpop.permute.xlu0 %1171
      %1173 = vrot.lane.b32.xlu0 %v1168, 64
      %v1174 = vpop.permute.xlu0 %1173
      %v1177 = vmul.f32 %v1151, %v1172
      %v1178 = vmul.f32 %v1166, %v1174
      %1181 = vrot.lane.b32.xlu0 %v1177, 64
      %v1182 = vpop.permute.xlu0 %1181
      %1183 = vrot.lane.b32.xlu0 %v1178, 64
      %v1184 = vpop.permute.xlu0 %1183
      %v1187 = vadd.f32 %v402, %v1182
      %v1188 = vadd.f32 %v405, %v1184
      %v1189 = vtanh.pop %v1187
      %v1190 = vtanh.pop %v1188
      %v1191 = vsub.f32 1.0, %v1151
      %v1192 = vsub.f32 1.0, %v1166
      %1195 = vrot.lane.b32.xlu0 %v1189, 96
      %v1196 = vpop.permute.xlu0 %1195
      %1197 = vrot.lane.b32.xlu0 %v1190, 96
      %v1198 = vpop.permute.xlu0 %1197
      %v1201 = vmul.f32 %v1191, %v1196
      %v1202 = vmul.f32 %v1192, %v1198
      %v1203 = vmul.f32 %v1151, %v1092
      %v1204 = vmul.f32 %v1166, %v1093
      %v1205 = vadd.f32 %v1201, %v1203
      %v1206 = vadd.f32 %v1202, %v1204
      %1209 = vrot.lane.b32.xlu0 %v1205, 96
      %v1210 = vpop.permute.xlu0 %1209
      %1211 = vrot.lane.b32.xlu0 %v1206, 96
      %v1212 = vpop.permute.xlu0 %1211
      %v1213 = vsel %vm299, %v1210, 0
      %v1215 = vsel %vm299, %v1212, 0
      %1217 = vmatpush.msra.mxu0 0.0
      %1218 = vmatpush.msra.mxu0 0.0
      %1219 = vmatpush.msra.mxu0 0.0
      %1220 = vmatpush.msra.mxu0 0.0
      %1221 = vmatpush.msra.mxu0 0.0
      %1222 = vmatpush.msra.mxu0 0.0
      %1223 = vmatpush.msra.mxu0 0.0
      %1224 = vmatpush.msra.mxu0 0.0
      %1225 = vmatpush.msra.mxu0 0.0
      %1226 = vmatpush.msra.mxu0 0.0
      %1227 = vmatpush.msra.mxu0 0.0
      %1228 = vmatpush.msra.mxu0 0.0
      %1229 = vmatpush.msra.mxu0 %v416
      %1230 = vmatpush.msra.mxu0 %v415
      %1231 = vmatpush.msra.mxu0 %v414
      %1232 = vmatpush.msra.mxu0 %v413
      %1233 = vmatmul.f32.gmra.mxu0 %v1213
      %v1234 = vpop.f32.mrf.mxu0
      %v1235 = vadd.f32 0.0, %v1234
      %1236 = vmatmul.f32.gmra.mxu0 %v1215
      %v1237 = vpop.f32.mrf.mxu0
      %v1238 = vadd.f32 0.0, %v1237
      %1239 = vdwg.mxu0
      %v1240 = vadd.f32 %v408, %v1235
      %v1241 = vadd.f32 %v411, %v1238
      %v1242 = vxor.u32 %v1240, 2147483648
      %v1243 = vxor.u32 %v1241, 2147483648
      %v1244 = vmul.f32 %v1242, 1.442695
      %v1245 = vpow.pop %v1244
      %v1246 = vmul.f32 %v1243, 1.442695
      %v1247 = vpow.pop %v1246
      %v1248 = vadd.f32 %v1245, 1.0
      %v1249 = vadd.f32 %v1247, 1.0
      %v1250 = vrcp.pop %v1248
      %v1251 = vmul.f32 %v1248, %v1250
      %v1252 = vsub.f32 1.0, %v1251
      %v1253 = vmul.f32 %v1250, %v1252
      %v1254 = vadd.f32 %v1250, %v1253
      %vm1255 = vweird.f32 %v1248
      %vm1256 = vweird.f32 %v1250
      %vm1257 = vmor %vm1255, %vm1256
      %v1258 = vsel %vm1257, %v1250, %v1254
      %v1259 = vand.u32 2147483647, %v1248
      %vm1260 = vcmp.eq.f32.partialorder %v1259, 8.507059e+37
      %v1261 = vand.u32 %v1248, 2147483648
      %v1262 = vor.u32 1.1754944e-38, %v1261
      %v1263 = vsel %vm1260, %v1262, %v1258
      %v1264 = vmul.f32 1.0, %v1263
      %v1265 = vrcp.pop %v1249
      %v1266 = vmul.f32 %v1249, %v1265
      %v1267 = vsub.f32 1.0, %v1266
      %v1268 = vmul.f32 %v1265, %v1267
      %v1269 = vadd.f32 %v1265, %v1268
      %vm1270 = vweird.f32 %v1249
      %vm1271 = vweird.f32 %v1265
      %vm1272 = vmor %vm1270, %vm1271
      %v1273 = vsel %vm1272, %v1265, %v1269
      %v1274 = vand.u32 2147483647, %v1249
      %vm1275 = vcmp.eq.f32.partialorder %v1274, 8.507059e+37
      %v1276 = vand.u32 %v1249, 2147483648
      %v1277 = vor.u32 1.1754944e-38, %v1276
      %v1278 = vsel %vm1275, %v1277, %v1273
      %v1279 = vmul.f32 1.0, %v1278
      %v1280 = vadd.f32 %v1235, %v487
      %v1281 = vadd.f32 %v1238, %v487
      %1284 = vrot.lane.b32.xlu0 %v1280, 64
      %v1285 = vpop.permute.xlu0 %1284
      %1286 = vrot.lane.b32.xlu0 %v1281, 64
      %v1287 = vpop.permute.xlu0 %1286
      %v1290 = vmul.f32 %v1264, %v1285
      %v1291 = vmul.f32 %v1279, %v1287
      %1294 = vrot.lane.b32.xlu0 %v1290, 64
      %v1295 = vpop.permute.xlu0 %1294
      %1296 = vrot.lane.b32.xlu0 %v1291, 64
      %v1297 = vpop.permute.xlu0 %1296
      %v1300 = vadd.f32 %v408, %v1295
      %v1301 = vadd.f32 %v411, %v1297
      %v1302 = vtanh.pop %v1300
      %v1303 = vtanh.pop %v1301
      %v1304 = vsub.f32 1.0, %v1264
      %v1305 = vsub.f32 1.0, %v1279
      %1308 = vrot.lane.b32.xlu0 %v1302, 96
      %v1309 = vpop.permute.xlu0 %1308
      %1310 = vrot.lane.b32.xlu0 %v1303, 96
      %v1311 = vpop.permute.xlu0 %1310
      %v1314 = vmul.f32 %v1304, %v1309
      %v1315 = vmul.f32 %v1305, %v1311
      %v1316 = vmul.f32 %v1264, %v1205
      %v1317 = vmul.f32 %v1279, %v1206
      %v1318 = vadd.f32 %v1314, %v1316
      %v1319 = vadd.f32 %v1315, %v1317
      %v1320 = vrot.slane %v527, 1
      %v1321 = vrot.slane %v527, 2
      %v1322 = vrot.slane %v527, 3
      %v1323 = vrot.slane %v527, 4
      %v1324 = vrot.slane %v527, 5
      %v1325 = vrot.slane %v527, 6
      %v1326 = vrot.slane %v527, 7
      %v1327 = vrot.slane %v528, 1
      %v1328 = vrot.slane %v528, 2
      %v1329 = vrot.slane %v528, 3
      %v1330 = vrot.slane %v528, 4
      %v1331 = vrot.slane %v528, 5
      %v1332 = vrot.slane %v528, 6
      %v1333 = vrot.slane %v528, 7
      %v1348 = vrot.slane %v640, 1
      %v1349 = vrot.slane %v640, 2
      %v1350 = vrot.slane %v640, 3
      %v1351 = vrot.slane %v640, 4
      %v1352 = vrot.slane %v640, 5
      %v1353 = vrot.slane %v640, 6
      %v1354 = vrot.slane %v640, 7
      %v1355 = vrot.slane %v641, 1
      %v1356 = vrot.slane %v641, 2
      %v1357 = vrot.slane %v641, 3
      %v1358 = vrot.slane %v641, 4
      %v1359 = vrot.slane %v641, 5
      %v1360 = vrot.slane %v641, 6
      %v1361 = vrot.slane %v641, 7
      %v1362 = vrot.slane %v753, 1
      %v1363 = vrot.slane %v753, 2
      %v1364 = vrot.slane %v753, 3
      %v1365 = vrot.slane %v753, 4
      %v1366 = vrot.slane %v753, 5
      %v1367 = vrot.slane %v753, 6
      %v1368 = vrot.slane %v753, 7
      %v1369 = vrot.slane %v754, 1
      %v1370 = vrot.slane %v754, 2
      %v1371 = vrot.slane %v754, 3
      %v1372 = vrot.slane %v754, 4
      %v1373 = vrot.slane %v754, 5
      %v1374 = vrot.slane %v754, 6
      %v1375 = vrot.slane %v754, 7
      %v1376 = vrot.slane %v866, 1
      %v1377 = vrot.slane %v866, 2
      %v1378 = vrot.slane %v866, 3
      %v1379 = vrot.slane %v866, 4
      %v1380 = vrot.slane %v866, 5
      %v1381 = vrot.slane %v866, 6
      %v1382 = vrot.slane %v866, 7
      %v1383 = vrot.slane %v867, 1
      %v1384 = vrot.slane %v867, 2
      %v1385 = vrot.slane %v867, 3
      %v1386 = vrot.slane %v867, 4
      %v1387 = vrot.slane %v867, 5
      %v1388 = vrot.slane %v867, 6
      %v1389 = vrot.slane %v867, 7
      %v1390 = vrot.slane %v979, 1
      %v1391 = vrot.slane %v979, 2
      %v1392 = vrot.slane %v979, 3
      %v1393 = vrot.slane %v979, 4
      %v1394 = vrot.slane %v979, 5
      %v1395 = vrot.slane %v979, 6
      %v1396 = vrot.slane %v979, 7
      %v1397 = vrot.slane %v980, 1
      %v1398 = vrot.slane %v980, 2
      %v1399 = vrot.slane %v980, 3
      %v1400 = vrot.slane %v980, 4
      %v1401 = vrot.slane %v980, 5
      %v1402 = vrot.slane %v980, 6
      %v1403 = vrot.slane %v980, 7
      %v1404 = vrot.slane %v1092, 1
      %v1405 = vrot.slane %v1092, 2
      %v1406 = vrot.slane %v1092, 3
      %v1407 = vrot.slane %v1092, 4
      %v1408 = vrot.slane %v1092, 5
      %v1409 = vrot.slane %v1092, 6
      %v1410 = vrot.slane %v1092, 7
      %v1411 = vrot.slane %v1093, 1
      %v1412 = vrot.slane %v1093, 2
      %v1413 = vrot.slane %v1093, 3
      %v1414 = vrot.slane %v1093, 4
      %v1415 = vrot.slane %v1093, 5
      %v1416 = vrot.slane %v1093, 6
      %v1417 = vrot.slane %v1093, 7
      %v1418 = vrot.slane %v1205, 1
      %v1419 = vrot.slane %v1205, 2
      %v1420 = vrot.slane %v1205, 3
      %v1421 = vrot.slane %v1205, 4
      %v1422 = vrot.slane %v1205, 5
      %v1423 = vrot.slane %v1205, 6
      %v1424 = vrot.slane %v1205, 7
      %v1425 = vrot.slane %v1206, 1
      %v1426 = vrot.slane %v1206, 2
      %v1427 = vrot.slane %v1206, 3
      %v1428 = vrot.slane %v1206, 4
      %v1429 = vrot.slane %v1206, 5
      %v1430 = vrot.slane %v1206, 6
      %v1431 = vrot.slane %v1206, 7
      %v1434 = vrot.slane %v1318, 1
      %v1435 = vrot.slane %v1318, 2
      %v1436 = vrot.slane %v1318, 3
      %v1437 = vrot.slane %v1318, 4
      %v1438 = vrot.slane %v1318, 5
      %v1439 = vrot.slane %v1318, 6
      %v1440 = vrot.slane %v1318, 7
      %v1441 = vrot.slane %v1319, 1
      %v1442 = vrot.slane %v1319, 2
      %v1443 = vrot.slane %v1319, 3
      %v1444 = vrot.slane %v1319, 4
      %v1445 = vrot.slane %v1319, 5
      %v1446 = vrot.slane %v1319, 6
      %v1447 = vrot.slane %v1319, 7
      %v1448 = vperm.slane %v640, 0
      %v1449 = vperm.slane %v1348, 0
      %v1450 = vperm.slane %v1349, 0
      %v1451 = vperm.slane %v1350, 0
      %v1452 = vperm.slane %v1351, 0
      %v1453 = vperm.slane %v1352, 0
      %v1454 = vperm.slane %v1353, 0
      %v1455 = vperm.slane %v1354, 0
      %v1456 = vperm.slane %v641, 0
      %v1457 = vperm.slane %v1355, 0
      %v1458 = vperm.slane %v1356, 0
      %v1459 = vperm.slane %v1357, 0
      %v1460 = vperm.slane %v1358, 0
      %v1461 = vperm.slane %v1359, 0
      %v1462 = vperm.slane %v1360, 0
      %v1463 = vperm.slane %v1361, 0
      %v1480 = vperm.slane %v753, 0
      %v1481 = vperm.slane %v1362, 0
      %v1482 = vperm.slane %v1363, 0
      %v1483 = vperm.slane %v1364, 0
      %v1484 = vperm.slane %v1365, 0
      %v1485 = vperm.slane %v1366, 0
      %v1486 = vperm.slane %v1367, 0
      %v1487 = vperm.slane %v1368, 0
      %v1488 = vperm.slane %v754, 0
      %v1489 = vperm.slane %v1369, 0
      %v1490 = vperm.slane %v1370, 0
      %v1491 = vperm.slane %v1371, 0
      %v1492 = vperm.slane %v1372, 0
      %v1493 = vperm.slane %v1373, 0
      %v1494 = vperm.slane %v1374, 0
      %v1495 = vperm.slane %v1375, 0
      %v1512 = vperm.slane %v866, 0
      %v1513 = vperm.slane %v1376, 0
      %v1514 = vperm.slane %v1377, 0
      %v1515 = vperm.slane %v1378, 0
      %v1516 = vperm.slane %v1379, 0
      %v1517 = vperm.slane %v1380, 0
      %v1518 = vperm.slane %v1381, 0
      %v1519 = vperm.slane %v1382, 0
      %v1520 = vperm.slane %v867, 0
      %v1521 = vperm.slane %v1383, 0
      %v1522 = vperm.slane %v1384, 0
      %v1523 = vperm.slane %v1385, 0
      %v1524 = vperm.slane %v1386, 0
      %v1525 = vperm.slane %v1387, 0
      %v1526 = vperm.slane %v1388, 0
      %v1527 = vperm.slane %v1389, 0
      %v1544 = vperm.slane %v979, 0
      %v1545 = vperm.slane %v1390, 0
      %v1546 = vperm.slane %v1391, 0
      %v1547 = vperm.slane %v1392, 0
      %v1548 = vperm.slane %v1393, 0
      %v1549 = vperm.slane %v1394, 0
      %v1550 = vperm.slane %v1395, 0
      %v1551 = vperm.slane %v1396, 0
      %v1552 = vperm.slane %v980, 0
      %v1553 = vperm.slane %v1397, 0
      %v1554 = vperm.slane %v1398, 0
      %v1555 = vperm.slane %v1399, 0
      %v1556 = vperm.slane %v1400, 0
      %v1557 = vperm.slane %v1401, 0
      %v1558 = vperm.slane %v1402, 0
      %v1559 = vperm.slane %v1403, 0
      %v1576 = vperm.slane %v1092, 0
      %v1577 = vperm.slane %v1404, 0
      %v1578 = vperm.slane %v1405, 0
      %v1579 = vperm.slane %v1406, 0
      %v1580 = vperm.slane %v1407, 0
      %v1581 = vperm.slane %v1408, 0
      %v1582 = vperm.slane %v1409, 0
      %v1583 = vperm.slane %v1410, 0
      %v1584 = vperm.slane %v1093, 0
      %v1585 = vperm.slane %v1411, 0
      %v1586 = vperm.slane %v1412, 0
      %v1587 = vperm.slane %v1413, 0
      %v1588 = vperm.slane %v1414, 0
      %v1589 = vperm.slane %v1415, 0
      %v1590 = vperm.slane %v1416, 0
      %v1591 = vperm.slane %v1417, 0
      %v1608 = vperm.slane %v1205, 0
      %v1609 = vperm.slane %v1418, 0
      %v1610 = vperm.slane %v1419, 0
      %v1611 = vperm.slane %v1420, 0
      %v1612 = vperm.slane %v1421, 0
      %v1613 = vperm.slane %v1422, 0
      %v1614 = vperm.slane %v1423, 0
      %v1615 = vperm.slane %v1424, 0
      %v1616 = vperm.slane %v1206, 0
      %v1617 = vperm.slane %v1425, 0
      %v1618 = vperm.slane %v1426, 0
      %v1619 = vperm.slane %v1427, 0
      %v1620 = vperm.slane %v1428, 0
      %v1621 = vperm.slane %v1429, 0
      %v1622 = vperm.slane %v1430, 0
      %v1623 = vperm.slane %v1431, 0
      %v1640 = vperm.slane %v1318, 0
      %v1641 = vperm.slane %v1434, 0
      %v1642 = vperm.slane %v1435, 0
      %v1643 = vperm.slane %v1436, 0
      %v1644 = vperm.slane %v1437, 0
      %v1645 = vperm.slane %v1438, 0
      %v1646 = vperm.slane %v1439, 0
      %v1647 = vperm.slane %v1440, 0
      %v1648 = vperm.slane %v1319, 0
      %v1649 = vperm.slane %v1441, 0
      %v1650 = vperm.slane %v1442, 0
      %v1651 = vperm.slane %v1443, 0
      %v1652 = vperm.slane %v1444, 0
      %v1653 = vperm.slane %v1445, 0
      %v1654 = vperm.slane %v1446, 0
      %v1655 = vperm.slane %v1447, 0
      %vm1672 = vcmask 1040384
      %v1673 = vsel %vm1672, %v527, %v1448
      %v1674 = vsel %vm1672, %v1320, %v1449
      %v1675 = vsel %vm1672, %v1321, %v1450
      %v1676 = vsel %vm1672, %v1322, %v1451
      %v1677 = vsel %vm1672, %v1323, %v1452
      %v1678 = vsel %vm1672, %v1324, %v1453
      %v1679 = vsel %vm1672, %v1325, %v1454
      %v1680 = vsel %vm1672, %v1326, %v1455
      %v1681 = vsel %vm1672, %v528, %v1456
      %v1682 = vsel %vm1672, %v1327, %v1457
      %v1683 = vsel %vm1672, %v1328, %v1458
      %v1684 = vsel %vm1672, %v1329, %v1459
      %v1685 = vsel %vm1672, %v1330, %v1460
      %v1686 = vsel %vm1672, %v1331, %v1461
      %v1687 = vsel %vm1672, %v1332, %v1462
      %v1688 = vsel %vm1672, %v1333, %v1463
      %vm1689 = vcmask 1041408
      %v1690 = vsel %vm1689, %v1673, %v1480
      %v1691 = vsel %vm1689, %v1674, %v1481
      %v1692 = vsel %vm1689, %v1675, %v1482
      %v1693 = vsel %vm1689, %v1676, %v1483
      %v1694 = vsel %vm1689, %v1677, %v1484
      %v1695 = vsel %vm1689, %v1678, %v1485
      %v1696 = vsel %vm1689, %v1679, %v1486
      %v1697 = vsel %vm1689, %v1680, %v1487
      %v1698 = vsel %vm1689, %v1681, %v1488
      %v1699 = vsel %vm1689, %v1682, %v1489
      %v1700 = vsel %vm1689, %v1683, %v1490
      %v1701 = vsel %vm1689, %v1684, %v1491
      %v1702 = vsel %vm1689, %v1685, %v1492
      %v1703 = vsel %vm1689, %v1686, %v1493
      %v1704 = vsel %vm1689, %v1687, %v1494
      %v1705 = vsel %vm1689, %v1688, %v1495
      %vm1706 = vcmask 1042432
      %v1707 = vsel %vm1706, %v1690, %v1512
      %v1708 = vsel %vm1706, %v1691, %v1513
      %v1709 = vsel %vm1706, %v1692, %v1514
      %v1710 = vsel %vm1706, %v1693, %v1515
      %v1711 = vsel %vm1706, %v1694, %v1516
      %v1712 = vsel %vm1706, %v1695, %v1517
      %v1713 = vsel %vm1706, %v1696, %v1518
      %v1714 = vsel %vm1706, %v1697, %v1519
      %v1715 = vsel %vm1706, %v1698, %v1520
      %v1716 = vsel %vm1706, %v1699, %v1521
      %v1717 = vsel %vm1706, %v1700, %v1522
      %v1718 = vsel %vm1706, %v1701, %v1523
      %v1719 = vsel %vm1706, %v1702, %v1524
      %v1720 = vsel %vm1706, %v1703, %v1525
      %v1721 = vsel %vm1706, %v1704, %v1526
      %v1722 = vsel %vm1706, %v1705, %v1527
      %vm1723 = vcmask 1043456
      %v1724 = vsel %vm1723, %v1707, %v1544
      %v1725 = vsel %vm1723, %v1708, %v1545
      %v1726 = vsel %vm1723, %v1709, %v1546
      %v1727 = vsel %vm1723, %v1710, %v1547
      %v1728 = vsel %vm1723, %v1711, %v1548
      %v1729 = vsel %vm1723, %v1712, %v1549
      %v1730 = vsel %vm1723, %v1713, %v1550
      %v1731 = vsel %vm1723, %v1714, %v1551
      %v1732 = vsel %vm1723, %v1715, %v1552
      %v1733 = vsel %vm1723, %v1716, %v1553
      %v1734 = vsel %vm1723, %v1717, %v1554
      %v1735 = vsel %vm1723, %v1718, %v1555
      %v1736 = vsel %vm1723, %v1719, %v1556
      %v1737 = vsel %vm1723, %v1720, %v1557
      %v1738 = vsel %vm1723, %v1721, %v1558
      %v1739 = vsel %vm1723, %v1722, %v1559
      %vm1740 = vcmask 1044480
      %v1741 = vsel %vm1740, %v1724, %v1576
      %v1742 = vsel %vm1740, %v1725, %v1577
      %v1743 = vsel %vm1740, %v1726, %v1578
      %v1744 = vsel %vm1740, %v1727, %v1579
      %v1745 = vsel %vm1740, %v1728, %v1580
      %v1746 = vsel %vm1740, %v1729, %v1581
      %v1747 = vsel %vm1740, %v1730, %v1582
      %v1748 = vsel %vm1740, %v1731, %v1583
      %v1749 = vsel %vm1740, %v1732, %v1584
      %v1750 = vsel %vm1740, %v1733, %v1585
      %v1751 = vsel %vm1740, %v1734, %v1586
      %v1752 = vsel %vm1740, %v1735, %v1587
      %v1753 = vsel %vm1740, %v1736, %v1588
      %v1754 = vsel %vm1740, %v1737, %v1589
      %v1755 = vsel %vm1740, %v1738, %v1590
      %v1756 = vsel %vm1740, %v1739, %v1591
      %vm1757 = vcmask 1045504
      %v1758 = vsel %vm1757, %v1741, %v1608
      %v1759 = vsel %vm1757, %v1742, %v1609
      %v1760 = vsel %vm1757, %v1743, %v1610
      %v1761 = vsel %vm1757, %v1744, %v1611
      %v1762 = vsel %vm1757, %v1745, %v1612
      %v1763 = vsel %vm1757, %v1746, %v1613
      %v1764 = vsel %vm1757, %v1747, %v1614
      %v1765 = vsel %vm1757, %v1748, %v1615
      %v1766 = vsel %vm1757, %v1749, %v1616
      %v1767 = vsel %vm1757, %v1750, %v1617
      %v1768 = vsel %vm1757, %v1751, %v1618
      %v1769 = vsel %vm1757, %v1752, %v1619
      %v1770 = vsel %vm1757, %v1753, %v1620
      %v1771 = vsel %vm1757, %v1754, %v1621
      %v1772 = vsel %vm1757, %v1755, %v1622
      %v1773 = vsel %vm1757, %v1756, %v1623
      %vm1774 = vcmask 1046528
      %v1775 = vsel %vm1774, %v1758, %v1640
      %v1776 = vsel %vm1774, %v1759, %v1641
      %v1777 = vsel %vm1774, %v1760, %v1642
      %v1778 = vsel %vm1774, %v1761, %v1643
      %v1779 = vsel %vm1774, %v1762, %v1644
      %v1780 = vsel %vm1774, %v1763, %v1645
      %v1781 = vsel %vm1774, %v1764, %v1646
      %v1782 = vsel %vm1774, %v1765, %v1647
      %v1783 = vsel %vm1774, %v1766, %v1648
      %v1784 = vsel %vm1774, %v1767, %v1649
      %v1785 = vsel %vm1774, %v1768, %v1650
      %v1786 = vsel %vm1774, %v1769, %v1651
      %v1787 = vsel %vm1774, %v1770, %v1652
      %v1788 = vsel %vm1774, %v1771, %v1653
      %v1789 = vsel %vm1774, %v1772, %v1654
      %v1790 = vsel %vm1774, %v1773, %v1655
      %v1791 = vld [vmem:[%s269] sm:$0xff]
      %v1792 = vld [vmem:[%s269 + $0x8] sm:$0xff]
      %v1793 = vld [vmem:[%s269 + $0x10] sm:$0xff]
      %v1794 = vld [vmem:[%s269 + $0x18] sm:$0xff]
      %v1795 = vld [vmem:[%s269 + $0x20] sm:$0xff]
      %v1796 = vld [vmem:[%s269 + $0x28] sm:$0xff]
      %v1797 = vld [vmem:[%s269 + $0x30] sm:$0xff]
      %v1798 = vld [vmem:[%s269 + $0x38] sm:$0xff]
      %v1799 = vld [vmem:[%s269 + $0x40] sm:$0xff]
      %v1800 = vld [vmem:[%s269 + $0x48] sm:$0xff]
      %v1801 = vld [vmem:[%s269 + $0x50] sm:$0xff]
      %v1802 = vld [vmem:[%s269 + $0x58] sm:$0xff]
      %v1803 = vld [vmem:[%s269 + $0x60] sm:$0xff]
      %v1804 = vld [vmem:[%s269 + $0x68] sm:$0xff]
      %v1805 = vld [vmem:[%s269 + $0x70] sm:$0xff]
      %v1806 = vld [vmem:[%s269 + $0x78] sm:$0xff]
      %v1807 = vld [vmem:[%s269 + $0x80] sm:$0xff]
      %v1808 = vld [vmem:[%s269 + $0x88] sm:$0xff]
      %v1809 = vld [vmem:[%s269 + $0x90] sm:$0xff]
      %v1810 = vld [vmem:[%s269 + $0x98] sm:$0xff]
      %v1811 = vld [vmem:[%s269 + $0xa0] sm:$0xff]
      %v1812 = vld [vmem:[%s269 + $0xa8] sm:$0xff]
      %v1813 = vld [vmem:[%s269 + $0xb0] sm:$0xff]
      %v1814 = vld [vmem:[%s269 + $0xb8] sm:$0xff]
      %v1815 = vld [vmem:[%s269 + $0xc0] sm:$0xff]
      %v1816 = vld [vmem:[%s269 + $0xc8] sm:$0xff]
      %v1817 = vld [vmem:[%s269 + $0xd0] sm:$0xff]
      %v1818 = vld [vmem:[%s269 + $0xd8] sm:$0xff]
      %v1819 = vld [vmem:[%s269 + $0xe0] sm:$0xff]
      %v1820 = vld [vmem:[%s269 + $0xe8] sm:$0xff]
      %v1821 = vld [vmem:[%s269 + $0xf0] sm:$0xff]
      %v1822 = vld [vmem:[%s269 + $0xf8] sm:$0xff]
      %v1823 = vld [vmem:[%s269 + $0x100] sm:$0xff]
      %v1824 = vld [vmem:[%s269 + $0x108] sm:$0xff]
      %v1825 = vld [vmem:[%s269 + $0x110] sm:$0xff]
      %v1826 = vld [vmem:[%s269 + $0x118] sm:$0xff]
      %v1827 = vld [vmem:[%s269 + $0x120] sm:$0xff]
      %v1828 = vld [vmem:[%s269 + $0x128] sm:$0xff]
      %v1829 = vld [vmem:[%s269 + $0x130] sm:$0xff]
      %v1830 = vld [vmem:[%s269 + $0x138] sm:$0xff]
      %v1831 = vld [vmem:[%s269 + $0x140] sm:$0xff]
      %v1832 = vld [vmem:[%s269 + $0x148] sm:$0xff]
      %v1833 = vld [vmem:[%s269 + $0x150] sm:$0xff]
      %v1834 = vld [vmem:[%s269 + $0x158] sm:$0xff]
      %v1835 = vld [vmem:[%s269 + $0x160] sm:$0xff]
      %v1836 = vld [vmem:[%s269 + $0x168] sm:$0xff]
      %v1837 = vld [vmem:[%s269 + $0x170] sm:$0xff]
      %v1838 = vld [vmem:[%s269 + $0x178] sm:$0xff]
      %v1839 = vld [vmem:[%s269 + $0x180] sm:$0xff]
      %v1840 = vld [vmem:[%s269 + $0x188] sm:$0xff]
      %v1841 = vld [vmem:[%s269 + $0x190] sm:$0xff]
      %v1842 = vld [vmem:[%s269 + $0x198] sm:$0xff]
      %v1843 = vld [vmem:[%s269 + $0x1a0] sm:$0xff]
      %v1844 = vld [vmem:[%s269 + $0x1a8] sm:$0xff]
      %v1845 = vld [vmem:[%s269 + $0x1b0] sm:$0xff]
      %v1846 = vld [vmem:[%s269 + $0x1b8] sm:$0xff]
      %v1847 = vld [vmem:[%s269 + $0x1c0] sm:$0xff]
      %v1848 = vld [vmem:[%s269 + $0x1c8] sm:$0xff]
      %v1849 = vld [vmem:[%s269 + $0x1d0] sm:$0xff]
      %v1850 = vld [vmem:[%s269 + $0x1d8] sm:$0xff]
      %v1851 = vld [vmem:[%s269 + $0x1e0] sm:$0xff]
      %v1852 = vld [vmem:[%s269 + $0x1e8] sm:$0xff]
      %v1853 = vld [vmem:[%s269 + $0x1f0] sm:$0xff]
      %v1854 = vld [vmem:[%s269 + $0x1f8] sm:$0xff]
      %1856 = vrot.lane.b32.xlu0 %v1775, 96
      %v1857 = vpop.permute.xlu0 %1856
      %v1858 = vsel %vm299, %v1857, 0
      %1860 = vmatpush.msra.mxu0 0.0
      %1861 = vmatpush.msra.mxu0 0.0
      %1862 = vmatpush.msra.mxu0 0.0
      %1863 = vmatpush.msra.mxu0 0.0
      %1864 = vmatpush.msra.mxu0 0.0
      %1865 = vmatpush.msra.mxu0 0.0
      %1866 = vmatpush.msra.mxu0 0.0
      %1867 = vmatpush.msra.mxu0 0.0
      %1868 = vmatpush.msra.mxu0 0.0
      %1869 = vmatpush.msra.mxu0 0.0
      %1870 = vmatpush.msra.mxu0 0.0
      %1871 = vmatpush.msra.mxu0 0.0
      %1872 = vmatpush.msra.mxu0 %v1794
      %1873 = vmatpush.msra.mxu0 %v1793
      %1874 = vmatpush.msra.mxu0 %v1792
      %1875 = vmatpush.msra.mxu0 %v1791
      %1876 = vmatmul.f32.gmra.mxu0 %v1858
      %v1877 = vpop.f32.mrf.mxu0
      %v1878 = vadd.f32 0.0, %v1877
      %1879 = vdwg.mxu0
      %1881 = vrot.lane.b32.xlu0 %v1776, 96
      %v1882 = vpop.permute.xlu0 %1881
      %v1883 = vsel %vm299, %v1882, 0
      %1885 = vmatpush.msra.mxu0 0.0
      %1886 = vmatpush.msra.mxu0 0.0
      %1887 = vmatpush.msra.mxu0 0.0
      %1888 = vmatpush.msra.mxu0 0.0
      %1889 = vmatpush.msra.mxu0 0.0
      %1890 = vmatpush.msra.mxu0 0.0
      %1891 = vmatpush.msra.mxu0 0.0
      %1892 = vmatpush.msra.mxu0 0.0
      %1893 = vmatpush.msra.mxu0 0.0
      %1894 = vmatpush.msra.mxu0 0.0
      %1895 = vmatpush.msra.mxu0 0.0
      %1896 = vmatpush.msra.mxu0 0.0
      %1897 = vmatpush.msra.mxu0 %v1798
      %1898 = vmatpush.msra.mxu0 %v1797
      %1899 = vmatpush.msra.mxu0 %v1796
      %1900 = vmatpush.msra.mxu0 %v1795
      %1901 = vmatmul.f32.gmra.mxu0 %v1883
      %v1902 = vpop.f32.mrf.mxu0
      %v1903 = vadd.f32 0.0, %v1902
      %1904 = vdwg.mxu0
      %1906 = vrot.lane.b32.xlu0 %v1777, 96
      %v1907 = vpop.permute.xlu0 %1906
      %v1908 = vsel %vm299, %v1907, 0
      %1910 = vmatpush.msra.mxu0 0.0
      %1911 = vmatpush.msra.mxu0 0.0
      %1912 = vmatpush.msra.mxu0 0.0
      %1913 = vmatpush.msra.mxu0 0.0
      %1914 = vmatpush.msra.mxu0 0.0
      %1915 = vmatpush.msra.mxu0 0.0
      %1916 = vmatpush.msra.mxu0 0.0
      %1917 = vmatpush.msra.mxu0 0.0
      %1918 = vmatpush.msra.mxu0 0.0
      %1919 = vmatpush.msra.mxu0 0.0
      %1920 = vmatpush.msra.mxu0 0.0
      %1921 = vmatpush.msra.mxu0 0.0
      %1922 = vmatpush.msra.mxu0 %v1802
      %1923 = vmatpush.msra.mxu0 %v1801
      %1924 = vmatpush.msra.mxu0 %v1800
      %1925 = vmatpush.msra.mxu0 %v1799
      %1926 = vmatmul.f32.gmra.mxu0 %v1908
      %v1927 = vpop.f32.mrf.mxu0
      %v1928 = vadd.f32 0.0, %v1927
      %1929 = vdwg.mxu0
      %1931 = vrot.lane.b32.xlu0 %v1778, 96
      %v1932 = vpop.permute.xlu0 %1931
      %v1933 = vsel %vm299, %v1932, 0
      %1935 = vmatpush.msra.mxu0 0.0
      %1936 = vmatpush.msra.mxu0 0.0
      %1937 = vmatpush.msra.mxu0 0.0
      %1938 = vmatpush.msra.mxu0 0.0
      %1939 = vmatpush.msra.mxu0 0.0
      %1940 = vmatpush.msra.mxu0 0.0
      %1941 = vmatpush.msra.mxu0 0.0
      %1942 = vmatpush.msra.mxu0 0.0
      %1943 = vmatpush.msra.mxu0 0.0
      %1944 = vmatpush.msra.mxu0 0.0
      %1945 = vmatpush.msra.mxu0 0.0
      %1946 = vmatpush.msra.mxu0 0.0
      %1947 = vmatpush.msra.mxu0 %v1806
      %1948 = vmatpush.msra.mxu0 %v1805
      %1949 = vmatpush.msra.mxu0 %v1804
      %1950 = vmatpush.msra.mxu0 %v1803
      %1951 = vmatmul.f32.gmra.mxu0 %v1933
      %v1952 = vpop.f32.mrf.mxu0
      %v1953 = vadd.f32 0.0, %v1952
      %1954 = vdwg.mxu0
      %1956 = vrot.lane.b32.xlu0 %v1779, 96
      %v1957 = vpop.permute.xlu0 %1956
      %v1958 = vsel %vm299, %v1957, 0
      %1960 = vmatpush.msra.mxu0 0.0
      %1961 = vmatpush.msra.mxu0 0.0
      %1962 = vmatpush.msra.mxu0 0.0
      %1963 = vmatpush.msra.mxu0 0.0
      %1964 = vmatpush.msra.mxu0 0.0
      %1965 = vmatpush.msra.mxu0 0.0
      %1966 = vmatpush.msra.mxu0 0.0
      %1967 = vmatpush.msra.mxu0 0.0
      %1968 = vmatpush.msra.mxu0 0.0
      %1969 = vmatpush.msra.mxu0 0.0
      %1970 = vmatpush.msra.mxu0 0.0
      %1971 = vmatpush.msra.mxu0 0.0
      %1972 = vmatpush.msra.mxu0 %v1810
      %1973 = vmatpush.msra.mxu0 %v1809
      %1974 = vmatpush.msra.mxu0 %v1808
      %1975 = vmatpush.msra.mxu0 %v1807
      %1976 = vmatmul.f32.gmra.mxu0 %v1958
      %v1977 = vpop.f32.mrf.mxu0
      %v1978 = vadd.f32 0.0, %v1977
      %1979 = vdwg.mxu0
      %1981 = vrot.lane.b32.xlu0 %v1780, 96
      %v1982 = vpop.permute.xlu0 %1981
      %v1983 = vsel %vm299, %v1982, 0
      %1985 = vmatpush.msra.mxu0 0.0
      %1986 = vmatpush.msra.mxu0 0.0
      %1987 = vmatpush.msra.mxu0 0.0
      %1988 = vmatpush.msra.mxu0 0.0
      %1989 = vmatpush.msra.mxu0 0.0
      %1990 = vmatpush.msra.mxu0 0.0
      %1991 = vmatpush.msra.mxu0 0.0
      %1992 = vmatpush.msra.mxu0 0.0
      %1993 = vmatpush.msra.mxu0 0.0
      %1994 = vmatpush.msra.mxu0 0.0
      %1995 = vmatpush.msra.mxu0 0.0
      %1996 = vmatpush.msra.mxu0 0.0
      %1997 = vmatpush.msra.mxu0 %v1814
      %1998 = vmatpush.msra.mxu0 %v1813
      %1999 = vmatpush.msra.mxu0 %v1812
      %2000 = vmatpush.msra.mxu0 %v1811
      %2001 = vmatmul.f32.gmra.mxu0 %v1983
      %v2002 = vpop.f32.mrf.mxu0
      %v2003 = vadd.f32 0.0, %v2002
      %2004 = vdwg.mxu0
      %2006 = vrot.lane.b32.xlu0 %v1781, 96
      %v2007 = vpop.permute.xlu0 %2006
      %v2008 = vsel %vm299, %v2007, 0
      %2010 = vmatpush.msra.mxu0 0.0
      %2011 = vmatpush.msra.mxu0 0.0
      %2012 = vmatpush.msra.mxu0 0.0
      %2013 = vmatpush.msra.mxu0 0.0
      %2014 = vmatpush.msra.mxu0 0.0
      %2015 = vmatpush.msra.mxu0 0.0
      %2016 = vmatpush.msra.mxu0 0.0
      %2017 = vmatpush.msra.mxu0 0.0
      %2018 = vmatpush.msra.mxu0 0.0
      %2019 = vmatpush.msra.mxu0 0.0
      %2020 = vmatpush.msra.mxu0 0.0
      %2021 = vmatpush.msra.mxu0 0.0
      %2022 = vmatpush.msra.mxu0 %v1818
      %2023 = vmatpush.msra.mxu0 %v1817
      %2024 = vmatpush.msra.mxu0 %v1816
      %2025 = vmatpush.msra.mxu0 %v1815
      %2026 = vmatmul.f32.gmra.mxu0 %v2008
      %v2027 = vpop.f32.mrf.mxu0
      %v2028 = vadd.f32 0.0, %v2027
      %2029 = vdwg.mxu0
      %2031 = vrot.lane.b32.xlu0 %v1782, 96
      %v2032 = vpop.permute.xlu0 %2031
      %v2033 = vsel %vm299, %v2032, 0
      %2035 = vmatpush.msra.mxu0 0.0
      %2036 = vmatpush.msra.mxu0 0.0
      %2037 = vmatpush.msra.mxu0 0.0
      %2038 = vmatpush.msra.mxu0 0.0
      %2039 = vmatpush.msra.mxu0 0.0
      %2040 = vmatpush.msra.mxu0 0.0
      %2041 = vmatpush.msra.mxu0 0.0
      %2042 = vmatpush.msra.mxu0 0.0
      %2043 = vmatpush.msra.mxu0 0.0
      %2044 = vmatpush.msra.mxu0 0.0
      %2045 = vmatpush.msra.mxu0 0.0
      %2046 = vmatpush.msra.mxu0 0.0
      %2047 = vmatpush.msra.mxu0 %v1822
      %2048 = vmatpush.msra.mxu0 %v1821
      %2049 = vmatpush.msra.mxu0 %v1820
      %2050 = vmatpush.msra.mxu0 %v1819
      %2051 = vmatmul.f32.gmra.mxu0 %v2033
      %v2052 = vpop.f32.mrf.mxu0
      %v2053 = vadd.f32 0.0, %v2052
      %2054 = vdwg.mxu0
      %2056 = vrot.lane.b32.xlu0 %v1783, 96
      %v2057 = vpop.permute.xlu0 %2056
      %v2058 = vsel %vm299, %v2057, 0
      %2060 = vmatpush.msra.mxu0 0.0
      %2061 = vmatpush.msra.mxu0 0.0
      %2062 = vmatpush.msra.mxu0 0.0
      %2063 = vmatpush.msra.mxu0 0.0
      %2064 = vmatpush.msra.mxu0 0.0
      %2065 = vmatpush.msra.mxu0 0.0
      %2066 = vmatpush.msra.mxu0 0.0
      %2067 = vmatpush.msra.mxu0 0.0
      %2068 = vmatpush.msra.mxu0 0.0
      %2069 = vmatpush.msra.mxu0 0.0
      %2070 = vmatpush.msra.mxu0 0.0
      %2071 = vmatpush.msra.mxu0 0.0
      %2072 = vmatpush.msra.mxu0 %v1826
      %2073 = vmatpush.msra.mxu0 %v1825
      %2074 = vmatpush.msra.mxu0 %v1824
      %2075 = vmatpush.msra.mxu0 %v1823
      %2076 = vmatmul.f32.gmra.mxu0 %v2058
      %v2077 = vpop.f32.mrf.mxu0
      %v2078 = vadd.f32 0.0, %v2077
      %2079 = vdwg.mxu0
      %2081 = vrot.lane.b32.xlu0 %v1784, 96
      %v2082 = vpop.permute.xlu0 %2081
      %v2083 = vsel %vm299, %v2082, 0
      %2085 = vmatpush.msra.mxu0 0.0
      %2086 = vmatpush.msra.mxu0 0.0
      %2087 = vmatpush.msra.mxu0 0.0
      %2088 = vmatpush.msra.mxu0 0.0
      %2089 = vmatpush.msra.mxu0 0.0
      %2090 = vmatpush.msra.mxu0 0.0
      %2091 = vmatpush.msra.mxu0 0.0
      %2092 = vmatpush.msra.mxu0 0.0
      %2093 = vmatpush.msra.mxu0 0.0
      %2094 = vmatpush.msra.mxu0 0.0
      %2095 = vmatpush.msra.mxu0 0.0
      %2096 = vmatpush.msra.mxu0 0.0
      %2097 = vmatpush.msra.mxu0 %v1830
      %2098 = vmatpush.msra.mxu0 %v1829
      %2099 = vmatpush.msra.mxu0 %v1828
      %2100 = vmatpush.msra.mxu0 %v1827
      %2101 = vmatmul.f32.gmra.mxu0 %v2083
      %v2102 = vpop.f32.mrf.mxu0
      %v2103 = vadd.f32 0.0, %v2102
      %2104 = vdwg.mxu0
      %2106 = vrot.lane.b32.xlu0 %v1785, 96
      %v2107 = vpop.permute.xlu0 %2106
      %v2108 = vsel %vm299, %v2107, 0
      %2110 = vmatpush.msra.mxu0 0.0
      %2111 = vmatpush.msra.mxu0 0.0
      %2112 = vmatpush.msra.mxu0 0.0
      %2113 = vmatpush.msra.mxu0 0.0
      %2114 = vmatpush.msra.mxu0 0.0
      %2115 = vmatpush.msra.mxu0 0.0
      %2116 = vmatpush.msra.mxu0 0.0
      %2117 = vmatpush.msra.mxu0 0.0
      %2118 = vmatpush.msra.mxu0 0.0
      %2119 = vmatpush.msra.mxu0 0.0
      %2120 = vmatpush.msra.mxu0 0.0
      %2121 = vmatpush.msra.mxu0 0.0
      %2122 = vmatpush.msra.mxu0 %v1834
      %2123 = vmatpush.msra.mxu0 %v1833
      %2124 = vmatpush.msra.mxu0 %v1832
      %2125 = vmatpush.msra.mxu0 %v1831
      %2126 = vmatmul.f32.gmra.mxu0 %v2108
      %v2127 = vpop.f32.mrf.mxu0
      %v2128 = vadd.f32 0.0, %v2127
      %2129 = vdwg.mxu0
      %2131 = vrot.lane.b32.xlu0 %v1786, 96
      %v2132 = vpop.permute.xlu0 %2131
      %v2133 = vsel %vm299, %v2132, 0
      %2135 = vmatpush.msra.mxu0 0.0
      %2136 = vmatpush.msra.mxu0 0.0
      %2137 = vmatpush.msra.mxu0 0.0
      %2138 = vmatpush.msra.mxu0 0.0
      %2139 = vmatpush.msra.mxu0 0.0
      %2140 = vmatpush.msra.mxu0 0.0
      %2141 = vmatpush.msra.mxu0 0.0
      %2142 = vmatpush.msra.mxu0 0.0
      %2143 = vmatpush.msra.mxu0 0.0
      %2144 = vmatpush.msra.mxu0 0.0
      %2145 = vmatpush.msra.mxu0 0.0
      %2146 = vmatpush.msra.mxu0 0.0
      %2147 = vmatpush.msra.mxu0 %v1838
      %2148 = vmatpush.msra.mxu0 %v1837
      %2149 = vmatpush.msra.mxu0 %v1836
      %2150 = vmatpush.msra.mxu0 %v1835
      %2151 = vmatmul.f32.gmra.mxu0 %v2133
      %v2152 = vpop.f32.mrf.mxu0
      %v2153 = vadd.f32 0.0, %v2152
      %2154 = vdwg.mxu0
      %2156 = vrot.lane.b32.xlu0 %v1787, 96
      %v2157 = vpop.permute.xlu0 %2156
      %v2158 = vsel %vm299, %v2157, 0
      %2160 = vmatpush.msra.mxu0 0.0
      %2161 = vmatpush.msra.mxu0 0.0
      %2162 = vmatpush.msra.mxu0 0.0
      %2163 = vmatpush.msra.mxu0 0.0
      %2164 = vmatpush.msra.mxu0 0.0
      %2165 = vmatpush.msra.mxu0 0.0
      %2166 = vmatpush.msra.mxu0 0.0
      %2167 = vmatpush.msra.mxu0 0.0
      %2168 = vmatpush.msra.mxu0 0.0
      %2169 = vmatpush.msra.mxu0 0.0
      %2170 = vmatpush.msra.mxu0 0.0
      %2171 = vmatpush.msra.mxu0 0.0
      %2172 = vmatpush.msra.mxu0 %v1842
      %2173 = vmatpush.msra.mxu0 %v1841
      %2174 = vmatpush.msra.mxu0 %v1840
      %2175 = vmatpush.msra.mxu0 %v1839
      %2176 = vmatmul.f32.gmra.mxu0 %v2158
      %v2177 = vpop.f32.mrf.mxu0
      %v2178 = vadd.f32 0.0, %v2177
      %2179 = vdwg.mxu0
      %2181 = vrot.lane.b32.xlu0 %v1788, 96
      %v2182 = vpop.permute.xlu0 %2181
      %v2183 = vsel %vm299, %v2182, 0
      %2185 = vmatpush.msra.mxu0 0.0
      %2186 = vmatpush.msra.mxu0 0.0
      %2187 = vmatpush.msra.mxu0 0.0
      %2188 = vmatpush.msra.mxu0 0.0
      %2189 = vmatpush.msra.mxu0 0.0
      %2190 = vmatpush.msra.mxu0 0.0
      %2191 = vmatpush.msra.mxu0 0.0
      %2192 = vmatpush.msra.mxu0 0.0
      %2193 = vmatpush.msra.mxu0 0.0
      %2194 = vmatpush.msra.mxu0 0.0
      %2195 = vmatpush.msra.mxu0 0.0
      %2196 = vmatpush.msra.mxu0 0.0
      %2197 = vmatpush.msra.mxu0 %v1846
      %2198 = vmatpush.msra.mxu0 %v1845
      %2199 = vmatpush.msra.mxu0 %v1844
      %2200 = vmatpush.msra.mxu0 %v1843
      %2201 = vmatmul.f32.gmra.mxu0 %v2183
      %v2202 = vpop.f32.mrf.mxu0
      %v2203 = vadd.f32 0.0, %v2202
      %2204 = vdwg.mxu0
      %2206 = vrot.lane.b32.xlu0 %v1789, 96
      %v2207 = vpop.permute.xlu0 %2206
      %v2208 = vsel %vm299, %v2207, 0
      %2210 = vmatpush.msra.mxu0 0.0
      %2211 = vmatpush.msra.mxu0 0.0
      %2212 = vmatpush.msra.mxu0 0.0
      %2213 = vmatpush.msra.mxu0 0.0
      %2214 = vmatpush.msra.mxu0 0.0
      %2215 = vmatpush.msra.mxu0 0.0
      %2216 = vmatpush.msra.mxu0 0.0
      %2217 = vmatpush.msra.mxu0 0.0
      %2218 = vmatpush.msra.mxu0 0.0
      %2219 = vmatpush.msra.mxu0 0.0
      %2220 = vmatpush.msra.mxu0 0.0
      %2221 = vmatpush.msra.mxu0 0.0
      %2222 = vmatpush.msra.mxu0 %v1850
      %2223 = vmatpush.msra.mxu0 %v1849
      %2224 = vmatpush.msra.mxu0 %v1848
      %2225 = vmatpush.msra.mxu0 %v1847
      %2226 = vmatmul.f32.gmra.mxu0 %v2208
      %v2227 = vpop.f32.mrf.mxu0
      %v2228 = vadd.f32 0.0, %v2227
      %2229 = vdwg.mxu0
      %2231 = vrot.lane.b32.xlu0 %v1790, 96
      %v2232 = vpop.permute.xlu0 %2231
      %v2233 = vsel %vm299, %v2232, 0
      %2235 = vmatpush.msra.mxu0 0.0
      %2236 = vmatpush.msra.mxu0 0.0
      %2237 = vmatpush.msra.mxu0 0.0
      %2238 = vmatpush.msra.mxu0 0.0
      %2239 = vmatpush.msra.mxu0 0.0
      %2240 = vmatpush.msra.mxu0 0.0
      %2241 = vmatpush.msra.mxu0 0.0
      %2242 = vmatpush.msra.mxu0 0.0
      %2243 = vmatpush.msra.mxu0 0.0
      %2244 = vmatpush.msra.mxu0 0.0
      %2245 = vmatpush.msra.mxu0 0.0
      %2246 = vmatpush.msra.mxu0 0.0
      %2247 = vmatpush.msra.mxu0 %v1854
      %2248 = vmatpush.msra.mxu0 %v1853
      %2249 = vmatpush.msra.mxu0 %v1852
      %2250 = vmatpush.msra.mxu0 %v1851
      %2251 = vmatmul.f32.gmra.mxu0 %v2233
      %v2252 = vpop.f32.mrf.mxu0
      %v2253 = vadd.f32 0.0, %v2252
      %2254 = vdwg.mxu0
      %2256 = vrot.lane.b32.xlu0 %v1878, 120
      %v2257 = vpop.permute.xlu0 %2256
      %vm2258 = vcmask 64512
      %v2259 = vsel %vm2258, %v2257, 0
      %v2261 = vsel %vm2258, %v1878, 0
      %2263 = vmatpush.xpose.msra.mxu0 0.0
      %2264 = vmatpush.xpose.msra.mxu0 0.0
      %2265 = vmatpush.xpose.msra.mxu0 0.0
      %2266 = vmatpush.xpose.msra.mxu0 0.0
      %2267 = vmatpush.xpose.msra.mxu0 0.0
      %2268 = vmatpush.xpose.msra.mxu0 0.0
      %2269 = vmatpush.xpose.msra.mxu0 0.0
      %2270 = vmatpush.xpose.msra.mxu0 0.0
      %2271 = vmatpush.xpose.msra.mxu0 0.0
      %2272 = vmatpush.xpose.msra.mxu0 0.0
      %2273 = vmatpush.xpose.msra.mxu0 0.0
      %2274 = vmatpush.xpose.msra.mxu0 0.0
      %2275 = vmatpush.xpose.msra.mxu0 0.0
      %2276 = vmatpush.xpose.msra.mxu0 0.0
      %2277 = vmatpush.xpose.msra.mxu0 0.0
      %2278 = vmatpush.xpose.msra.mxu0 %v2261
      %2279 = vmatmul.f32.gmra.mxu0 %v2259
      %v2280 = vpop.f32.mrf.mxu0
      %v2281 = vadd.f32 0.0, %v2280
      %2282 = vdwg.mxu0
      %2284 = vrot.lane.b32.xlu0 %v1903, 120
      %v2285 = vpop.permute.xlu0 %2284
      %v2286 = vsel %vm2258, %v2285, 0
      %v2288 = vsel %vm2258, %v1903, 0
      %2290 = vmatpush.xpose.msra.mxu0 0.0
      %2291 = vmatpush.xpose.msra.mxu0 0.0
      %2292 = vmatpush.xpose.msra.mxu0 0.0
      %2293 = vmatpush.xpose.msra.mxu0 0.0
      %2294 = vmatpush.xpose.msra.mxu0 0.0
      %2295 = vmatpush.xpose.msra.mxu0 0.0
      %2296 = vmatpush.xpose.msra.mxu0 0.0
      %2297 = vmatpush.xpose.msra.mxu0 0.0
      %2298 = vmatpush.xpose.msra.mxu0 0.0
      %2299 = vmatpush.xpose.msra.mxu0 0.0
      %2300 = vmatpush.xpose.msra.mxu0 0.0
      %2301 = vmatpush.xpose.msra.mxu0 0.0
      %2302 = vmatpush.xpose.msra.mxu0 0.0
      %2303 = vmatpush.xpose.msra.mxu0 0.0
      %2304 = vmatpush.xpose.msra.mxu0 0.0
      %2305 = vmatpush.xpose.msra.mxu0 %v2288
      %2306 = vmatmul.f32.gmra.mxu0 %v2286
      %v2307 = vpop.f32.mrf.mxu0
      %v2308 = vadd.f32 0.0, %v2307
      %2309 = vdwg.mxu0
      %2311 = vrot.lane.b32.xlu0 %v1928, 120
      %v2312 = vpop.permute.xlu0 %2311
      %v2313 = vsel %vm2258, %v2312, 0
      %v2315 = vsel %vm2258, %v1928, 0
      %2317 = vmatpush.xpose.msra.mxu0 0.0
      %2318 = vmatpush.xpose.msra.mxu0 0.0
      %2319 = vmatpush.xpose.msra.mxu0 0.0
      %2320 = vmatpush.xpose.msra.mxu0 0.0
      %2321 = vmatpush.xpose.msra.mxu0 0.0
      %2322 = vmatpush.xpose.msra.mxu0 0.0
      %2323 = vmatpush.xpose.msra.mxu0 0.0
      %2324 = vmatpush.xpose.msra.mxu0 0.0
      %2325 = vmatpush.xpose.msra.mxu0 0.0
      %2326 = vmatpush.xpose.msra.mxu0 0.0
      %2327 = vmatpush.xpose.msra.mxu0 0.0
      %2328 = vmatpush.xpose.msra.mxu0 0.0
      %2329 = vmatpush.xpose.msra.mxu0 0.0
      %2330 = vmatpush.xpose.msra.mxu0 0.0
      %2331 = vmatpush.xpose.msra.mxu0 0.0
      %2332 = vmatpush.xpose.msra.mxu0 %v2315
      %2333 = vmatmul.f32.gmra.mxu0 %v2313
      %v2334 = vpop.f32.mrf.mxu0
      %v2335 = vadd.f32 0.0, %v2334
      %2336 = vdwg.mxu0
      %2338 = vrot.lane.b32.xlu0 %v1953, 120
      %v2339 = vpop.permute.xlu0 %2338
      %v2340 = vsel %vm2258, %v2339, 0
      %v2342 = vsel %vm2258, %v1953, 0
      %2344 = vmatpush.xpose.msra.mxu0 0.0
      %2345 = vmatpush.xpose.msra.mxu0 0.0
      %2346 = vmatpush.xpose.msra.mxu0 0.0
      %2347 = vmatpush.xpose.msra.mxu0 0.0
      %2348 = vmatpush.xpose.msra.mxu0 0.0
      %2349 = vmatpush.xpose.msra.mxu0 0.0
      %2350 = vmatpush.xpose.msra.mxu0 0.0
      %2351 = vmatpush.xpose.msra.mxu0 0.0
      %2352 = vmatpush.xpose.msra.mxu0 0.0
      %2353 = vmatpush.xpose.msra.mxu0 0.0
      %2354 = vmatpush.xpose.msra.mxu0 0.0
      %2355 = vmatpush.xpose.msra.mxu0 0.0
      %2356 = vmatpush.xpose.msra.mxu0 0.0
      %2357 = vmatpush.xpose.msra.mxu0 0.0
      %2358 = vmatpush.xpose.msra.mxu0 0.0
      %2359 = vmatpush.xpose.msra.mxu0 %v2342
      %2360 = vmatmul.f32.gmra.mxu0 %v2340
      %v2361 = vpop.f32.mrf.mxu0
      %v2362 = vadd.f32 0.0, %v2361
      %2363 = vdwg.mxu0
      %2365 = vrot.lane.b32.xlu0 %v1978, 120
      %v2366 = vpop.permute.xlu0 %2365
      %v2367 = vsel %vm2258, %v2366, 0
      %v2369 = vsel %vm2258, %v1978, 0
      %2371 = vmatpush.xpose.msra.mxu0 0.0
      %2372 = vmatpush.xpose.msra.mxu0 0.0
      %2373 = vmatpush.xpose.msra.mxu0 0.0
      %2374 = vmatpush.xpose.msra.mxu0 0.0
      %2375 = vmatpush.xpose.msra.mxu0 0.0
      %2376 = vmatpush.xpose.msra.mxu0 0.0
      %2377 = vmatpush.xpose.msra.mxu0 0.0
      %2378 = vmatpush.xpose.msra.mxu0 0.0
      %2379 = vmatpush.xpose.msra.mxu0 0.0
      %2380 = vmatpush.xpose.msra.mxu0 0.0
      %2381 = vmatpush.xpose.msra.mxu0 0.0
      %2382 = vmatpush.xpose.msra.mxu0 0.0
      %2383 = vmatpush.xpose.msra.mxu0 0.0
      %2384 = vmatpush.xpose.msra.mxu0 0.0
      %2385 = vmatpush.xpose.msra.mxu0 0.0
      %2386 = vmatpush.xpose.msra.mxu0 %v2369
      %2387 = vmatmul.f32.gmra.mxu0 %v2367
      %v2388 = vpop.f32.mrf.mxu0
      %v2389 = vadd.f32 0.0, %v2388
      %2390 = vdwg.mxu0
      %2392 = vrot.lane.b32.xlu0 %v2003, 120
      %v2393 = vpop.permute.xlu0 %2392
      %v2394 = vsel %vm2258, %v2393, 0
      %v2396 = vsel %vm2258, %v2003, 0
      %2398 = vmatpush.xpose.msra.mxu0 0.0
      %2399 = vmatpush.xpose.msra.mxu0 0.0
      %2400 = vmatpush.xpose.msra.mxu0 0.0
      %2401 = vmatpush.xpose.msra.mxu0 0.0
      %2402 = vmatpush.xpose.msra.mxu0 0.0
      %2403 = vmatpush.xpose.msra.mxu0 0.0
      %2404 = vmatpush.xpose.msra.mxu0 0.0
      %2405 = vmatpush.xpose.msra.mxu0 0.0
      %2406 = vmatpush.xpose.msra.mxu0 0.0
      %2407 = vmatpush.xpose.msra.mxu0 0.0
      %2408 = vmatpush.xpose.msra.mxu0 0.0
      %2409 = vmatpush.xpose.msra.mxu0 0.0
      %2410 = vmatpush.xpose.msra.mxu0 0.0
      %2411 = vmatpush.xpose.msra.mxu0 0.0
      %2412 = vmatpush.xpose.msra.mxu0 0.0
      %2413 = vmatpush.xpose.msra.mxu0 %v2396
      %2414 = vmatmul.f32.gmra.mxu0 %v2394
      %v2415 = vpop.f32.mrf.mxu0
      %v2416 = vadd.f32 0.0, %v2415
      %2417 = vdwg.mxu0
      %2419 = vrot.lane.b32.xlu0 %v2028, 120
      %v2420 = vpop.permute.xlu0 %2419
      %v2421 = vsel %vm2258, %v2420, 0
      %v2423 = vsel %vm2258, %v2028, 0
      %2425 = vmatpush.xpose.msra.mxu0 0.0
      %2426 = vmatpush.xpose.msra.mxu0 0.0
      %2427 = vmatpush.xpose.msra.mxu0 0.0
      %2428 = vmatpush.xpose.msra.mxu0 0.0
      %2429 = vmatpush.xpose.msra.mxu0 0.0
      %2430 = vmatpush.xpose.msra.mxu0 0.0
      %2431 = vmatpush.xpose.msra.mxu0 0.0
      %2432 = vmatpush.xpose.msra.mxu0 0.0
      %2433 = vmatpush.xpose.msra.mxu0 0.0
      %2434 = vmatpush.xpose.msra.mxu0 0.0
      %2435 = vmatpush.xpose.msra.mxu0 0.0
      %2436 = vmatpush.xpose.msra.mxu0 0.0
      %2437 = vmatpush.xpose.msra.mxu0 0.0
      %2438 = vmatpush.xpose.msra.mxu0 0.0
      %2439 = vmatpush.xpose.msra.mxu0 0.0
      %2440 = vmatpush.xpose.msra.mxu0 %v2423
      %2441 = vmatmul.f32.gmra.mxu0 %v2421
      %v2442 = vpop.f32.mrf.mxu0
      %v2443 = vadd.f32 0.0, %v2442
      %2444 = vdwg.mxu0
      %2446 = vrot.lane.b32.xlu0 %v2053, 120
      %v2447 = vpop.permute.xlu0 %2446
      %v2448 = vsel %vm2258, %v2447, 0
      %v2450 = vsel %vm2258, %v2053, 0
      %2452 = vmatpush.xpose.msra.mxu0 0.0
      %2453 = vmatpush.xpose.msra.mxu0 0.0
      %2454 = vmatpush.xpose.msra.mxu0 0.0
      %2455 = vmatpush.xpose.msra.mxu0 0.0
      %2456 = vmatpush.xpose.msra.mxu0 0.0
      %2457 = vmatpush.xpose.msra.mxu0 0.0
      %2458 = vmatpush.xpose.msra.mxu0 0.0
      %2459 = vmatpush.xpose.msra.mxu0 0.0
      %2460 = vmatpush.xpose.msra.mxu0 0.0
      %2461 = vmatpush.xpose.msra.mxu0 0.0
      %2462 = vmatpush.xpose.msra.mxu0 0.0
      %2463 = vmatpush.xpose.msra.mxu0 0.0
      %2464 = vmatpush.xpose.msra.mxu0 0.0
      %2465 = vmatpush.xpose.msra.mxu0 0.0
      %2466 = vmatpush.xpose.msra.mxu0 0.0
      %2467 = vmatpush.xpose.msra.mxu0 %v2450
      %2468 = vmatmul.f32.gmra.mxu0 %v2448
      %v2469 = vpop.f32.mrf.mxu0
      %v2470 = vadd.f32 0.0, %v2469
      %2471 = vdwg.mxu0
      %2473 = vrot.lane.b32.xlu0 %v2078, 120
      %v2474 = vpop.permute.xlu0 %2473
      %v2475 = vsel %vm2258, %v2474, 0
      %v2477 = vsel %vm2258, %v2078, 0
      %2479 = vmatpush.xpose.msra.mxu0 0.0
      %2480 = vmatpush.xpose.msra.mxu0 0.0
      %2481 = vmatpush.xpose.msra.mxu0 0.0
      %2482 = vmatpush.xpose.msra.mxu0 0.0
      %2483 = vmatpush.xpose.msra.mxu0 0.0
      %2484 = vmatpush.xpose.msra.mxu0 0.0
      %2485 = vmatpush.xpose.msra.mxu0 0.0
      %2486 = vmatpush.xpose.msra.mxu0 0.0
      %2487 = vmatpush.xpose.msra.mxu0 0.0
      %2488 = vmatpush.xpose.msra.mxu0 0.0
      %2489 = vmatpush.xpose.msra.mxu0 0.0
      %2490 = vmatpush.xpose.msra.mxu0 0.0
      %2491 = vmatpush.xpose.msra.mxu0 0.0
      %2492 = vmatpush.xpose.msra.mxu0 0.0
      %2493 = vmatpush.xpose.msra.mxu0 0.0
      %2494 = vmatpush.xpose.msra.mxu0 %v2477
      %2495 = vmatmul.f32.gmra.mxu0 %v2475
      %v2496 = vpop.f32.mrf.mxu0
      %v2497 = vadd.f32 0.0, %v2496
      %2498 = vdwg.mxu0
      %2500 = vrot.lane.b32.xlu0 %v2103, 120
      %v2501 = vpop.permute.xlu0 %2500
      %v2502 = vsel %vm2258, %v2501, 0
      %v2504 = vsel %vm2258, %v2103, 0
      %2506 = vmatpush.xpose.msra.mxu0 0.0
      %2507 = vmatpush.xpose.msra.mxu0 0.0
      %2508 = vmatpush.xpose.msra.mxu0 0.0
      %2509 = vmatpush.xpose.msra.mxu0 0.0
      %2510 = vmatpush.xpose.msra.mxu0 0.0
      %2511 = vmatpush.xpose.msra.mxu0 0.0
      %2512 = vmatpush.xpose.msra.mxu0 0.0
      %2513 = vmatpush.xpose.msra.mxu0 0.0
      %2514 = vmatpush.xpose.msra.mxu0 0.0
      %2515 = vmatpush.xpose.msra.mxu0 0.0
      %2516 = vmatpush.xpose.msra.mxu0 0.0
      %2517 = vmatpush.xpose.msra.mxu0 0.0
      %2518 = vmatpush.xpose.msra.mxu0 0.0
      %2519 = vmatpush.xpose.msra.mxu0 0.0
      %2520 = vmatpush.xpose.msra.mxu0 0.0
      %2521 = vmatpush.xpose.msra.mxu0 %v2504
      %2522 = vmatmul.f32.gmra.mxu0 %v2502
      %v2523 = vpop.f32.mrf.mxu0
      %v2524 = vadd.f32 0.0, %v2523
      %2525 = vdwg.mxu0
      %2527 = vrot.lane.b32.xlu0 %v2128, 120
      %v2528 = vpop.permute.xlu0 %2527
      %v2529 = vsel %vm2258, %v2528, 0
      %v2531 = vsel %vm2258, %v2128, 0
      %2533 = vmatpush.xpose.msra.mxu0 0.0
      %2534 = vmatpush.xpose.msra.mxu0 0.0
      %2535 = vmatpush.xpose.msra.mxu0 0.0
      %2536 = vmatpush.xpose.msra.mxu0 0.0
      %2537 = vmatpush.xpose.msra.mxu0 0.0
      %2538 = vmatpush.xpose.msra.mxu0 0.0
      %2539 = vmatpush.xpose.msra.mxu0 0.0
      %2540 = vmatpush.xpose.msra.mxu0 0.0
      %2541 = vmatpush.xpose.msra.mxu0 0.0
      %2542 = vmatpush.xpose.msra.mxu0 0.0
      %2543 = vmatpush.xpose.msra.mxu0 0.0
      %2544 = vmatpush.xpose.msra.mxu0 0.0
      %2545 = vmatpush.xpose.msra.mxu0 0.0
      %2546 = vmatpush.xpose.msra.mxu0 0.0
      %2547 = vmatpush.xpose.msra.mxu0 0.0
      %2548 = vmatpush.xpose.msra.mxu0 %v2531
      %2549 = vmatmul.f32.gmra.mxu0 %v2529
      %v2550 = vpop.f32.mrf.mxu0
      %v2551 = vadd.f32 0.0, %v2550
      %2552 = vdwg.mxu0
      %2554 = vrot.lane.b32.xlu0 %v2153, 120
      %v2555 = vpop.permute.xlu0 %2554
      %v2556 = vsel %vm2258, %v2555, 0
      %v2558 = vsel %vm2258, %v2153, 0
      %2560 = vmatpush.xpose.msra.mxu0 0.0
      %2561 = vmatpush.xpose.msra.mxu0 0.0
      %2562 = vmatpush.xpose.msra.mxu0 0.0
      %2563 = vmatpush.xpose.msra.mxu0 0.0
      %2564 = vmatpush.xpose.msra.mxu0 0.0
      %2565 = vmatpush.xpose.msra.mxu0 0.0
      %2566 = vmatpush.xpose.msra.mxu0 0.0
      %2567 = vmatpush.xpose.msra.mxu0 0.0
      %2568 = vmatpush.xpose.msra.mxu0 0.0
      %2569 = vmatpush.xpose.msra.mxu0 0.0
      %2570 = vmatpush.xpose.msra.mxu0 0.0
      %2571 = vmatpush.xpose.msra.mxu0 0.0
      %2572 = vmatpush.xpose.msra.mxu0 0.0
      %2573 = vmatpush.xpose.msra.mxu0 0.0
      %2574 = vmatpush.xpose.msra.mxu0 0.0
      %2575 = vmatpush.xpose.msra.mxu0 %v2558
      %2576 = vmatmul.f32.gmra.mxu0 %v2556
      %v2577 = vpop.f32.mrf.mxu0
      %v2578 = vadd.f32 0.0, %v2577
      %2579 = vdwg.mxu0
      %2581 = vrot.lane.b32.xlu0 %v2178, 120
      %v2582 = vpop.permute.xlu0 %2581
      %v2583 = vsel %vm2258, %v2582, 0
      %v2585 = vsel %vm2258, %v2178, 0
      %2587 = vmatpush.xpose.msra.mxu0 0.0
      %2588 = vmatpush.xpose.msra.mxu0 0.0
      %2589 = vmatpush.xpose.msra.mxu0 0.0
      %2590 = vmatpush.xpose.msra.mxu0 0.0
      %2591 = vmatpush.xpose.msra.mxu0 0.0
      %2592 = vmatpush.xpose.msra.mxu0 0.0
      %2593 = vmatpush.xpose.msra.mxu0 0.0
      %2594 = vmatpush.xpose.msra.mxu0 0.0
      %2595 = vmatpush.xpose.msra.mxu0 0.0
      %2596 = vmatpush.xpose.msra.mxu0 0.0
      %2597 = vmatpush.xpose.msra.mxu0 0.0
      %2598 = vmatpush.xpose.msra.mxu0 0.0
      %2599 = vmatpush.xpose.msra.mxu0 0.0
      %2600 = vmatpush.xpose.msra.mxu0 0.0
      %2601 = vmatpush.xpose.msra.mxu0 0.0
      %2602 = vmatpush.xpose.msra.mxu0 %v2585
      %2603 = vmatmul.f32.gmra.mxu0 %v2583
      %v2604 = vpop.f32.mrf.mxu0
      %v2605 = vadd.f32 0.0, %v2604
      %2606 = vdwg.mxu0
      %2608 = vrot.lane.b32.xlu0 %v2203, 120
      %v2609 = vpop.permute.xlu0 %2608
      %v2610 = vsel %vm2258, %v2609, 0
      %v2612 = vsel %vm2258, %v2203, 0
      %2614 = vmatpush.xpose.msra.mxu0 0.0
      %2615 = vmatpush.xpose.msra.mxu0 0.0
      %2616 = vmatpush.xpose.msra.mxu0 0.0
      %2617 = vmatpush.xpose.msra.mxu0 0.0
      %2618 = vmatpush.xpose.msra.mxu0 0.0
      %2619 = vmatpush.xpose.msra.mxu0 0.0
      %2620 = vmatpush.xpose.msra.mxu0 0.0
      %2621 = vmatpush.xpose.msra.mxu0 0.0
      %2622 = vmatpush.xpose.msra.mxu0 0.0
      %2623 = vmatpush.xpose.msra.mxu0 0.0
      %2624 = vmatpush.xpose.msra.mxu0 0.0
      %2625 = vmatpush.xpose.msra.mxu0 0.0
      %2626 = vmatpush.xpose.msra.mxu0 0.0
      %2627 = vmatpush.xpose.msra.mxu0 0.0
      %2628 = vmatpush.xpose.msra.mxu0 0.0
      %2629 = vmatpush.xpose.msra.mxu0 %v2612
      %2630 = vmatmul.f32.gmra.mxu0 %v2610
      %v2631 = vpop.f32.mrf.mxu0
      %v2632 = vadd.f32 0.0, %v2631
      %2633 = vdwg.mxu0
      %2635 = vrot.lane.b32.xlu0 %v2228, 120
      %v2636 = vpop.permute.xlu0 %2635
      %v2637 = vsel %vm2258, %v2636, 0
      %v2639 = vsel %vm2258, %v2228, 0
      %2641 = vmatpush.xpose.msra.mxu0 0.0
      %2642 = vmatpush.xpose.msra.mxu0 0.0
      %2643 = vmatpush.xpose.msra.mxu0 0.0
      %2644 = vmatpush.xpose.msra.mxu0 0.0
      %2645 = vmatpush.xpose.msra.mxu0 0.0
      %2646 = vmatpush.xpose.msra.mxu0 0.0
      %2647 = vmatpush.xpose.msra.mxu0 0.0
      %2648 = vmatpush.xpose.msra.mxu0 0.0
      %2649 = vmatpush.xpose.msra.mxu0 0.0
      %2650 = vmatpush.xpose.msra.mxu0 0.0
      %2651 = vmatpush.xpose.msra.mxu0 0.0
      %2652 = vmatpush.xpose.msra.mxu0 0.0
      %2653 = vmatpush.xpose.msra.mxu0 0.0
      %2654 = vmatpush.xpose.msra.mxu0 0.0
      %2655 = vmatpush.xpose.msra.mxu0 0.0
      %2656 = vmatpush.xpose.msra.mxu0 %v2639
      %2657 = vmatmul.f32.gmra.mxu0 %v2637
      %v2658 = vpop.f32.mrf.mxu0
      %v2659 = vadd.f32 0.0, %v2658
      %2660 = vdwg.mxu0
      %2662 = vrot.lane.b32.xlu0 %v2253, 120
      %v2663 = vpop.permute.xlu0 %2662
      %v2664 = vsel %vm2258, %v2663, 0
      %v2666 = vsel %vm2258, %v2253, 0
      %2668 = vmatpush.xpose.msra.mxu0 0.0
      %2669 = vmatpush.xpose.msra.mxu0 0.0
      %2670 = vmatpush.xpose.msra.mxu0 0.0
      %2671 = vmatpush.xpose.msra.mxu0 0.0
      %2672 = vmatpush.xpose.msra.mxu0 0.0
      %2673 = vmatpush.xpose.msra.mxu0 0.0
      %2674 = vmatpush.xpose.msra.mxu0 0.0
      %2675 = vmatpush.xpose.msra.mxu0 0.0
      %2676 = vmatpush.xpose.msra.mxu0 0.0
      %2677 = vmatpush.xpose.msra.mxu0 0.0
      %2678 = vmatpush.xpose.msra.mxu0 0.0
      %2679 = vmatpush.xpose.msra.mxu0 0.0
      %2680 = vmatpush.xpose.msra.mxu0 0.0
      %2681 = vmatpush.xpose.msra.mxu0 0.0
      %2682 = vmatpush.xpose.msra.mxu0 0.0
      %2683 = vmatpush.xpose.msra.mxu0 %v2666
      %2684 = vmatmul.f32.gmra.mxu0 %v2664
      %v2685 = vpop.f32.mrf.mxu0
      %v2686 = vadd.f32 0.0, %v2685
      %2687 = vdwg.mxu0
      %v2688 = vsel %vm2258, %v2281, -inf
      %v2689 = vrot.slane %v2688, 4
      %v2690 = vmax.f32 %v2688, %v2689
      %v2691 = vrot.slane %v2690, 2
      %v2692 = vmax.f32 %v2690, %v2691
      %v2693 = vrot.slane %v2692, 1
      %v2694 = vmax.f32 %v2692, %v2693
      %v2695 = vsel %vm2258, %v2308, -inf
      %v2696 = vrot.slane %v2695, 4
      %v2697 = vmax.f32 %v2695, %v2696
      %v2698 = vrot.slane %v2697, 2
      %v2699 = vmax.f32 %v2697, %v2698
      %v2700 = vrot.slane %v2699, 1
      %v2701 = vmax.f32 %v2699, %v2700
      %v2702 = vsel %vm2258, %v2335, -inf
      %v2703 = vrot.slane %v2702, 4
      %v2704 = vmax.f32 %v2702, %v2703
      %v2705 = vrot.slane %v2704, 2
      %v2706 = vmax.f32 %v2704, %v2705
      %v2707 = vrot.slane %v2706, 1
      %v2708 = vmax.f32 %v2706, %v2707
      %v2709 = vsel %vm2258, %v2362, -inf
      %v2710 = vrot.slane %v2709, 4
      %v2711 = vmax.f32 %v2709, %v2710
      %v2712 = vrot.slane %v2711, 2
      %v2713 = vmax.f32 %v2711, %v2712
      %v2714 = vrot.slane %v2713, 1
      %v2715 = vmax.f32 %v2713, %v2714
      %v2716 = vsel %vm2258, %v2389, -inf
      %v2717 = vrot.slane %v2716, 4
      %v2718 = vmax.f32 %v2716, %v2717
      %v2719 = vrot.slane %v2718, 2
      %v2720 = vmax.f32 %v2718, %v2719
      %v2721 = vrot.slane %v2720, 1
      %v2722 = vmax.f32 %v2720, %v2721
      %v2723 = vsel %vm2258, %v2416, -inf
      %v2724 = vrot.slane %v2723, 4
      %v2725 = vmax.f32 %v2723, %v2724
      %v2726 = vrot.slane %v2725, 2
      %v2727 = vmax.f32 %v2725, %v2726
      %v2728 = vrot.slane %v2727, 1
      %v2729 = vmax.f32 %v2727, %v2728
      %v2730 = vsel %vm2258, %v2443, -inf
      %v2731 = vrot.slane %v2730, 4
      %v2732 = vmax.f32 %v2730, %v2731
      %v2733 = vrot.slane %v2732, 2
      %v2734 = vmax.f32 %v2732, %v2733
      %v2735 = vrot.slane %v2734, 1
      %v2736 = vmax.f32 %v2734, %v2735
      %v2737 = vsel %vm2258, %v2470, -inf
      %v2738 = vrot.slane %v2737, 4
      %v2739 = vmax.f32 %v2737, %v2738
      %v2740 = vrot.slane %v2739, 2
      %v2741 = vmax.f32 %v2739, %v2740
      %v2742 = vrot.slane %v2741, 1
      %v2743 = vmax.f32 %v2741, %v2742
      %v2744 = vsel %vm2258, %v2497, -inf
      %v2745 = vrot.slane %v2744, 4
      %v2746 = vmax.f32 %v2744, %v2745
      %v2747 = vrot.slane %v2746, 2
      %v2748 = vmax.f32 %v2746, %v2747
      %v2749 = vrot.slane %v2748, 1
      %v2750 = vmax.f32 %v2748, %v2749
      %v2751 = vsel %vm2258, %v2524, -inf
      %v2752 = vrot.slane %v2751, 4
      %v2753 = vmax.f32 %v2751, %v2752
      %v2754 = vrot.slane %v2753, 2
      %v2755 = vmax.f32 %v2753, %v2754
      %v2756 = vrot.slane %v2755, 1
      %v2757 = vmax.f32 %v2755, %v2756
      %v2758 = vsel %vm2258, %v2551, -inf
      %v2759 = vrot.slane %v2758, 4
      %v2760 = vmax.f32 %v2758, %v2759
      %v2761 = vrot.slane %v2760, 2
      %v2762 = vmax.f32 %v2760, %v2761
      %v2763 = vrot.slane %v2762, 1
      %v2764 = vmax.f32 %v2762, %v2763
      %v2765 = vsel %vm2258, %v2578, -inf
      %v2766 = vrot.slane %v2765, 4
      %v2767 = vmax.f32 %v2765, %v2766
      %v2768 = vrot.slane %v2767, 2
      %v2769 = vmax.f32 %v2767, %v2768
      %v2770 = vrot.slane %v2769, 1
      %v2771 = vmax.f32 %v2769, %v2770
      %v2772 = vsel %vm2258, %v2605, -inf
      %v2773 = vrot.slane %v2772, 4
      %v2774 = vmax.f32 %v2772, %v2773
      %v2775 = vrot.slane %v2774, 2
      %v2776 = vmax.f32 %v2774, %v2775
      %v2777 = vrot.slane %v2776, 1
      %v2778 = vmax.f32 %v2776, %v2777
      %v2779 = vsel %vm2258, %v2632, -inf
      %v2780 = vrot.slane %v2779, 4
      %v2781 = vmax.f32 %v2779, %v2780
      %v2782 = vrot.slane %v2781, 2
      %v2783 = vmax.f32 %v2781, %v2782
      %v2784 = vrot.slane %v2783, 1
      %v2785 = vmax.f32 %v2783, %v2784
      %v2786 = vsel %vm2258, %v2659, -inf
      %v2787 = vrot.slane %v2786, 4
      %v2788 = vmax.f32 %v2786, %v2787
      %v2789 = vrot.slane %v2788, 2
      %v2790 = vmax.f32 %v2788, %v2789
      %v2791 = vrot.slane %v2790, 1
      %v2792 = vmax.f32 %v2790, %v2791
      %v2793 = vsel %vm2258, %v2686, -inf
      %v2794 = vrot.slane %v2793, 4
      %v2795 = vmax.f32 %v2793, %v2794
      %v2796 = vrot.slane %v2795, 2
      %v2797 = vmax.f32 %v2795, %v2796
      %v2798 = vrot.slane %v2797, 1
      %v2799 = vmax.f32 %v2797, %v2798
      %v2800 = vsub.f32 %v2281, %v2694
      %v2801 = vsub.f32 %v2308, %v2701
      %v2802 = vsub.f32 %v2335, %v2708
      %v2803 = vsub.f32 %v2362, %v2715
      %v2804 = vsub.f32 %v2389, %v2722
      %v2805 = vsub.f32 %v2416, %v2729
      %v2806 = vsub.f32 %v2443, %v2736
      %v2807 = vsub.f32 %v2470, %v2743
      %v2808 = vsub.f32 %v2497, %v2750
      %v2809 = vsub.f32 %v2524, %v2757
      %v2810 = vsub.f32 %v2551, %v2764
      %v2811 = vsub.f32 %v2578, %v2771
      %v2812 = vsub.f32 %v2605, %v2778
      %v2813 = vsub.f32 %v2632, %v2785
      %v2814 = vsub.f32 %v2659, %v2792
      %v2815 = vsub.f32 %v2686, %v2799
      %v2816 = vmul.f32 %v2800, 1.442695
      %v2817 = vpow.pop %v2816
      %v2818 = vmul.f32 %v2801, 1.442695
      %v2819 = vpow.pop %v2818
      %v2820 = vmul.f32 %v2802, 1.442695
      %v2821 = vpow.pop %v2820
      %v2822 = vmul.f32 %v2803, 1.442695
      %v2823 = vpow.pop %v2822
      %v2824 = vmul.f32 %v2804, 1.442695
      %v2825 = vpow.pop %v2824
      %v2826 = vmul.f32 %v2805, 1.442695
      %v2827 = vpow.pop %v2826
      %v2828 = vmul.f32 %v2806, 1.442695
      %v2829 = vpow.pop %v2828
      %v2830 = vmul.f32 %v2807, 1.442695
      %v2831 = vpow.pop %v2830
      %v2832 = vmul.f32 %v2808, 1.442695
      %v2833 = vpow.pop %v2832
      %v2834 = vmul.f32 %v2809, 1.442695
      %v2835 = vpow.pop %v2834
      %v2836 = vmul.f32 %v2810, 1.442695
      %v2837 = vpow.pop %v2836
      %v2838 = vmul.f32 %v2811, 1.442695
      %v2839 = vpow.pop %v2838
      %v2840 = vmul.f32 %v2812, 1.442695
      %v2841 = vpow.pop %v2840
      %v2842 = vmul.f32 %v2813, 1.442695
      %v2843 = vpow.pop %v2842
      %v2844 = vmul.f32 %v2814, 1.442695
      %v2845 = vpow.pop %v2844
      %v2846 = vmul.f32 %v2815, 1.442695
      %v2847 = vpow.pop %v2846
      %v2848 = vsel %vm2258, %v2817, 0.0
      %v2849 = vrot.slane %v2848, 4
      %v2850 = vadd.f32 %v2848, %v2849
      %v2851 = vrot.slane %v2850, 2
      %v2852 = vadd.f32 %v2850, %v2851
      %v2853 = vrot.slane %v2852, 1
      %v2854 = vadd.f32 %v2852, %v2853
      %v2855 = vsel %vm2258, %v2819, 0.0
      %v2856 = vrot.slane %v2855, 4
      %v2857 = vadd.f32 %v2855, %v2856
      %v2858 = vrot.slane %v2857, 2
      %v2859 = vadd.f32 %v2857, %v2858
      %v2860 = vrot.slane %v2859, 1
      %v2861 = vadd.f32 %v2859, %v2860
      %v2862 = vsel %vm2258, %v2821, 0.0
      %v2863 = vrot.slane %v2862, 4
      %v2864 = vadd.f32 %v2862, %v2863
      %v2865 = vrot.slane %v2864, 2
      %v2866 = vadd.f32 %v2864, %v2865
      %v2867 = vrot.slane %v2866, 1
      %v2868 = vadd.f32 %v2866, %v2867
      %v2869 = vsel %vm2258, %v2823, 0.0
      %v2870 = vrot.slane %v2869, 4
      %v2871 = vadd.f32 %v2869, %v2870
      %v2872 = vrot.slane %v2871, 2
      %v2873 = vadd.f32 %v2871, %v2872
      %v2874 = vrot.slane %v2873, 1
      %v2875 = vadd.f32 %v2873, %v2874
      %v2876 = vsel %vm2258, %v2825, 0.0
      %v2877 = vrot.slane %v2876, 4
      %v2878 = vadd.f32 %v2876, %v2877
      %v2879 = vrot.slane %v2878, 2
      %v2880 = vadd.f32 %v2878, %v2879
      %v2881 = vrot.slane %v2880, 1
      %v2882 = vadd.f32 %v2880, %v2881
      %v2883 = vsel %vm2258, %v2827, 0.0
      %v2884 = vrot.slane %v2883, 4
      %v2885 = vadd.f32 %v2883, %v2884
      %v2886 = vrot.slane %v2885, 2
      %v2887 = vadd.f32 %v2885, %v2886
      %v2888 = vrot.slane %v2887, 1
      %v2889 = vadd.f32 %v2887, %v2888
      %v2890 = vsel %vm2258, %v2829, 0.0
      %v2891 = vrot.slane %v2890, 4
      %v2892 = vadd.f32 %v2890, %v2891
      %v2893 = vrot.slane %v2892, 2
      %v2894 = vadd.f32 %v2892, %v2893
      %v2895 = vrot.slane %v2894, 1
      %v2896 = vadd.f32 %v2894, %v2895
      %v2897 = vsel %vm2258, %v2831, 0.0
      %v2898 = vrot.slane %v2897, 4
      %v2899 = vadd.f32 %v2897, %v2898
      %v2900 = vrot.slane %v2899, 2
      %v2901 = vadd.f32 %v2899, %v2900
      %v2902 = vrot.slane %v2901, 1
      %v2903 = vadd.f32 %v2901, %v2902
      %v2904 = vsel %vm2258, %v2833, 0.0
      %v2905 = vrot.slane %v2904, 4
      %v2906 = vadd.f32 %v2904, %v2905
      %v2907 = vrot.slane %v2906, 2
      %v2908 = vadd.f32 %v2906, %v2907
      %v2909 = vrot.slane %v2908, 1
      %v2910 = vadd.f32 %v2908, %v2909
      %v2911 = vsel %vm2258, %v2835, 0.0
      %v2912 = vrot.slane %v2911, 4
      %v2913 = vadd.f32 %v2911, %v2912
      %v2914 = vrot.slane %v2913, 2
      %v2915 = vadd.f32 %v2913, %v2914
      %v2916 = vrot.slane %v2915, 1
      %v2917 = vadd.f32 %v2915, %v2916
      %v2918 = vsel %vm2258, %v2837, 0.0
      %v2919 = vrot.slane %v2918, 4
      %v2920 = vadd.f32 %v2918, %v2919
      %v2921 = vrot.slane %v2920, 2
      %v2922 = vadd.f32 %v2920, %v2921
      %v2923 = vrot.slane %v2922, 1
      %v2924 = vadd.f32 %v2922, %v2923
      %v2925 = vsel %vm2258, %v2839, 0.0
      %v2926 = vrot.slane %v2925, 4
      %v2927 = vadd.f32 %v2925, %v2926
      %v2928 = vrot.slane %v2927, 2
      %v2929 = vadd.f32 %v2927, %v2928
      %v2930 = vrot.slane %v2929, 1
      %v2931 = vadd.f32 %v2929, %v2930
      %v2932 = vsel %vm2258, %v2841, 0.0
      %v2933 = vrot.slane %v2932, 4
      %v2934 = vadd.f32 %v2932, %v2933
      %v2935 = vrot.slane %v2934, 2
      %v2936 = vadd.f32 %v2934, %v2935
      %v2937 = vrot.slane %v2936, 1
      %v2938 = vadd.f32 %v2936, %v2937
      %v2939 = vsel %vm2258, %v2843, 0.0
      %v2940 = vrot.slane %v2939, 4
      %v2941 = vadd.f32 %v2939, %v2940
      %v2942 = vrot.slane %v2941, 2
      %v2943 = vadd.f32 %v2941, %v2942
      %v2944 = vrot.slane %v2943, 1
      %v2945 = vadd.f32 %v2943, %v2944
      %v2946 = vsel %vm2258, %v2845, 0.0
      %v2947 = vrot.slane %v2946, 4
      %v2948 = vadd.f32 %v2946, %v2947
      %v2949 = vrot.slane %v2948, 2
      %v2950 = vadd.f32 %v2948, %v2949
      %v2951 = vrot.slane %v2950, 1
      %v2952 = vadd.f32 %v2950, %v2951
      %v2953 = vsel %vm2258, %v2847, 0.0
      %v2954 = vrot.slane %v2953, 4
      %v2955 = vadd.f32 %v2953, %v2954
      %v2956 = vrot.slane %v2955, 2
      %v2957 = vadd.f32 %v2955, %v2956
      %v2958 = vrot.slane %v2957, 1
      %v2959 = vadd.f32 %v2957, %v2958
      %v2960 = vrcp.pop %v2854
      %v2961 = vrcp.pop %v2861
      %v2962 = vrcp.pop %v2868
      %v2963 = vrcp.pop %v2875
      %v2964 = vrcp.pop %v2882
      %v2965 = vrcp.pop %v2889
      %v2966 = vrcp.pop %v2896
      %v2967 = vrcp.pop %v2903
      %v2968 = vrcp.pop %v2910
      %v2969 = vrcp.pop %v2917
      %v2970 = vrcp.pop %v2924
      %v2971 = vrcp.pop %v2931
      %v2972 = vrcp.pop %v2938
      %v2973 = vrcp.pop %v2945
      %v2974 = vrcp.pop %v2952
      %v2975 = vrcp.pop %v2959
      %v2976 = vmul.f32 %v2817, %v2960
      %v2977 = vmul.f32 %v2819, %v2961
      %v2978 = vmul.f32 %v2821, %v2962
      %v2979 = vmul.f32 %v2823, %v2963
      %v2980 = vmul.f32 %v2825, %v2964
      %v2981 = vmul.f32 %v2827, %v2965
      %v2982 = vmul.f32 %v2829, %v2966
      %v2983 = vmul.f32 %v2831, %v2967
      %v2984 = vmul.f32 %v2833, %v2968
      %v2985 = vmul.f32 %v2835, %v2969
      %v2986 = vmul.f32 %v2837, %v2970
      %v2987 = vmul.f32 %v2839, %v2971
      %v2988 = vmul.f32 %v2841, %v2972
      %v2989 = vmul.f32 %v2843, %v2973
      %v2990 = vmul.f32 %v2845, %v2974
      %v2991 = vmul.f32 %v2847, %v2975
      %2992 = vrot.lane.b32.xlu0 %v1878, 112
      %v2993 = vpop.permute.xlu0 %2992
      %v2996 = vsel %vm2258, %v2976, 0
      %2998 = vmatpush.msra.mxu0 0.0
      %2999 = vmatpush.msra.mxu0 0.0
      %3000 = vmatpush.msra.mxu0 0.0
      %3001 = vmatpush.msra.mxu0 0.0
      %3002 = vmatpush.msra.mxu0 0.0
      %3003 = vmatpush.msra.mxu0 0.0
      %3004 = vmatpush.msra.mxu0 0.0
      %3005 = vmatpush.msra.mxu0 0.0
      %3006 = vmatpush.msra.mxu0 0.0
      %3007 = vmatpush.msra.mxu0 0.0
      %3008 = vmatpush.msra.mxu0 0.0
      %3009 = vmatpush.msra.mxu0 0.0
      %3010 = vmatpush.msra.mxu0 0.0
      %3011 = vmatpush.msra.mxu0 0.0
      %3012 = vmatpush.msra.mxu0 0.0
      %3013 = vmatpush.msra.mxu0 %v2993
      %3014 = vmatmul.f32.gmra.mxu0 %v2996
      %v3015 = vpop.f32.mrf.mxu0
      %v3016 = vadd.f32 0.0, %v3015
      %3017 = vdwg.mxu0
      %3018 = vrot.lane.b32.xlu0 %v1903, 112
      %v3019 = vpop.permute.xlu0 %3018
      %v3022 = vsel %vm2258, %v2977, 0
      %3024 = vmatpush.msra.mxu0 0.0
      %3025 = vmatpush.msra.mxu0 0.0
      %3026 = vmatpush.msra.mxu0 0.0
      %3027 = vmatpush.msra.mxu0 0.0
      %3028 = vmatpush.msra.mxu0 0.0
      %3029 = vmatpush.msra.mxu0 0.0
      %3030 = vmatpush.msra.mxu0 0.0
      %3031 = vmatpush.msra.mxu0 0.0
      %3032 = vmatpush.msra.mxu0 0.0
      %3033 = vmatpush.msra.mxu0 0.0
      %3034 = vmatpush.msra.mxu0 0.0
      %3035 = vmatpush.msra.mxu0 0.0
      %3036 = vmatpush.msra.mxu0 0.0
      %3037 = vmatpush.msra.mxu0 0.0
      %3038 = vmatpush.msra.mxu0 0.0
      %3039 = vmatpush.msra.mxu0 %v3019
      %3040 = vmatmul.f32.gmra.mxu0 %v3022
      %v3041 = vpop.f32.mrf.mxu0
      %v3042 = vadd.f32 0.0, %v3041
      %3043 = vdwg.mxu0
      %3044 = vrot.lane.b32.xlu0 %v1928, 112
      %v3045 = vpop.permute.xlu0 %3044
      %v3048 = vsel %vm2258, %v2978, 0
      %3050 = vmatpush.msra.mxu0 0.0
      %3051 = vmatpush.msra.mxu0 0.0
      %3052 = vmatpush.msra.mxu0 0.0
      %3053 = vmatpush.msra.mxu0 0.0
      %3054 = vmatpush.msra.mxu0 0.0
      %3055 = vmatpush.msra.mxu0 0.0
      %3056 = vmatpush.msra.mxu0 0.0
      %3057 = vmatpush.msra.mxu0 0.0
      %3058 = vmatpush.msra.mxu0 0.0
      %3059 = vmatpush.msra.mxu0 0.0
      %3060 = vmatpush.msra.mxu0 0.0
      %3061 = vmatpush.msra.mxu0 0.0
      %3062 = vmatpush.msra.mxu0 0.0
      %3063 = vmatpush.msra.mxu0 0.0
      %3064 = vmatpush.msra.mxu0 0.0
      %3065 = vmatpush.msra.mxu0 %v3045
      %3066 = vmatmul.f32.gmra.mxu0 %v3048
      %v3067 = vpop.f32.mrf.mxu0
      %v3068 = vadd.f32 0.0, %v3067
      %3069 = vdwg.mxu0
      %3070 = vrot.lane.b32.xlu0 %v1953, 112
      %v3071 = vpop.permute.xlu0 %3070
      %v3074 = vsel %vm2258, %v2979, 0
      %3076 = vmatpush.msra.mxu0 0.0
      %3077 = vmatpush.msra.mxu0 0.0
      %3078 = vmatpush.msra.mxu0 0.0
      %3079 = vmatpush.msra.mxu0 0.0
      %3080 = vmatpush.msra.mxu0 0.0
      %3081 = vmatpush.msra.mxu0 0.0
      %3082 = vmatpush.msra.mxu0 0.0
      %3083 = vmatpush.msra.mxu0 0.0
      %3084 = vmatpush.msra.mxu0 0.0
      %3085 = vmatpush.msra.mxu0 0.0
      %3086 = vmatpush.msra.mxu0 0.0
      %3087 = vmatpush.msra.mxu0 0.0
      %3088 = vmatpush.msra.mxu0 0.0
      %3089 = vmatpush.msra.mxu0 0.0
      %3090 = vmatpush.msra.mxu0 0.0
      %3091 = vmatpush.msra.mxu0 %v3071
      %3092 = vmatmul.f32.gmra.mxu0 %v3074
      %v3093 = vpop.f32.mrf.mxu0
      %v3094 = vadd.f32 0.0, %v3093
      %3095 = vdwg.mxu0
      %3096 = vrot.lane.b32.xlu0 %v1978, 112
      %v3097 = vpop.permute.xlu0 %3096
      %v3100 = vsel %vm2258, %v2980, 0
      %3102 = vmatpush.msra.mxu0 0.0
      %3103 = vmatpush.msra.mxu0 0.0
      %3104 = vmatpush.msra.mxu0 0.0
      %3105 = vmatpush.msra.mxu0 0.0
      %3106 = vmatpush.msra.mxu0 0.0
      %3107 = vmatpush.msra.mxu0 0.0
      %3108 = vmatpush.msra.mxu0 0.0
      %3109 = vmatpush.msra.mxu0 0.0
      %3110 = vmatpush.msra.mxu0 0.0
      %3111 = vmatpush.msra.mxu0 0.0
      %3112 = vmatpush.msra.mxu0 0.0
      %3113 = vmatpush.msra.mxu0 0.0
      %3114 = vmatpush.msra.mxu0 0.0
      %3115 = vmatpush.msra.mxu0 0.0
      %3116 = vmatpush.msra.mxu0 0.0
      %3117 = vmatpush.msra.mxu0 %v3097
      %3118 = vmatmul.f32.gmra.mxu0 %v3100
      %v3119 = vpop.f32.mrf.mxu0
      %v3120 = vadd.f32 0.0, %v3119
      %3121 = vdwg.mxu0
      %3122 = vrot.lane.b32.xlu0 %v2003, 112
      %v3123 = vpop.permute.xlu0 %3122
      %v3126 = vsel %vm2258, %v2981, 0
      %3128 = vmatpush.msra.mxu0 0.0
      %3129 = vmatpush.msra.mxu0 0.0
      %3130 = vmatpush.msra.mxu0 0.0
      %3131 = vmatpush.msra.mxu0 0.0
      %3132 = vmatpush.msra.mxu0 0.0
      %3133 = vmatpush.msra.mxu0 0.0
      %3134 = vmatpush.msra.mxu0 0.0
      %3135 = vmatpush.msra.mxu0 0.0
      %3136 = vmatpush.msra.mxu0 0.0
      %3137 = vmatpush.msra.mxu0 0.0
      %3138 = vmatpush.msra.mxu0 0.0
      %3139 = vmatpush.msra.mxu0 0.0
      %3140 = vmatpush.msra.mxu0 0.0
      %3141 = vmatpush.msra.mxu0 0.0
      %3142 = vmatpush.msra.mxu0 0.0
      %3143 = vmatpush.msra.mxu0 %v3123
      %3144 = vmatmul.f32.gmra.mxu0 %v3126
      %v3145 = vpop.f32.mrf.mxu0
      %v3146 = vadd.f32 0.0, %v3145
      %3147 = vdwg.mxu0
      %3148 = vrot.lane.b32.xlu0 %v2028, 112
      %v3149 = vpop.permute.xlu0 %3148
      %v3152 = vsel %vm2258, %v2982, 0
      %3154 = vmatpush.msra.mxu0 0.0
      %3155 = vmatpush.msra.mxu0 0.0
      %3156 = vmatpush.msra.mxu0 0.0
      %3157 = vmatpush.msra.mxu0 0.0
      %3158 = vmatpush.msra.mxu0 0.0
      %3159 = vmatpush.msra.mxu0 0.0
      %3160 = vmatpush.msra.mxu0 0.0
      %3161 = vmatpush.msra.mxu0 0.0
      %3162 = vmatpush.msra.mxu0 0.0
      %3163 = vmatpush.msra.mxu0 0.0
      %3164 = vmatpush.msra.mxu0 0.0
      %3165 = vmatpush.msra.mxu0 0.0
      %3166 = vmatpush.msra.mxu0 0.0
      %3167 = vmatpush.msra.mxu0 0.0
      %3168 = vmatpush.msra.mxu0 0.0
      %3169 = vmatpush.msra.mxu0 %v3149
      %3170 = vmatmul.f32.gmra.mxu0 %v3152
      %v3171 = vpop.f32.mrf.mxu0
      %v3172 = vadd.f32 0.0, %v3171
      %3173 = vdwg.mxu0
      %3174 = vrot.lane.b32.xlu0 %v2053, 112
      %v3175 = vpop.permute.xlu0 %3174
      %v3178 = vsel %vm2258, %v2983, 0
      %3180 = vmatpush.msra.mxu0 0.0
      %3181 = vmatpush.msra.mxu0 0.0
      %3182 = vmatpush.msra.mxu0 0.0
      %3183 = vmatpush.msra.mxu0 0.0
      %3184 = vmatpush.msra.mxu0 0.0
      %3185 = vmatpush.msra.mxu0 0.0
      %3186 = vmatpush.msra.mxu0 0.0
      %3187 = vmatpush.msra.mxu0 0.0
      %3188 = vmatpush.msra.mxu0 0.0
      %3189 = vmatpush.msra.mxu0 0.0
      %3190 = vmatpush.msra.mxu0 0.0
      %3191 = vmatpush.msra.mxu0 0.0
      %3192 = vmatpush.msra.mxu0 0.0
      %3193 = vmatpush.msra.mxu0 0.0
      %3194 = vmatpush.msra.mxu0 0.0
      %3195 = vmatpush.msra.mxu0 %v3175
      %3196 = vmatmul.f32.gmra.mxu0 %v3178
      %v3197 = vpop.f32.mrf.mxu0
      %v3198 = vadd.f32 0.0, %v3197
      %3199 = vdwg.mxu0
      %3200 = vrot.lane.b32.xlu0 %v2078, 112
      %v3201 = vpop.permute.xlu0 %3200
      %v3204 = vsel %vm2258, %v2984, 0
      %3206 = vmatpush.msra.mxu0 0.0
      %3207 = vmatpush.msra.mxu0 0.0
      %3208 = vmatpush.msra.mxu0 0.0
      %3209 = vmatpush.msra.mxu0 0.0
      %3210 = vmatpush.msra.mxu0 0.0
      %3211 = vmatpush.msra.mxu0 0.0
      %3212 = vmatpush.msra.mxu0 0.0
      %3213 = vmatpush.msra.mxu0 0.0
      %3214 = vmatpush.msra.mxu0 0.0
      %3215 = vmatpush.msra.mxu0 0.0
      %3216 = vmatpush.msra.mxu0 0.0
      %3217 = vmatpush.msra.mxu0 0.0
      %3218 = vmatpush.msra.mxu0 0.0
      %3219 = vmatpush.msra.mxu0 0.0
      %3220 = vmatpush.msra.mxu0 0.0
      %3221 = vmatpush.msra.mxu0 %v3201
      %3222 = vmatmul.f32.gmra.mxu0 %v3204
      %v3223 = vpop.f32.mrf.mxu0
      %v3224 = vadd.f32 0.0, %v3223
      %3225 = vdwg.mxu0
      %3226 = vrot.lane.b32.xlu0 %v2103, 112
      %v3227 = vpop.permute.xlu0 %3226
      %v3230 = vsel %vm2258, %v2985, 0
      %3232 = vmatpush.msra.mxu0 0.0
      %3233 = vmatpush.msra.mxu0 0.0
      %3234 = vmatpush.msra.mxu0 0.0
      %3235 = vmatpush.msra.mxu0 0.0
      %3236 = vmatpush.msra.mxu0 0.0
      %3237 = vmatpush.msra.mxu0 0.0
      %3238 = vmatpush.msra.mxu0 0.0
      %3239 = vmatpush.msra.mxu0 0.0
      %3240 = vmatpush.msra.mxu0 0.0
      %3241 = vmatpush.msra.mxu0 0.0
      %3242 = vmatpush.msra.mxu0 0.0
      %3243 = vmatpush.msra.mxu0 0.0
      %3244 = vmatpush.msra.mxu0 0.0
      %3245 = vmatpush.msra.mxu0 0.0
      %3246 = vmatpush.msra.mxu0 0.0
      %3247 = vmatpush.msra.mxu0 %v3227
      %3248 = vmatmul.f32.gmra.mxu0 %v3230
      %v3249 = vpop.f32.mrf.mxu0
      %v3250 = vadd.f32 0.0, %v3249
      %3251 = vdwg.mxu0
      %3252 = vrot.lane.b32.xlu0 %v2128, 112
      %v3253 = vpop.permute.xlu0 %3252
      %v3256 = vsel %vm2258, %v2986, 0
      %3258 = vmatpush.msra.mxu0 0.0
      %3259 = vmatpush.msra.mxu0 0.0
      %3260 = vmatpush.msra.mxu0 0.0
      %3261 = vmatpush.msra.mxu0 0.0
      %3262 = vmatpush.msra.mxu0 0.0
      %3263 = vmatpush.msra.mxu0 0.0
      %3264 = vmatpush.msra.mxu0 0.0
      %3265 = vmatpush.msra.mxu0 0.0
      %3266 = vmatpush.msra.mxu0 0.0
      %3267 = vmatpush.msra.mxu0 0.0
      %3268 = vmatpush.msra.mxu0 0.0
      %3269 = vmatpush.msra.mxu0 0.0
      %3270 = vmatpush.msra.mxu0 0.0
      %3271 = vmatpush.msra.mxu0 0.0
      %3272 = vmatpush.msra.mxu0 0.0
      %3273 = vmatpush.msra.mxu0 %v3253
      %3274 = vmatmul.f32.gmra.mxu0 %v3256
      %v3275 = vpop.f32.mrf.mxu0
      %v3276 = vadd.f32 0.0, %v3275
      %3277 = vdwg.mxu0
      %3278 = vrot.lane.b32.xlu0 %v2153, 112
      %v3279 = vpop.permute.xlu0 %3278
      %v3282 = vsel %vm2258, %v2987, 0
      %3284 = vmatpush.msra.mxu0 0.0
      %3285 = vmatpush.msra.mxu0 0.0
      %3286 = vmatpush.msra.mxu0 0.0
      %3287 = vmatpush.msra.mxu0 0.0
      %3288 = vmatpush.msra.mxu0 0.0
      %3289 = vmatpush.msra.mxu0 0.0
      %3290 = vmatpush.msra.mxu0 0.0
      %3291 = vmatpush.msra.mxu0 0.0
      %3292 = vmatpush.msra.mxu0 0.0
      %3293 = vmatpush.msra.mxu0 0.0
      %3294 = vmatpush.msra.mxu0 0.0
      %3295 = vmatpush.msra.mxu0 0.0
      %3296 = vmatpush.msra.mxu0 0.0
      %3297 = vmatpush.msra.mxu0 0.0
      %3298 = vmatpush.msra.mxu0 0.0
      %3299 = vmatpush.msra.mxu0 %v3279
      %3300 = vmatmul.f32.gmra.mxu0 %v3282
      %v3301 = vpop.f32.mrf.mxu0
      %v3302 = vadd.f32 0.0, %v3301
      %3303 = vdwg.mxu0
      %3304 = vrot.lane.b32.xlu0 %v2178, 112
      %v3305 = vpop.permute.xlu0 %3304
      %v3308 = vsel %vm2258, %v2988, 0
      %3310 = vmatpush.msra.mxu0 0.0
      %3311 = vmatpush.msra.mxu0 0.0
      %3312 = vmatpush.msra.mxu0 0.0
      %3313 = vmatpush.msra.mxu0 0.0
      %3314 = vmatpush.msra.mxu0 0.0
      %3315 = vmatpush.msra.mxu0 0.0
      %3316 = vmatpush.msra.mxu0 0.0
      %3317 = vmatpush.msra.mxu0 0.0
      %3318 = vmatpush.msra.mxu0 0.0
      %3319 = vmatpush.msra.mxu0 0.0
      %3320 = vmatpush.msra.mxu0 0.0
      %3321 = vmatpush.msra.mxu0 0.0
      %3322 = vmatpush.msra.mxu0 0.0
      %3323 = vmatpush.msra.mxu0 0.0
      %3324 = vmatpush.msra.mxu0 0.0
      %3325 = vmatpush.msra.mxu0 %v3305
      %3326 = vmatmul.f32.gmra.mxu0 %v3308
      %v3327 = vpop.f32.mrf.mxu0
      %v3328 = vadd.f32 0.0, %v3327
      %3329 = vdwg.mxu0
      %3330 = vrot.lane.b32.xlu0 %v2203, 112
      %v3331 = vpop.permute.xlu0 %3330
      %v3334 = vsel %vm2258, %v2989, 0
      %3336 = vmatpush.msra.mxu0 0.0
      %3337 = vmatpush.msra.mxu0 0.0
      %3338 = vmatpush.msra.mxu0 0.0
      %3339 = vmatpush.msra.mxu0 0.0
      %3340 = vmatpush.msra.mxu0 0.0
      %3341 = vmatpush.msra.mxu0 0.0
      %3342 = vmatpush.msra.mxu0 0.0
      %3343 = vmatpush.msra.mxu0 0.0
      %3344 = vmatpush.msra.mxu0 0.0
      %3345 = vmatpush.msra.mxu0 0.0
      %3346 = vmatpush.msra.mxu0 0.0
      %3347 = vmatpush.msra.mxu0 0.0
      %3348 = vmatpush.msra.mxu0 0.0
      %3349 = vmatpush.msra.mxu0 0.0
      %3350 = vmatpush.msra.mxu0 0.0
      %3351 = vmatpush.msra.mxu0 %v3331
      %3352 = vmatmul.f32.gmra.mxu0 %v3334
      %v3353 = vpop.f32.mrf.mxu0
      %v3354 = vadd.f32 0.0, %v3353
      %3355 = vdwg.mxu0
      %3356 = vrot.lane.b32.xlu0 %v2228, 112
      %v3357 = vpop.permute.xlu0 %3356
      %v3360 = vsel %vm2258, %v2990, 0
      %3362 = vmatpush.msra.mxu0 0.0
      %3363 = vmatpush.msra.mxu0 0.0
      %3364 = vmatpush.msra.mxu0 0.0
      %3365 = vmatpush.msra.mxu0 0.0
      %3366 = vmatpush.msra.mxu0 0.0
      %3367 = vmatpush.msra.mxu0 0.0
      %3368 = vmatpush.msra.mxu0 0.0
      %3369 = vmatpush.msra.mxu0 0.0
      %3370 = vmatpush.msra.mxu0 0.0
      %3371 = vmatpush.msra.mxu0 0.0
      %3372 = vmatpush.msra.mxu0 0.0
      %3373 = vmatpush.msra.mxu0 0.0
      %3374 = vmatpush.msra.mxu0 0.0
      %3375 = vmatpush.msra.mxu0 0.0
      %3376 = vmatpush.msra.mxu0 0.0
      %3377 = vmatpush.msra.mxu0 %v3357
      %3378 = vmatmul.f32.gmra.mxu0 %v3360
      %v3379 = vpop.f32.mrf.mxu0
      %v3380 = vadd.f32 0.0, %v3379
      %3381 = vdwg.mxu0
      %3382 = vrot.lane.b32.xlu0 %v2253, 112
      %v3383 = vpop.permute.xlu0 %3382
      %v3386 = vsel %vm2258, %v2991, 0
      %3388 = vmatpush.msra.mxu0 0.0
      %3389 = vmatpush.msra.mxu0 0.0
      %3390 = vmatpush.msra.mxu0 0.0
      %3391 = vmatpush.msra.mxu0 0.0
      %3392 = vmatpush.msra.mxu0 0.0
      %3393 = vmatpush.msra.mxu0 0.0
      %3394 = vmatpush.msra.mxu0 0.0
      %3395 = vmatpush.msra.mxu0 0.0
      %3396 = vmatpush.msra.mxu0 0.0
      %3397 = vmatpush.msra.mxu0 0.0
      %3398 = vmatpush.msra.mxu0 0.0
      %3399 = vmatpush.msra.mxu0 0.0
      %3400 = vmatpush.msra.mxu0 0.0
      %3401 = vmatpush.msra.mxu0 0.0
      %3402 = vmatpush.msra.mxu0 0.0
      %3403 = vmatpush.msra.mxu0 %v3383
      %3404 = vmatmul.f32.gmra.mxu0 %v3386
      %v3405 = vpop.f32.mrf.mxu0
      %v3406 = vadd.f32 0.0, %v3405
      %3407 = vdwg.mxu0
      %v3408 = vmax.f32 %v3016, 0.0
      %v3409 = vmax.f32 %v3042, 0.0
      %v3410 = vmax.f32 %v3068, 0.0
      %v3411 = vmax.f32 %v3094, 0.0
      %v3412 = vmax.f32 %v3120, 0.0
      %v3413 = vmax.f32 %v3146, 0.0
      %v3414 = vmax.f32 %v3172, 0.0
      %v3415 = vmax.f32 %v3198, 0.0
      %v3416 = vmax.f32 %v3224, 0.0
      %v3417 = vmax.f32 %v3250, 0.0
      %v3418 = vmax.f32 %v3276, 0.0
      %v3419 = vmax.f32 %v3302, 0.0
      %v3420 = vmax.f32 %v3328, 0.0
      %v3421 = vmax.f32 %v3354, 0.0
      %v3422 = vmax.f32 %v3380, 0.0
      %v3423 = vmax.f32 %v3406, 0.0
      %3424 = vxpose.xlu0.b32.start [1/16] %v3408, 128
      %3425 = vxpose.xlu0.b32.cont [2/16] 0.0, 128
      %3426 = vxpose.xlu0.b32.cont [3/16] 0.0, 128
      %3427 = vxpose.xlu0.b32.cont [4/16] 0.0, 128
      %3428 = vxpose.xlu0.b32.cont [5/16] 0.0, 128
      %3429 = vxpose.xlu0.b32.cont [6/16] 0.0, 128
      %3430 = vxpose.xlu0.b32.cont [7/16] 0.0, 128
      %3431 = vxpose.xlu0.b32.cont [8/16] 0.0, 128
      %3432 = vxpose.xlu0.b32.cont [9/16] 0.0, 128
      %3433 = vxpose.xlu0.b32.cont [10/16] 0.0, 128
      %3434 = vxpose.xlu0.b32.cont [11/16] 0.0, 128
      %3435 = vxpose.xlu0.b32.cont [12/16] 0.0, 128
      %3436 = vxpose.xlu0.b32.cont [13/16] 0.0, 128
      %3437 = vxpose.xlu0.b32.cont [14/16] 0.0, 128
      %3438 = vxpose.xlu0.b32.cont [15/16] 0.0, 128
      %3439 = vxpose.xlu0.b32.end [16/16] 0.0, 128
      %v3440 = vpop.trf.xlu0
      %v3441 = vpop.trf.xlu0
      %v3442 = vpop.trf.xlu0
      %v3443 = vpop.trf.xlu0
      %v3444 = vpop.trf.xlu0
      %v3445 = vpop.trf.xlu0
      %v3446 = vpop.trf.xlu0
      %v3447 = vpop.trf.xlu0
      %v3448 = vpop.trf.xlu0
      %v3449 = vpop.trf.xlu0
      %v3450 = vpop.trf.xlu0
      %v3451 = vpop.trf.xlu0
      %v3452 = vpop.trf.xlu0
      %v3453 = vpop.trf.xlu0
      %v3454 = vpop.trf.xlu0
      %v3455 = vpop.trf.xlu0
      %v3456 = vadd.f32 %v3408, %v3440
      %v3457 = vmul.f32 %v3456, 0.5
      %3458 = vst.msk [vmem:[%s274] sm:$0xff] %vm2258, %v3457
      %3459 = vxpose.xlu0.b32.start [1/16] %v3409, 128
      %3460 = vxpose.xlu0.b32.cont [2/16] 0.0, 128
      %3461 = vxpose.xlu0.b32.cont [3/16] 0.0, 128
      %3462 = vxpose.xlu0.b32.cont [4/16] 0.0, 128
      %3463 = vxpose.xlu0.b32.cont [5/16] 0.0, 128
      %3464 = vxpose.xlu0.b32.cont [6/16] 0.0, 128
      %3465 = vxpose.xlu0.b32.cont [7/16] 0.0, 128
      %3466 = vxpose.xlu0.b32.cont [8/16] 0.0, 128
      %3467 = vxpose.xlu0.b32.cont [9/16] 0.0, 128
      %3468 = vxpose.xlu0.b32.cont [10/16] 0.0, 128
      %3469 = vxpose.xlu0.b32.cont [11/16] 0.0, 128
      %3470 = vxpose.xlu0.b32.cont [12/16] 0.0, 128
      %3471 = vxpose.xlu0.b32.cont [13/16] 0.0, 128
      %3472 = vxpose.xlu0.b32.cont [14/16] 0.0, 128
      %3473 = vxpose.xlu0.b32.cont [15/16] 0.0, 128
      %3474 = vxpose.xlu0.b32.end [16/16] 0.0, 128
      %v3475 = vpop.trf.xlu0
      %v3476 = vpop.trf.xlu0
      %v3477 = vpop.trf.xlu0
      %v3478 = vpop.trf.xlu0
      %v3479 = vpop.trf.xlu0
      %v3480 = vpop.trf.xlu0
      %v3481 = vpop.trf.xlu0
      %v3482 = vpop.trf.xlu0
      %v3483 = vpop.trf.xlu0
      %v3484 = vpop.trf.xlu0
      %v3485 = vpop.trf.xlu0
      %v3486 = vpop.trf.xlu0
      %v3487 = vpop.trf.xlu0
      %v3488 = vpop.trf.xlu0
      %v3489 = vpop.trf.xlu0
      %v3490 = vpop.trf.xlu0
      %v3491 = vadd.f32 %v3409, %v3475
      %v3492 = vmul.f32 %v3491, 0.5
      %3494 = vrot.lane.b32.xlu0 %v3492, 8
      %v3495 = vpop.permute.xlu0 %3494
      %vm3497 = vcmask 130112
      %3498 = vst.msk [vmem:[%s274] sm:$0xff] %vm3497, %v3495
      %3499 = vxpose.xlu0.b32.start [1/16] %v3410, 128
      %3500 = vxpose.xlu0.b32.cont [2/16] 0.0, 128
      %3501 = vxpose.xlu0.b32.cont [3/16] 0.0, 128
      %3502 = vxpose.xlu0.b32.cont [4/16] 0.0, 128
      %3503 = vxpose.xlu0.b32.cont [5/16] 0.0, 128
      %3504 = vxpose.xlu0.b32.cont [6/16] 0.0, 128
      %3505 = vxpose.xlu0.b32.cont [7/16] 0.0, 128
      %3506 = vxpose.xlu0.b32.cont [8/16] 0.0, 128
      %3507 = vxpose.xlu0.b32.cont [9/16] 0.0, 128
      %3508 = vxpose.xlu0.b32.cont [10/16] 0.0, 128
      %3509 = vxpose.xlu0.b32.cont [11/16] 0.0, 128
      %3510 = vxpose.xlu0.b32.cont [12/16] 0.0, 128
      %3511 = vxpose.xlu0.b32.cont [13/16] 0.0, 128
      %3512 = vxpose.xlu0.b32.cont [14/16] 0.0, 128
      %3513 = vxpose.xlu0.b32.cont [15/16] 0.0, 128
      %3514 = vxpose.xlu0.b32.end [16/16] 0.0, 128
      %v3515 = vpop.trf.xlu0
      %v3516 = vpop.trf.xlu0
      %v3517 = vpop.trf.xlu0
      %v3518 = vpop.trf.xlu0
      %v3519 = vpop.trf.xlu0
      %v3520 = vpop.trf.xlu0
      %v3521 = vpop.trf.xlu0
      %v3522 = vpop.trf.xlu0
      %v3523 = vpop.trf.xlu0
      %v3524 = vpop.trf.xlu0
      %v3525 = vpop.trf.xlu0
      %v3526 = vpop.trf.xlu0
      %v3527 = vpop.trf.xlu0
      %v3528 = vpop.trf.xlu0
      %v3529 = vpop.trf.xlu0
      %v3530 = vpop.trf.xlu0
      %v3531 = vadd.f32 %v3410, %v3515
      %v3532 = vmul.f32 %v3531, 0.5
      %3534 = vrot.lane.b32.xlu0 %v3532, 16
      %v3535 = vpop.permute.xlu0 %3534
      %vm3537 = vcmask 195712
      %3538 = vst.msk [vmem:[%s274] sm:$0xff] %vm3537, %v3535
      %3539 = vxpose.xlu0.b32.start [1/16] %v3411, 128
      %3540 = vxpose.xlu0.b32.cont [2/16] 0.0, 128
      %3541 = vxpose.xlu0.b32.cont [3/16] 0.0, 128
      %3542 = vxpose.xlu0.b32.cont [4/16] 0.0, 128
      %3543 = vxpose.xlu0.b32.cont [5/16] 0.0, 128
      %3544 = vxpose.xlu0.b32.cont [6/16] 0.0, 128
      %3545 = vxpose.xlu0.b32.cont [7/16] 0.0, 128
      %3546 = vxpose.xlu0.b32.cont [8/16] 0.0, 128
      %3547 = vxpose.xlu0.b32.cont [9/16] 0.0, 128
      %3548 = vxpose.xlu0.b32.cont [10/16] 0.0, 128
      %3549 = vxpose.xlu0.b32.cont [11/16] 0.0, 128
      %3550 = vxpose.xlu0.b32.cont [12/16] 0.0, 128
      %3551 = vxpose.xlu0.b32.cont [13/16] 0.0, 128
      %3552 = vxpose.xlu0.b32.cont [14/16] 0.0, 128
      %3553 = vxpose.xlu0.b32.cont [15/16] 0.0, 128
      %3554 = vxpose.xlu0.b32.end [16/16] 0.0, 128
      %v3555 = vpop.trf.xlu0
      %v3556 = vpop.trf.xlu0
      %v3557 = vpop.trf.xlu0
      %v3558 = vpop.trf.xlu0
      %v3559 = vpop.trf.xlu0
      %v3560 = vpop.trf.xlu0
      %v3561 = vpop.trf.xlu0
      %v3562 = vpop.trf.xlu0
      %v3563 = vpop.trf.xlu0
      %v3564 = vpop.trf.xlu0
      %v3565 = vpop.trf.xlu0
      %v3566 = vpop.trf.xlu0
      %v3567 = vpop.trf.xlu0
      %v3568 = vpop.trf.xlu0
      %v3569 = vpop.trf.xlu0
      %v3570 = vpop.trf.xlu0
      %v3571 = vadd.f32 %v3411, %v3555
      %v3572 = vmul.f32 %v3571, 0.5
      %3574 = vrot.lane.b32.xlu0 %v3572, 24
      %v3575 = vpop.permute.xlu0 %3574
      %vm3577 = vcmask 261312
      %3578 = vst.msk [vmem:[%s274] sm:$0xff] %vm3577, %v3575
      %3579 = vxpose.xlu0.b32.start [1/16] %v3412, 128
      %3580 = vxpose.xlu0.b32.cont [2/16] 0.0, 128
      %3581 = vxpose.xlu0.b32.cont [3/16] 0.0, 128
      %3582 = vxpose.xlu0.b32.cont [4/16] 0.0, 128
      %3583 = vxpose.xlu0.b32.cont [5/16] 0.0, 128
      %3584 = vxpose.xlu0.b32.cont [6/16] 0.0, 128
      %3585 = vxpose.xlu0.b32.cont [7/16] 0.0, 128
      %3586 = vxpose.xlu0.b32.cont [8/16] 0.0, 128
      %3587 = vxpose.xlu0.b32.cont [9/16] 0.0, 128
      %3588 = vxpose.xlu0.b32.cont [10/16] 0.0, 128
      %3589 = vxpose.xlu0.b32.cont [11/16] 0.0, 128
      %3590 = vxpose.xlu0.b32.cont [12/16] 0.0, 128
      %3591 = vxpose.xlu0.b32.cont [13/16] 0.0, 128
      %3592 = vxpose.xlu0.b32.cont [14/16] 0.0, 128
      %3593 = vxpose.xlu0.b32.cont [15/16] 0.0, 128
      %3594 = vxpose.xlu0.b32.end [16/16] 0.0, 128
      %v3595 = vpop.trf.xlu0
      %v3596 = vpop.trf.xlu0
      %v3597 = vpop.trf.xlu0
      %v3598 = vpop.trf.xlu0
      %v3599 = vpop.trf.xlu0
      %v3600 = vpop.trf.xlu0
      %v3601 = vpop.trf.xlu0
      %v3602 = vpop.trf.xlu0
      %v3603 = vpop.trf.xlu0
      %v3604 = vpop.trf.xlu0
      %v3605 = vpop.trf.xlu0
      %v3606 = vpop.trf.xlu0
      %v3607 = vpop.trf.xlu0
      %v3608 = vpop.trf.xlu0
      %v3609 = vpop.trf.xlu0
      %v3610 = vpop.trf.xlu0
      %v3611 = vadd.f32 %v3412, %v3595
      %v3612 = vmul.f32 %v3611, 0.5
      %3614 = vrot.lane.b32.xlu0 %v3612, 32
      %v3615 = vpop.permute.xlu0 %3614
      %vm3617 = vcmask 326912
      %3618 = vst.msk [vmem:[%s274] sm:$0xff] %vm3617, %v3615
      %3619 = vxpose.xlu0.b32.start [1/16] %v3413, 128
      %3620 = vxpose.xlu0.b32.cont [2/16] 0.0, 128
      %3621 = vxpose.xlu0.b32.cont [3/16] 0.0, 128
      %3622 = vxpose.xlu0.b32.cont [4/16] 0.0, 128
      %3623 = vxpose.xlu0.b32.cont [5/16] 0.0, 128
      %3624 = vxpose.xlu0.b32.cont [6/16] 0.0, 128
      %3625 = vxpose.xlu0.b32.cont [7/16] 0.0, 128
      %3626 = vxpose.xlu0.b32.cont [8/16] 0.0, 128
      %3627 = vxpose.xlu0.b32.cont [9/16] 0.0, 128
      %3628 = vxpose.xlu0.b32.cont [10/16] 0.0, 128
      %3629 = vxpose.xlu0.b32.cont [11/16] 0.0, 128
      %3630 = vxpose.xlu0.b32.cont [12/16] 0.0, 128
      %3631 = vxpose.xlu0.b32.cont [13/16] 0.0, 128
      %3632 = vxpose.xlu0.b32.cont [14/16] 0.0, 128
      %3633 = vxpose.xlu0.b32.cont [15/16] 0.0, 128
      %3634 = vxpose.xlu0.b32.end [16/16] 0.0, 128
      %v3635 = vpop.trf.xlu0
      %v3636 = vpop.trf.xlu0
      %v3637 = vpop.trf.xlu0
      %v3638 = vpop.trf.xlu0
      %v3639 = vpop.trf.xlu0
      %v3640 = vpop.trf.xlu0
      %v3641 = vpop.trf.xlu0
      %v3642 = vpop.trf.xlu0
      %v3643 = vpop.trf.xlu0
      %v3644 = vpop.trf.xlu0
      %v3645 = vpop.trf.xlu0
      %v3646 = vpop.trf.xlu0
      %v3647 = vpop.trf.xlu0
      %v3648 = vpop.trf.xlu0
      %v3649 = vpop.trf.xlu0
      %v3650 = vpop.trf.xlu0
      %v3651 = vadd.f32 %v3413, %v3635
      %v3652 = vmul.f32 %v3651, 0.5
      %3654 = vrot.lane.b32.xlu0 %v3652, 40
      %v3655 = vpop.permute.xlu0 %3654
      %vm3657 = vcmask 392512
      %3658 = vst.msk [vmem:[%s274] sm:$0xff] %vm3657, %v3655
      %3659 = vxpose.xlu0.b32.start [1/16] %v3414, 128
      %3660 = vxpose.xlu0.b32.cont [2/16] 0.0, 128
      %3661 = vxpose.xlu0.b32.cont [3/16] 0.0, 128
      %3662 = vxpose.xlu0.b32.cont [4/16] 0.0, 128
      %3663 = vxpose.xlu0.b32.cont [5/16] 0.0, 128
      %3664 = vxpose.xlu0.b32.cont [6/16] 0.0, 128
      %3665 = vxpose.xlu0.b32.cont [7/16] 0.0, 128
      %3666 = vxpose.xlu0.b32.cont [8/16] 0.0, 128
      %3667 = vxpose.xlu0.b32.cont [9/16] 0.0, 128
      %3668 = vxpose.xlu0.b32.cont [10/16] 0.0, 128
      %3669 = vxpose.xlu0.b32.cont [11/16] 0.0, 128
      %3670 = vxpose.xlu0.b32.cont [12/16] 0.0, 128
      %3671 = vxpose.xlu0.b32.cont [13/16] 0.0, 128
      %3672 = vxpose.xlu0.b32.cont [14/16] 0.0, 128
      %3673 = vxpose.xlu0.b32.cont [15/16] 0.0, 128
      %3674 = vxpose.xlu0.b32.end [16/16] 0.0, 128
      %v3675 = vpop.trf.xlu0
      %v3676 = vpop.trf.xlu0
      %v3677 = vpop.trf.xlu0
      %v3678 = vpop.trf.xlu0
      %v3679 = vpop.trf.xlu0
      %v3680 = vpop.trf.xlu0
      %v3681 = vpop.trf.xlu0
      %v3682 = vpop.trf.xlu0
      %v3683 = vpop.trf.xlu0
      %v3684 = vpop.trf.xlu0
      %v3685 = vpop.trf.xlu0
      %v3686 = vpop.trf.xlu0
      %v3687 = vpop.trf.xlu0
      %v3688 = vpop.trf.xlu0
      %v3689 = vpop.trf.xlu0
      %v3690 = vpop.trf.xlu0
      %v3691 = vadd.f32 %v3414, %v3675
      %v3692 = vmul.f32 %v3691, 0.5
      %3694 = vrot.lane.b32.xlu0 %v3692, 48
      %v3695 = vpop.permute.xlu0 %3694
      %vm3697 = vcmask 458112
      %3698 = vst.msk [vmem:[%s274] sm:$0xff] %vm3697, %v3695
      %3699 = vxpose.xlu0.b32.start [1/16] %v3415, 128
      %3700 = vxpose.xlu0.b32.cont [2/16] 0.0, 128
      %3701 = vxpose.xlu0.b32.cont [3/16] 0.0, 128
      %3702 = vxpose.xlu0.b32.cont [4/16] 0.0, 128
      %3703 = vxpose.xlu0.b32.cont [5/16] 0.0, 128
      %3704 = vxpose.xlu0.b32.cont [6/16] 0.0, 128
      %3705 = vxpose.xlu0.b32.cont [7/16] 0.0, 128
      %3706 = vxpose.xlu0.b32.cont [8/16] 0.0, 128
      %3707 = vxpose.xlu0.b32.cont [9/16] 0.0, 128
      %3708 = vxpose.xlu0.b32.cont [10/16] 0.0, 128
      %3709 = vxpose.xlu0.b32.cont [11/16] 0.0, 128
      %3710 = vxpose.xlu0.b32.cont [12/16] 0.0, 128
      %3711 = vxpose.xlu0.b32.cont [13/16] 0.0, 128
      %3712 = vxpose.xlu0.b32.cont [14/16] 0.0, 128
      %3713 = vxpose.xlu0.b32.cont [15/16] 0.0, 128
      %3714 = vxpose.xlu0.b32.end [16/16] 0.0, 128
      %v3715 = vpop.trf.xlu0
      %v3716 = vpop.trf.xlu0
      %v3717 = vpop.trf.xlu0
      %v3718 = vpop.trf.xlu0
      %v3719 = vpop.trf.xlu0
      %v3720 = vpop.trf.xlu0
      %v3721 = vpop.trf.xlu0
      %v3722 = vpop.trf.xlu0
      %v3723 = vpop.trf.xlu0
      %v3724 = vpop.trf.xlu0
      %v3725 = vpop.trf.xlu0
      %v3726 = vpop.trf.xlu0
      %v3727 = vpop.trf.xlu0
      %v3728 = vpop.trf.xlu0
      %v3729 = vpop.trf.xlu0
      %v3730 = vpop.trf.xlu0
      %v3731 = vadd.f32 %v3415, %v3715
      %v3732 = vmul.f32 %v3731, 0.5
      %3734 = vrot.lane.b32.xlu0 %v3732, 56
      %v3735 = vpop.permute.xlu0 %3734
      %vm3737 = vcmask 523712
      %3738 = vst.msk [vmem:[%s274] sm:$0xff] %vm3737, %v3735
      %3739 = vxpose.xlu0.b32.start [1/16] %v3416, 128
      %3740 = vxpose.xlu0.b32.cont [2/16] 0.0, 128
      %3741 = vxpose.xlu0.b32.cont [3/16] 0.0, 128
      %3742 = vxpose.xlu0.b32.cont [4/16] 0.0, 128
      %3743 = vxpose.xlu0.b32.cont [5/16] 0.0, 128
      %3744 = vxpose.xlu0.b32.cont [6/16] 0.0, 128
      %3745 = vxpose.xlu0.b32.cont [7/16] 0.0, 128
      %3746 = vxpose.xlu0.b32.cont [8/16] 0.0, 128
      %3747 = vxpose.xlu0.b32.cont [9/16] 0.0, 128
      %3748 = vxpose.xlu0.b32.cont [10/16] 0.0, 128
      %3749 = vxpose.xlu0.b32.cont [11/16] 0.0, 128
      %3750 = vxpose.xlu0.b32.cont [12/16] 0.0, 128
      %3751 = vxpose.xlu0.b32.cont [13/16] 0.0, 128
      %3752 = vxpose.xlu0.b32.cont [14/16] 0.0, 128
      %3753 = vxpose.xlu0.b32.cont [15/16] 0.0, 128
      %3754 = vxpose.xlu0.b32.end [16/16] 0.0, 128
      %v3755 = vpop.trf.xlu0
      %v3756 = vpop.trf.xlu0
      %v3757 = vpop.trf.xlu0
      %v3758 = vpop.trf.xlu0
      %v3759 = vpop.trf.xlu0
      %v3760 = vpop.trf.xlu0
      %v3761 = vpop.trf.xlu0
      %v3762 = vpop.trf.xlu0
      %v3763 = vpop.trf.xlu0
      %v3764 = vpop.trf.xlu0
      %v3765 = vpop.trf.xlu0
      %v3766 = vpop.trf.xlu0
      %v3767 = vpop.trf.xlu0
      %v3768 = vpop.trf.xlu0
      %v3769 = vpop.trf.xlu0
      %v3770 = vpop.trf.xlu0
      %v3771 = vadd.f32 %v3416, %v3755
      %v3772 = vmul.f32 %v3771, 0.5
      %3774 = vrot.lane.b32.xlu0 %v3772, 64
      %v3775 = vpop.permute.xlu0 %3774
      %vm3777 = vcmask 589312
      %3778 = vst.msk [vmem:[%s274] sm:$0xff] %vm3777, %v3775
      %3779 = vxpose.xlu0.b32.start [1/16] %v3417, 128
      %3780 = vxpose.xlu0.b32.cont [2/16] 0.0, 128
      %3781 = vxpose.xlu0.b32.cont [3/16] 0.0, 128
      %3782 = vxpose.xlu0.b32.cont [4/16] 0.0, 128
      %3783 = vxpose.xlu0.b32.cont [5/16] 0.0, 128
      %3784 = vxpose.xlu0.b32.cont [6/16] 0.0, 128
      %3785 = vxpose.xlu0.b32.cont [7/16] 0.0, 128
      %3786 = vxpose.xlu0.b32.cont [8/16] 0.0, 128
      %3787 = vxpose.xlu0.b32.cont [9/16] 0.0, 128
      %3788 = vxpose.xlu0.b32.cont [10/16] 0.0, 128
      %3789 = vxpose.xlu0.b32.cont [11/16] 0.0, 128
      %3790 = vxpose.xlu0.b32.cont [12/16] 0.0, 128
      %3791 = vxpose.xlu0.b32.cont [13/16] 0.0, 128
      %3792 = vxpose.xlu0.b32.cont [14/16] 0.0, 128
      %3793 = vxpose.xlu0.b32.cont [15/16] 0.0, 128
      %3794 = vxpose.xlu0.b32.end [16/16] 0.0, 128
      %v3795 = vpop.trf.xlu0
      %v3796 = vpop.trf.xlu0
      %v3797 = vpop.trf.xlu0
      %v3798 = vpop.trf.xlu0
      %v3799 = vpop.trf.xlu0
      %v3800 = vpop.trf.xlu0
      %v3801 = vpop.trf.xlu0
      %v3802 = vpop.trf.xlu0
      %v3803 = vpop.trf.xlu0
      %v3804 = vpop.trf.xlu0
      %v3805 = vpop.trf.xlu0
      %v3806 = vpop.trf.xlu0
      %v3807 = vpop.trf.xlu0
      %v3808 = vpop.trf.xlu0
      %v3809 = vpop.trf.xlu0
      %v3810 = vpop.trf.xlu0
      %v3811 = vadd.f32 %v3417, %v3795
      %v3812 = vmul.f32 %v3811, 0.5
      %3814 = vrot.lane.b32.xlu0 %v3812, 72
      %v3815 = vpop.permute.xlu0 %3814
      %vm3817 = vcmask 654912
      %3818 = vst.msk [vmem:[%s274] sm:$0xff] %vm3817, %v3815
      %3819 = vxpose.xlu0.b32.start [1/16] %v3418, 128
      %3820 = vxpose.xlu0.b32.cont [2/16] 0.0, 128
      %3821 = vxpose.xlu0.b32.cont [3/16] 0.0, 128
      %3822 = vxpose.xlu0.b32.cont [4/16] 0.0, 128
      %3823 = vxpose.xlu0.b32.cont [5/16] 0.0, 128
      %3824 = vxpose.xlu0.b32.cont [6/16] 0.0, 128
      %3825 = vxpose.xlu0.b32.cont [7/16] 0.0, 128
      %3826 = vxpose.xlu0.b32.cont [8/16] 0.0, 128
      %3827 = vxpose.xlu0.b32.cont [9/16] 0.0, 128
      %3828 = vxpose.xlu0.b32.cont [10/16] 0.0, 128
      %3829 = vxpose.xlu0.b32.cont [11/16] 0.0, 128
      %3830 = vxpose.xlu0.b32.cont [12/16] 0.0, 128
      %3831 = vxpose.xlu0.b32.cont [13/16] 0.0, 128
      %3832 = vxpose.xlu0.b32.cont [14/16] 0.0, 128
      %3833 = vxpose.xlu0.b32.cont [15/16] 0.0, 128
      %3834 = vxpose.xlu0.b32.end [16/16] 0.0, 128
      %v3835 = vpop.trf.xlu0
      %v3836 = vpop.trf.xlu0
      %v3837 = vpop.trf.xlu0
      %v3838 = vpop.trf.xlu0
      %v3839 = vpop.trf.xlu0
      %v3840 = vpop.trf.xlu0
      %v3841 = vpop.trf.xlu0
      %v3842 = vpop.trf.xlu0
      %v3843 = vpop.trf.xlu0
      %v3844 = vpop.trf.xlu0
      %v3845 = vpop.trf.xlu0
      %v3846 = vpop.trf.xlu0
      %v3847 = vpop.trf.xlu0
      %v3848 = vpop.trf.xlu0
      %v3849 = vpop.trf.xlu0
      %v3850 = vpop.trf.xlu0
      %v3851 = vadd.f32 %v3418, %v3835
      %v3852 = vmul.f32 %v3851, 0.5
      %3854 = vrot.lane.b32.xlu0 %v3852, 80
      %v3855 = vpop.permute.xlu0 %3854
      %vm3857 = vcmask 720512
      %3858 = vst.msk [vmem:[%s274] sm:$0xff] %vm3857, %v3855
      %3859 = vxpose.xlu0.b32.start [1/16] %v3419, 128
      %3860 = vxpose.xlu0.b32.cont [2/16] 0.0, 128
      %3861 = vxpose.xlu0.b32.cont [3/16] 0.0, 128
      %3862 = vxpose.xlu0.b32.cont [4/16] 0.0, 128
      %3863 = vxpose.xlu0.b32.cont [5/16] 0.0, 128
      %3864 = vxpose.xlu0.b32.cont [6/16] 0.0, 128
      %3865 = vxpose.xlu0.b32.cont [7/16] 0.0, 128
      %3866 = vxpose.xlu0.b32.cont [8/16] 0.0, 128
      %3867 = vxpose.xlu0.b32.cont [9/16] 0.0, 128
      %3868 = vxpose.xlu0.b32.cont [10/16] 0.0, 128
      %3869 = vxpose.xlu0.b32.cont [11/16] 0.0, 128
      %3870 = vxpose.xlu0.b32.cont [12/16] 0.0, 128
      %3871 = vxpose.xlu0.b32.cont [13/16] 0.0, 128
      %3872 = vxpose.xlu0.b32.cont [14/16] 0.0, 128
      %3873 = vxpose.xlu0.b32.cont [15/16] 0.0, 128
      %3874 = vxpose.xlu0.b32.end [16/16] 0.0, 128
      %v3875 = vpop.trf.xlu0
      %v3876 = vpop.trf.xlu0
      %v3877 = vpop.trf.xlu0
      %v3878 = vpop.trf.xlu0
      %v3879 = vpop.trf.xlu0
      %v3880 = vpop.trf.xlu0
      %v3881 = vpop.trf.xlu0
      %v3882 = vpop.trf.xlu0
      %v3883 = vpop.trf.xlu0
      %v3884 = vpop.trf.xlu0
      %v3885 = vpop.trf.xlu0
      %v3886 = vpop.trf.xlu0
      %v3887 = vpop.trf.xlu0
      %v3888 = vpop.trf.xlu0
      %v3889 = vpop.trf.xlu0
      %v3890 = vpop.trf.xlu0
      %v3891 = vadd.f32 %v3419, %v3875
      %v3892 = vmul.f32 %v3891, 0.5
      %3894 = vrot.lane.b32.xlu0 %v3892, 88
      %v3895 = vpop.permute.xlu0 %3894
      %vm3897 = vcmask 786112
      %3898 = vst.msk [vmem:[%s274] sm:$0xff] %vm3897, %v3895
      %3899 = vxpose.xlu0.b32.start [1/16] %v3420, 128
      %3900 = vxpose.xlu0.b32.cont [2/16] 0.0, 128
      %3901 = vxpose.xlu0.b32.cont [3/16] 0.0, 128
      %3902 = vxpose.xlu0.b32.cont [4/16] 0.0, 128
      %3903 = vxpose.xlu0.b32.cont [5/16] 0.0, 128
      %3904 = vxpose.xlu0.b32.cont [6/16] 0.0, 128
      %3905 = vxpose.xlu0.b32.cont [7/16] 0.0, 128
      %3906 = vxpose.xlu0.b32.cont [8/16] 0.0, 128
      %3907 = vxpose.xlu0.b32.cont [9/16] 0.0, 128
      %3908 = vxpose.xlu0.b32.cont [10/16] 0.0, 128
      %3909 = vxpose.xlu0.b32.cont [11/16] 0.0, 128
      %3910 = vxpose.xlu0.b32.cont [12/16] 0.0, 128
      %3911 = vxpose.xlu0.b32.cont [13/16] 0.0, 128
      %3912 = vxpose.xlu0.b32.cont [14/16] 0.0, 128
      %3913 = vxpose.xlu0.b32.cont [15/16] 0.0, 128
      %3914 = vxpose.xlu0.b32.end [16/16] 0.0, 128
      %v3915 = vpop.trf.xlu0
      %v3916 = vpop.trf.xlu0
      %v3917 = vpop.trf.xlu0
      %v3918 = vpop.trf.xlu0
      %v3919 = vpop.trf.xlu0
      %v3920 = vpop.trf.xlu0
      %v3921 = vpop.trf.xlu0
      %v3922 = vpop.trf.xlu0
      %v3923 = vpop.trf.xlu0
      %v3924 = vpop.trf.xlu0
      %v3925 = vpop.trf.xlu0
      %v3926 = vpop.trf.xlu0
      %v3927 = vpop.trf.xlu0
      %v3928 = vpop.trf.xlu0
      %v3929 = vpop.trf.xlu0
      %v3930 = vpop.trf.xlu0
      %v3931 = vadd.f32 %v3420, %v3915
      %v3932 = vmul.f32 %v3931, 0.5
      %3934 = vrot.lane.b32.xlu0 %v3932, 96
      %v3935 = vpop.permute.xlu0 %3934
      %vm3937 = vcmask 851712
      %3938 = vst.msk [vmem:[%s274] sm:$0xff] %vm3937, %v3935
      %3939 = vxpose.xlu0.b32.start [1/16] %v3421, 128
      %3940 = vxpose.xlu0.b32.cont [2/16] 0.0, 128
      %3941 = vxpose.xlu0.b32.cont [3/16] 0.0, 128
      %3942 = vxpose.xlu0.b32.cont [4/16] 0.0, 128
      %3943 = vxpose.xlu0.b32.cont [5/16] 0.0, 128
      %3944 = vxpose.xlu0.b32.cont [6/16] 0.0, 128
      %3945 = vxpose.xlu0.b32.cont [7/16] 0.0, 128
      %3946 = vxpose.xlu0.b32.cont [8/16] 0.0, 128
      %3947 = vxpose.xlu0.b32.cont [9/16] 0.0, 128
      %3948 = vxpose.xlu0.b32.cont [10/16] 0.0, 128
      %3949 = vxpose.xlu0.b32.cont [11/16] 0.0, 128
      %3950 = vxpose.xlu0.b32.cont [12/16] 0.0, 128
      %3951 = vxpose.xlu0.b32.cont [13/16] 0.0, 128
      %3952 = vxpose.xlu0.b32.cont [14/16] 0.0, 128
      %3953 = vxpose.xlu0.b32.cont [15/16] 0.0, 128
      %3954 = vxpose.xlu0.b32.end [16/16] 0.0, 128
      %v3955 = vpop.trf.xlu0
      %v3956 = vpop.trf.xlu0
      %v3957 = vpop.trf.xlu0
      %v3958 = vpop.trf.xlu0
      %v3959 = vpop.trf.xlu0
      %v3960 = vpop.trf.xlu0
      %v3961 = vpop.trf.xlu0
      %v3962 = vpop.trf.xlu0
      %v3963 = vpop.trf.xlu0
      %v3964 = vpop.trf.xlu0
      %v3965 = vpop.trf.xlu0
      %v3966 = vpop.trf.xlu0
      %v3967 = vpop.trf.xlu0
      %v3968 = vpop.trf.xlu0
      %v3969 = vpop.trf.xlu0
      %v3970 = vpop.trf.xlu0
      %v3971 = vadd.f32 %v3421, %v3955
      %v3972 = vmul.f32 %v3971, 0.5
      %3974 = vrot.lane.b32.xlu0 %v3972, 104
      %v3975 = vpop.permute.xlu0 %3974
      %vm3977 = vcmask 917312
      %3978 = vst.msk [vmem:[%s274] sm:$0xff] %vm3977, %v3975
      %3979 = vxpose.xlu0.b32.start [1/16] %v3422, 128
      %3980 = vxpose.xlu0.b32.cont [2/16] 0.0, 128
      %3981 = vxpose.xlu0.b32.cont [3/16] 0.0, 128
      %3982 = vxpose.xlu0.b32.cont [4/16] 0.0, 128
      %3983 = vxpose.xlu0.b32.cont [5/16] 0.0, 128
      %3984 = vxpose.xlu0.b32.cont [6/16] 0.0, 128
      %3985 = vxpose.xlu0.b32.cont [7/16] 0.0, 128
      %3986 = vxpose.xlu0.b32.cont [8/16] 0.0, 128
      %3987 = vxpose.xlu0.b32.cont [9/16] 0.0, 128
      %3988 = vxpose.xlu0.b32.cont [10/16] 0.0, 128
      %3989 = vxpose.xlu0.b32.cont [11/16] 0.0, 128
      %3990 = vxpose.xlu0.b32.cont [12/16] 0.0, 128
      %3991 = vxpose.xlu0.b32.cont [13/16] 0.0, 128
      %3992 = vxpose.xlu0.b32.cont [14/16] 0.0, 128
      %3993 = vxpose.xlu0.b32.cont [15/16] 0.0, 128
      %3994 = vxpose.xlu0.b32.end [16/16] 0.0, 128
      %v3995 = vpop.trf.xlu0
      %v3996 = vpop.trf.xlu0
      %v3997 = vpop.trf.xlu0
      %v3998 = vpop.trf.xlu0
      %v3999 = vpop.trf.xlu0
      %v4000 = vpop.trf.xlu0
      %v4001 = vpop.trf.xlu0
      %v4002 = vpop.trf.xlu0
      %v4003 = vpop.trf.xlu0
      %v4004 = vpop.trf.xlu0
      %v4005 = vpop.trf.xlu0
      %v4006 = vpop.trf.xlu0
      %v4007 = vpop.trf.xlu0
      %v4008 = vpop.trf.xlu0
      %v4009 = vpop.trf.xlu0
      %v4010 = vpop.trf.xlu0
      %v4011 = vadd.f32 %v3422, %v3995
      %v4012 = vmul.f32 %v4011, 0.5
      %4014 = vrot.lane.b32.xlu0 %v4012, 112
      %v4015 = vpop.permute.xlu0 %4014
      %vm4017 = vcmask 982912
      %4018 = vst.msk [vmem:[%s274] sm:$0xff] %vm4017, %v4015
      %4019 = vxpose.xlu0.b32.start [1/16] %v3423, 128
      %4020 = vxpose.xlu0.b32.cont [2/16] 0.0, 128
      %4021 = vxpose.xlu0.b32.cont [3/16] 0.0, 128
      %4022 = vxpose.xlu0.b32.cont [4/16] 0.0, 128
      %4023 = vxpose.xlu0.b32.cont [5/16] 0.0, 128
      %4024 = vxpose.xlu0.b32.cont [6/16] 0.0, 128
      %4025 = vxpose.xlu0.b32.cont [7/16] 0.0, 128
      %4026 = vxpose.xlu0.b32.cont [8/16] 0.0, 128
      %4027 = vxpose.xlu0.b32.cont [9/16] 0.0, 128
      %4028 = vxpose.xlu0.b32.cont [10/16] 0.0, 128
      %4029 = vxpose.xlu0.b32.cont [11/16] 0.0, 128
      %4030 = vxpose.xlu0.b32.cont [12/16] 0.0, 128
      %4031 = vxpose.xlu0.b32.cont [13/16] 0.0, 128
      %4032 = vxpose.xlu0.b32.cont [14/16] 0.0, 128
      %4033 = vxpose.xlu0.b32.cont [15/16] 0.0, 128
      %4034 = vxpose.xlu0.b32.end [16/16] 0.0, 128
      %v4035 = vpop.trf.xlu0
      %v4036 = vpop.trf.xlu0
      %v4037 = vpop.trf.xlu0
      %v4038 = vpop.trf.xlu0
      %v4039 = vpop.trf.xlu0
      %v4040 = vpop.trf.xlu0
      %v4041 = vpop.trf.xlu0
      %v4042 = vpop.trf.xlu0
      %v4043 = vpop.trf.xlu0
      %v4044 = vpop.trf.xlu0
      %v4045 = vpop.trf.xlu0
      %v4046 = vpop.trf.xlu0
      %v4047 = vpop.trf.xlu0
      %v4048 = vpop.trf.xlu0
      %v4049 = vpop.trf.xlu0
      %v4050 = vpop.trf.xlu0
      %v4051 = vadd.f32 %v3423, %v4035
      %v4052 = vmul.f32 %v4051, 0.5
      %4054 = vrot.lane.b32.xlu0 %v4052, 120
      %v4055 = vpop.permute.xlu0 %4054
      %vm4057 = vcmask 1048512
      %4058 = vst.msk [vmem:[%s274] sm:$0xff] %vm4057, %v4055
      %p4059 = scmp.lt.s32.totalorder %s17, 1
      %s4060 = scalar_select %p4059, %s17, 1
      %s4061 = smul.addr %s4060, 8
      %s4062 = scalar_lea.vmem %s6, %s4061
      // Predicated region
      $region45: #{graph_learning_forward.1} parent=43 // pred_check
        %p4063 = pneg %p171
      $region46: #{graph_learning_forward.1} parent=43 // pred_check_branch
        %4065 = sbr.rel (%p4063) target = $region48
      $region47: #{graph_learning_forward.1} parent=43 // pred_region
        _
      $region48: #{graph_learning_forward.1} parent=43 // pred_fallthru
        _
    $region44: #{graph_learning_forward.1} parent=5 // pred_fallthru
      _
    %p4066 = scmp.le.s32.totalorder 2, %s12
    // Predicated region
    $region49: #{graph_learning_forward.1} parent=5 // pred_check
      %p4067 = pneg %p4066
    $region50: #{graph_learning_forward.1} parent=5 // pred_check_branch
      %4069 = sbr.rel (%p4067) target = $region52
    $region51: #{graph_learning_forward.1} parent=5 // pred_region
      %s4070 = ssub.s32 %s12, 2
      // Predicated region
      $region53: #{graph_learning_forward.1} parent=51 // pred_check
        %p4071 = pneg %p177
      $region54: #{graph_learning_forward.1} parent=51 // pred_check_branch
        %4073 = sbr.rel (%p4071) target = $region56
      $region55: #{graph_learning_forward.1} parent=51 // pred_region
        %p4074 = scmp.lt.s32.totalorder %s18, 1
        %s4075 = scalar_select %p4074, %s18, 1
        %s4076 = smul.addr %s4075, 8
        %s4077 = scalar_lea.vmem %s6, %s4076
      $region56: #{graph_learning_forward.1} parent=51 // pred_fallthru
        _
    $region52: #{graph_learning_forward.1} parent=5 // pred_fallthru
      _
  $region6: #{graph_learning_forward.1} parent=0 // loop_footer
    %s16 = sadd.s32 1, %s12
  $region7: #{graph_learning_forward.1} parent=0 // loop_footer_branch
    %11 = sbr.rel target = $region3
  $region8: #{graph_learning_forward.1} parent=0 // loop_exit
    _

</llo_original>
